<compile_context>
chip_gen: v6e
topology: v6e:2x2x1
jax: 0.10.0
libtpu: 0.0.40
codegen_flags: <defaults>
</compile_context>

<pallas_src>
import functools
import math

import jax
import jax.numpy as jnp
from jax.experimental import pallas as pl
from jax.experimental.pallas import tpu as pltpu


# ------------------------------ fused kernel --------------------------------

def _fused_forward_kernel(
    # step-invariant inputs
    dxdy_ref, base_ref, bias_ref, noise_ref,
    ew1_ref, eb1_ref, ew2_ref, eb2_ref,
    # per-layer stacked weights (block chosen by program_id(0))
    wq_ref, bq_ref, wk_ref, bk_ref, wv_ref, bv_ref, wo_ref, bo_ref,
    l1g_ref, l1b_ref, fw1_ref, fb1_ref, fw2_ref, fb2_ref, l2g_ref, l2b_ref,
    # final encoder norm + noise MLP
    ng_ref, nb_ref, nw1a_ref, nw1b_ref, nb1_ref, nw2_ref, nb2_ref,
    # output (doubles as the VMEM-resident running activation across the grid)
    out_ref,
    *, batch, nhead, eps, use_noise):

    layer = pl.program_id(0)
    n_layers = pl.num_programs(0)
    LB, D = out_ref.shape
    head_dim = D // nhead
    scale = 1.0 / math.sqrt(head_dim)

    def mm(a, b):
        return jnp.dot(a, b, preferred_element_type=jnp.float32)

    def layer_norm(v, g, b):
        mu = jnp.mean(v, axis=-1, keepdims=True)
        c = v - mu
        var = jnp.mean(c * c, axis=-1, keepdims=True)
        return c * jax.lax.rsqrt(var + eps) * g + b

    # ---- grid step 0: assemble the initial (L*B, D) activation in VMEM ----
    # base_ref already holds [global ; local | 0] + positional encoding; the
    # embedding MLP output lands in the right D/2 columns of the non-global rows
    # (emb_w2 was zero-padded on the left host-side, so no in-kernel concat).
    @pl.when(layer == 0)
    def _init():
        h = jnp.maximum(mm(dxdy_ref[...], ew1_ref[...]) + eb1_ref[...], 0.0)
        emb = mm(h, ew2_ref[...]) + eb2_ref[...]            # (LB, D), zero left half
        row = jax.lax.broadcasted_iota(jnp.int32, (LB, D), 0)
        emb = jnp.where(row >= batch, emb, 0.0)             # global rows: no embedding
        out_ref[...] = base_ref[...] + emb

    # ---- transformer encoder layer `layer` (post-norm, ReLU activation) ----
    x = out_ref[...]                                        # carried activation
    bias = bias_ref[...]                                    # block-diag batch mask

    attn = jnp.zeros((LB, D), jnp.float32)
    for h_idx in range(nhead):                              # static unroll, nhead small
        q = (mm(x, wq_ref[0, h_idx]) + bq_ref[0, h_idx]) * scale
        k = mm(x, wk_ref[0, h_idx]) + bk_ref[0, h_idx]
        v = mm(x, wv_ref[0, h_idx]) + bv_ref[0, h_idx]
        s = jax.lax.dot_general(q, k, (((1,), (1,)), ((), ())),
                                preferred_element_type=jnp.float32) + bias
        p = jnp.exp(s - jnp.max(s, axis=-1, keepdims=True))
        p = p * pl.reciprocal(jnp.sum(p, axis=-1, keepdims=True), approx=True)
        attn = attn + mm(mm(p, v), wo_ref[0, h_idx])        # fold out-proj per head
    attn = attn + bo_ref[0]

    x = layer_norm(x + attn, l1g_ref[0], l1b_ref[0])
    ff = mm(jnp.maximum(mm(x, fw1_ref[0]) + fb1_ref[0], 0.0), fw2_ref[0]) + fb2_ref[0]
    x = layer_norm(x + ff, l2g_ref[0], l2b_ref[0])
    out_ref[...] = x

    # ---- last grid step: final LayerNorm + noise MLP, single HBM writeback ----
    @pl.when(layer == n_layers - 1)
    def _final():
        y = layer_norm(x, ng_ref[...], nb_ref[...])
        if use_noise:
            # concat([y, noise]) @ nz_w1 == y @ nz_w1[:D] + noise @ nz_w1[D:]
            h1 = jnp.maximum(mm(y, nw1a_ref[...]) + mm(noise_ref[...], nw1b_ref[...])
                             + nb1_ref[...], 0.0)
            y = jnp.maximum(mm(h1, nw2_ref[...]) + nb2_ref[...], 0.0)
        out_ref[...] = y


# ------------------------------ forward wrapper ------------------------------

def visual_motion_encoder_forward(params, cfg, x, global_features, local_features,
                                  noise_key):
    in_xy, in_dxdy = x["in_xy"], x["in_dxdy"]     # in_xy unused, as in the torch module
    del in_xy
    S, B, Fin = in_dxdy.shape
    D, H = cfg["d_model"], cfg["nhead"]
    NS, NL = cfg["noise_scalar"], cfg["num_layers"]
    Dh, Dh2 = D // H, D // 2
    L = S + 1
    LB = L * B
    f32 = jnp.float32

    # ---- one-time host/XLA layout prep (tiny tensors); keeps the kernel free of
    #      reshapes / transposes / concats entirely. Rows are (l, b)-major. ----
    pe_rows = jnp.broadcast_to(params["pe"][:L][:, None, :], (L, B, D)).reshape(LB, D)
    dxdy_full = jnp.concatenate(
        [jnp.zeros((B, Fin), f32), in_dxdy.reshape(S * B, Fin)], axis=0)        # (LB, Fin)
    body_left = jnp.concatenate(
        [local_features.reshape(S * B, Dh2), jnp.zeros((S * B, D - Dh2), f32)], axis=-1)
    g_rows = jnp.broadcast_to(global_features.reshape(1, D), (B, D))
    init_base = jnp.concatenate([g_rows, body_left], axis=0) + pe_rows          # (LB, D)

    # additive mask decoupling the B batches inside the (LB, LB) attention scores
    bid = jnp.arange(LB, dtype=jnp.int32) % B
    attn_bias = jnp.where(bid[:, None] == bid[None, :], 0.0, -1e30).astype(f32)

    emb_w1 = params["emb_w1"]
    emb_b1 = params["emb_b1"].reshape(1, Dh2)
    emb_w2p = jnp.concatenate([jnp.zeros((Dh2, D - Dh2), f32), params["emb_w2"]], axis=-1)
    emb_b2p = jnp.concatenate([jnp.zeros((1, D - Dh2), f32),
                               params["emb_b2"].reshape(1, Dh2)], axis=-1)

    # per-layer weights: stack over layers, split into per-head slabs host-side
    def stack(name):
        return jnp.stack([lp[name] for lp in params["layers"]], axis=0)

    w_qkv = stack("w_qkv").reshape(NL, D, 3, H, Dh).transpose(0, 2, 3, 1, 4)  # (NL,3,H,D,Dh)
    b_qkv = stack("b_qkv").reshape(NL, 3, H, 1, Dh)
    wq, wk, wv = w_qkv[:, 0], w_qkv[:, 1], w_qkv[:, 2]                        # (NL,H,D,Dh)
    bq, bk, bv = b_qkv[:, 0], b_qkv[:, 1], b_qkv[:, 2]                        # (NL,H,1,Dh)
    wo = stack("w_out").reshape(NL, H, Dh, D)
    bo = stack("b_out").reshape(NL, 1, D)
    ln1g = stack("ln1_g").reshape(NL, 1, D)
    ln1b = stack("ln1_b").reshape(NL, 1, D)
    ffw1 = stack("ff_w1")
    ffb1 = stack("ff_b1").reshape(NL, 1, -1)
    ffw2 = stack("ff_w2")
    ffb2 = stack("ff_b2").reshape(NL, 1, D)
    ln2g = stack("ln2_g").reshape(NL, 1, D)
    ln2b = stack("ln2_b").reshape(NL, 1, D)

    normg = params["norm_g"].reshape(1, D)
    normb = params["norm_b"].reshape(1, D)

    if NS:
        noise2d = jax.random.normal(noise_key, (L, B, NS), f32).reshape(LB, NS)
        nzw1a = params["nz_w1"][:D]
        nzw1b = params["nz_w1"][D:]
        nzb1 = params["nz_b1"].reshape(1, -1)
        nzw2 = params["nz_w2"]
        nzb2 = params["nz_b2"].reshape(1, -1)
    else:   # statically unused dummies
        noise2d = jnp.zeros((LB, 1), f32)
        nzw1a = jnp.zeros((D, 1), f32)
        nzw1b = jnp.zeros((1, 1), f32)
        nzb1 = jnp.zeros((1, 1), f32)
        nzw2 = jnp.zeros((1, D), f32)
        nzb2 = jnp.zeros((1, D), f32)

    def cspec(a):   # whole-array block, constant across the layer grid
        n = a.ndim
        return pl.BlockSpec(tuple(a.shape), lambda l: (0,) * n)

    def lspec(a):   # per-layer block: leading dim follows the grid step
        n = a.ndim
        return pl.BlockSpec((1,) + tuple(a.shape[1:]), lambda l: (l,) + (0,) * (n - 1))

    const_in = [dxdy_full, init_base, attn_bias, noise2d,
                emb_w1, emb_b1, emb_w2p, emb_b2p]
    layer_in = [wq, bq, wk, bk, wv, bv, wo, bo,
                ln1g, ln1b, ffw1, ffb1, ffw2, ffb2, ln2g, ln2b]
    tail_in = [normg, normb, nzw1a, nzw1b, nzb1, nzw2, nzb2]
    in_specs = ([cspec(a) for a in const_in] + [lspec(a) for a in layer_in]
                + [cspec(a) for a in tail_in])

    kernel = functools.partial(_fused_forward_kernel, batch=B, nhead=H,
                               eps=1e-5, use_noise=bool(NS))
    out2d = pl.pallas_call(
        kernel,
        out_shape=jax.ShapeDtypeStruct((LB, D), f32),
        grid=(NL,),
        in_specs=in_specs,
        out_specs=pl.BlockSpec((LB, D), lambda l: (0, 0)),
        compiler_params=pltpu.CompilerParams(dimension_semantics=("arbitrary",)),
    )(*const_in, *layer_in, *tail_in)

    return out2d.reshape(L, B, D)


# ------------------------------ parameter init -------------------------------

def sinusoidal_pe(max_len, d):
    pos = jnp.arange(max_len, dtype=jnp.float32)[:, None]
    div = jnp.exp(jnp.arange(0, d, 2, dtype=jnp.float32) * (-math.log(10000.0) / d))
    pe = jnp.zeros((max_len, d), jnp.float32)
    pe = pe.at[:, 0::2].set(jnp.sin(pos * div))
    pe = pe.at[:, 1::2].set(jnp.cos(pos * div))
    return pe


def init_params(key, cfg):
    D = cfg["d_model"]
    Hh = D // 2
    Fin = cfg["in_features"]
    FF = cfg["dim_feedforward"]
    NS = cfg["noise_scalar"]
    MS = cfg["mlp_scalar"]

    keys = iter(jax.random.split(key, 8 + 4 * cfg["num_layers"]))

    def w(shape, scale=0.05):
        return jax.random.normal(next(keys), shape, jnp.float32) * scale

    params = {
        "emb_w1": w((Fin, Hh)), "emb_b1": jnp.zeros((Hh,), jnp.float32),
        "emb_w2": w((Hh, Hh)),  "emb_b2": jnp.zeros((Hh,), jnp.float32),
        "nz_w1": w((D + NS, MS)), "nz_b1": jnp.zeros((MS,), jnp.float32),
        "nz_w2": w((MS, D)),      "nz_b2": jnp.zeros((D,), jnp.float32),
        "norm_g": jnp.ones((D,), jnp.float32),
        "norm_b": jnp.zeros((D,), jnp.float32),
        "pe": sinusoidal_pe(cfg["seq_len"], D),
    }
    layers = []
    for _ in range(cfg["num_layers"]):
        layers.append({
            "w_qkv": w((D, 3 * D)), "b_qkv": jnp.zeros((3 * D,), jnp.float32),
            "w_out": w((D, D)),     "b_out": jnp.zeros((D,), jnp.float32),
            "ln1_g": jnp.ones((D,), jnp.float32),
            "ln1_b": jnp.zeros((D,), jnp.float32),
            "ff_w1": w((D, FF)), "ff_b1": jnp.zeros((FF,), jnp.float32),
            "ff_w2": w((FF, D)), "ff_b2": jnp.zeros((D,), jnp.float32),
            "ln2_g": jnp.ones((D,), jnp.float32),
            "ln2_b": jnp.zeros((D,), jnp.float32),
        })
    params["layers"] = layers
    return params


# ---------------------------------- main -------------------------------------

if __name__ == "__main__":
    cfg = dict(in_features=2, d_model=32, nhead=4, dim_feedforward=64,
               num_layers=2, seq_len=16, noise_scalar=4, mlp_scalar=32)

    key = jax.random.PRNGKey(0)
    kp, kxy, kdxdy, kloc, kglob, knoise = jax.random.split(key, 6)
    params = init_params(kp, cfg)

    S, B = 7, 2
    x = {
        "in_xy":   jax.random.normal(kxy,   (S, B, 2), jnp.float32),
        "in_dxdy": jax.random.normal(kdxdy, (S, B, cfg["in_features"]), jnp.float32),
    }
    local_features = jax.random.normal(kloc, (S, B, cfg["d_model"] // 2), jnp.float32)
    global_features = jax.random.normal(kglob, (1, cfg["d_model"]), jnp.float32)

    @jax.jit
    def run(p, xin, gfeat, lfeat, nkey):
        return visual_motion_encoder_forward(p, cfg, xin, gfeat, lfeat, nkey)

    out = run(params, x, global_features, local_features, knoise)
    out = jax.block_until_ready(out)
    assert out.shape == (S + 1, B, cfg["d_model"]), out.shape
    assert bool(jnp.all(jnp.isfinite(out)))
    print("KERNEL_OK")
</pallas_src>

<mosaic_0001>
module attributes {stable_mosaic.version = 11 : i64} {
  func.func @_fused_forward_kernel(%arg0: i32, %arg1: memref<16x2xf32, #tpu.memory_space<vmem>>, %arg2: memref<16x32xf32, #tpu.memory_space<vmem>>, %arg3: memref<16x16xf32, #tpu.memory_space<vmem>>, %arg4: memref<16x4xf32, #tpu.memory_space<vmem>>, %arg5: memref<2x16xf32, #tpu.memory_space<vmem>>, %arg6: memref<1x16xf32, #tpu.memory_space<vmem>>, %arg7: memref<16x32xf32, #tpu.memory_space<vmem>>, %arg8: memref<1x32xf32, #tpu.memory_space<vmem>>, %arg9: memref<1x4x32x8xf32, #tpu.memory_space<vmem>>, %arg10: memref<1x4x1x8xf32, #tpu.memory_space<vmem>>, %arg11: memref<1x4x32x8xf32, #tpu.memory_space<vmem>>, %arg12: memref<1x4x1x8xf32, #tpu.memory_space<vmem>>, %arg13: memref<1x4x32x8xf32, #tpu.memory_space<vmem>>, %arg14: memref<1x4x1x8xf32, #tpu.memory_space<vmem>>, %arg15: memref<1x4x8x32xf32, #tpu.memory_space<vmem>>, %arg16: memref<1x1x32xf32, #tpu.memory_space<vmem>>, %arg17: memref<1x1x32xf32, #tpu.memory_space<vmem>>, %arg18: memref<1x1x32xf32, #tpu.memory_space<vmem>>, %arg19: memref<1x32x64xf32, #tpu.memory_space<vmem>>, %arg20: memref<1x1x64xf32, #tpu.memory_space<vmem>>, %arg21: memref<1x64x32xf32, #tpu.memory_space<vmem>>, %arg22: memref<1x1x32xf32, #tpu.memory_space<vmem>>, %arg23: memref<1x1x32xf32, #tpu.memory_space<vmem>>, %arg24: memref<1x1x32xf32, #tpu.memory_space<vmem>>, %arg25: memref<1x32xf32, #tpu.memory_space<vmem>>, %arg26: memref<1x32xf32, #tpu.memory_space<vmem>>, %arg27: memref<32x32xf32, #tpu.memory_space<vmem>>, %arg28: memref<4x32xf32, #tpu.memory_space<vmem>>, %arg29: memref<1x32xf32, #tpu.memory_space<vmem>>, %arg30: memref<32x32xf32, #tpu.memory_space<vmem>>, %arg31: memref<1x32xf32, #tpu.memory_space<vmem>>, %arg32: memref<16x32xf32, #tpu.memory_space<vmem>>) attributes {dimension_semantics = [#tpu.dimension_semantics<arbitrary>], iteration_bounds = array<i64: 2>, scalar_prefetch = 0 : i64, scratch_operands = 0 : i64, tpu.core_type = #tpu.core_type<tc>, window_params = [{pipeline_mode = #tpu.pipeline_mode<synchronous>, transform_indices = @transform_0, window_bounds = array<i64: 16, 2>}, {pipeline_mode = #tpu.pipeline_mode<synchronous>, transform_indices = @transform_1, window_bounds = array<i64: 16, 32>}, {pipeline_mode = #tpu.pipeline_mode<synchronous>, transform_indices = @transform_2, window_bounds = array<i64: 16, 16>}, {pipeline_mode = #tpu.pipeline_mode<synchronous>, transform_indices = @transform_3, window_bounds = array<i64: 16, 4>}, {pipeline_mode = #tpu.pipeline_mode<synchronous>, transform_indices = @transform_4, window_bounds = array<i64: 2, 16>}, {pipeline_mode = #tpu.pipeline_mode<synchronous>, transform_indices = @transform_5, window_bounds = array<i64: 1, 16>}, {pipeline_mode = #tpu.pipeline_mode<synchronous>, transform_indices = @transform_6, window_bounds = array<i64: 16, 32>}, {pipeline_mode = #tpu.pipeline_mode<synchronous>, transform_indices = @transform_7, window_bounds = array<i64: 1, 32>}, {transform_indices = @transform_8, window_bounds = array<i64: 1, 4, 32, 8>}, {transform_indices = @transform_9, window_bounds = array<i64: 1, 4, 1, 8>}, {transform_indices = @transform_10, window_bounds = array<i64: 1, 4, 32, 8>}, {transform_indices = @transform_11, window_bounds = array<i64: 1, 4, 1, 8>}, {transform_indices = @transform_12, window_bounds = array<i64: 1, 4, 32, 8>}, {transform_indices = @transform_13, window_bounds = array<i64: 1, 4, 1, 8>}, {transform_indices = @transform_14, window_bounds = array<i64: 1, 4, 8, 32>}, {transform_indices = @transform_15, window_bounds = array<i64: 1, 1, 32>}, {transform_indices = @transform_16, window_bounds = array<i64: 1, 1, 32>}, {transform_indices = @transform_17, window_bounds = array<i64: 1, 1, 32>}, {transform_indices = @transform_18, window_bounds = array<i64: 1, 32, 64>}, {transform_indices = @transform_19, window_bounds = array<i64: 1, 1, 64>}, {transform_indices = @transform_20, window_bounds = array<i64: 1, 64, 32>}, {transform_indices = @transform_21, window_bounds = array<i64: 1, 1, 32>}, {transform_indices = @transform_22, window_bounds = array<i64: 1, 1, 32>}, {transform_indices = @transform_23, window_bounds = array<i64: 1, 1, 32>}, {pipeline_mode = #tpu.pipeline_mode<synchronous>, transform_indices = @transform_24, window_bounds = array<i64: 1, 32>}, {pipeline_mode = #tpu.pipeline_mode<synchronous>, transform_indices = @transform_25, window_bounds = array<i64: 1, 32>}, {pipeline_mode = #tpu.pipeline_mode<synchronous>, transform_indices = @transform_26, window_bounds = array<i64: 32, 32>}, {pipeline_mode = #tpu.pipeline_mode<synchronous>, transform_indices = @transform_27, window_bounds = array<i64: 4, 32>}, {pipeline_mode = #tpu.pipeline_mode<synchronous>, transform_indices = @transform_28, window_bounds = array<i64: 1, 32>}, {pipeline_mode = #tpu.pipeline_mode<synchronous>, transform_indices = @transform_29, window_bounds = array<i64: 32, 32>}, {pipeline_mode = #tpu.pipeline_mode<synchronous>, transform_indices = @transform_30, window_bounds = array<i64: 1, 32>}, {pipeline_mode = #tpu.pipeline_mode<synchronous>, transform_indices = @transform_31, window_bounds = array<i64: 16, 32>}]} {
    %c0_i32 = arith.constant 0 : i32
    %0 = arith.cmpi eq, %arg0, %c0_i32 : i32
    %1 = arith.extui %0 : i1 to i32
    %c0_i32_0 = arith.constant 0 : i32
    %2 = arith.cmpi ne, %1, %c0_i32_0 : i32
    scf.if %2 {
      %c0_192 = arith.constant 0 : index
      %c0_193 = arith.constant 0 : index
      %240 = vector.load %arg1[%c0_192, %c0_193] : memref<16x2xf32, #tpu.memory_space<vmem>>, vector<16x2xf32>
      %c0_194 = arith.constant 0 : index
      %c0_195 = arith.constant 0 : index
      %241 = vector.load %arg5[%c0_194, %c0_195] : memref<2x16xf32, #tpu.memory_space<vmem>>, vector<2x16xf32>
      %cst_196 = arith.constant dense<0.000000e+00> : vector<16x16xf32>
      %242 = tpu.matmul %240, %241, %cst_196 {dimension_numbers = #tpu.dot_dimension_numbers<[1], [0], [0], [1], [0, 0, 1, 1], [], []>} : vector<16x2xf32>, vector<2x16xf32>, vector<16x16xf32> -> vector<16x16xf32>
      %c0_197 = arith.constant 0 : index
      %c0_198 = arith.constant 0 : index
      %243 = vector.load %arg6[%c0_197, %c0_198] : memref<1x16xf32, #tpu.memory_space<vmem>>, vector<1x16xf32>
      %244 = vector.broadcast %243 : vector<1x16xf32> to vector<16x16xf32>
      %245 = arith.addf %242, %244 : vector<16x16xf32>
      %cst_199 = arith.constant 0.000000e+00 : f32
      %246 = vector.broadcast %cst_199 : f32 to vector<16x16xf32>
      %247 = arith.maximumf %245, %246 : vector<16x16xf32>
      %c0_200 = arith.constant 0 : index
      %c0_201 = arith.constant 0 : index
      %248 = vector.load %arg7[%c0_200, %c0_201] : memref<16x32xf32, #tpu.memory_space<vmem>>, vector<16x32xf32>
      %cst_202 = arith.constant dense<0.000000e+00> : vector<16x32xf32>
      %249 = tpu.matmul %247, %248, %cst_202 {dimension_numbers = #tpu.dot_dimension_numbers<[1], [0], [0], [1], [0, 0, 1, 1], [], []>} : vector<16x16xf32>, vector<16x32xf32>, vector<16x32xf32> -> vector<16x32xf32>
      %c0_203 = arith.constant 0 : index
      %c0_204 = arith.constant 0 : index
      %250 = vector.load %arg8[%c0_203, %c0_204] : memref<1x32xf32, #tpu.memory_space<vmem>>, vector<1x32xf32>
      %251 = vector.broadcast %250 : vector<1x32xf32> to vector<16x32xf32>
      %252 = arith.addf %249, %251 : vector<16x32xf32>
      %253 = tpu.iota {dimensions = array<i32: 0>} : vector<16x32xi32>
      %c2_i32 = arith.constant 2 : i32
      %254 = vector.broadcast %c2_i32 : i32 to vector<16x32xi32>
      %255 = arith.cmpi sge, %253, %254 : vector<16x32xi32>
      %cst_205 = arith.constant 0.000000e+00 : f32
      %256 = vector.broadcast %cst_205 : f32 to vector<16x32xf32>
      %257 = arith.select %255, %252, %256 : vector<16x32xi1>, vector<16x32xf32>
      %c0_206 = arith.constant 0 : index
      %c0_207 = arith.constant 0 : index
      %258 = vector.load %arg2[%c0_206, %c0_207] : memref<16x32xf32, #tpu.memory_space<vmem>>, vector<16x32xf32>
      %259 = arith.addf %258, %257 : vector<16x32xf32>
      %c0_208 = arith.constant 0 : index
      %c0_209 = arith.constant 0 : index
      %260 = vector.load %arg32[%c0_208, %c0_209] : memref<16x32xf32, #tpu.memory_space<vmem>>, vector<16x32xf32>
      tpu.vector_store %arg32[%c0_208, %c0_209], %259 {strides = array<i32>} : memref<16x32xf32, #tpu.memory_space<vmem>>, vector<16x32xf32>,
    } else {
    }
    %c0 = arith.constant 0 : index
    %c0_1 = arith.constant 0 : index
    %3 = vector.load %arg32[%c0, %c0_1] : memref<16x32xf32, #tpu.memory_space<vmem>>, vector<16x32xf32>
    %c0_2 = arith.constant 0 : index
    %c0_3 = arith.constant 0 : index
    %4 = vector.load %arg3[%c0_2, %c0_3] : memref<16x16xf32, #tpu.memory_space<vmem>>, vector<16x16xf32>
    %cst = arith.constant 0.000000e+00 : f32
    %5 = vector.broadcast %cst : f32 to vector<16x32xf32>
    %c0_4 = arith.constant 0 : index
    %c0_5 = arith.constant 0 : index
    %c0_6 = arith.constant 0 : index
    %c0_7 = arith.constant 0 : index
    %6 = vector.load %arg9[%c0_4, %c0_5, %c0_6, %c0_7] : memref<1x4x32x8xf32, #tpu.memory_space<vmem>>, vector<1x1x32x8xf32>
    %7 = vector.shape_cast %6 : vector<1x1x32x8xf32> to vector<32x8xf32>
    %cst_8 = arith.constant dense<0.000000e+00> : vector<16x8xf32>
    %8 = tpu.matmul %3, %7, %cst_8 {dimension_numbers = #tpu.dot_dimension_numbers<[1], [0], [0], [1], [0, 0, 1, 1], [], []>} : vector<16x32xf32>, vector<32x8xf32>, vector<16x8xf32> -> vector<16x8xf32>
    %c0_9 = arith.constant 0 : index
    %c0_10 = arith.constant 0 : index
    %c0_11 = arith.constant 0 : index
    %c0_12 = arith.constant 0 : index
    %9 = vector.load %arg10[%c0_9, %c0_10, %c0_11, %c0_12] : memref<1x4x1x8xf32, #tpu.memory_space<vmem>>, vector<1x1x1x8xf32>
    %10 = vector.shape_cast %9 : vector<1x1x1x8xf32> to vector<1x8xf32>
    %11 = vector.broadcast %10 : vector<1x8xf32> to vector<16x8xf32>
    %12 = arith.addf %8, %11 : vector<16x8xf32>
    %cst_13 = arith.constant 0.353553385 : f32
    %13 = vector.broadcast %cst_13 : f32 to vector<16x8xf32>
    %14 = arith.mulf %12, %13 : vector<16x8xf32>
    %c0_14 = arith.constant 0 : index
    %c0_15 = arith.constant 0 : index
    %c0_16 = arith.constant 0 : index
    %c0_17 = arith.constant 0 : index
    %15 = vector.load %arg11[%c0_14, %c0_15, %c0_16, %c0_17] : memref<1x4x32x8xf32, #tpu.memory_space<vmem>>, vector<1x1x32x8xf32>
    %16 = vector.shape_cast %15 : vector<1x1x32x8xf32> to vector<32x8xf32>
    %cst_18 = arith.constant dense<0.000000e+00> : vector<16x8xf32>
    %17 = tpu.matmul %3, %16, %cst_18 {dimension_numbers = #tpu.dot_dimension_numbers<[1], [0], [0], [1], [0, 0, 1, 1], [], []>} : vector<16x32xf32>, vector<32x8xf32>, vector<16x8xf32> -> vector<16x8xf32>
    %c0_19 = arith.constant 0 : index
    %c0_20 = arith.constant 0 : index
    %c0_21 = arith.constant 0 : index
    %c0_22 = arith.constant 0 : index
    %18 = vector.load %arg12[%c0_19, %c0_20, %c0_21, %c0_22] : memref<1x4x1x8xf32, #tpu.memory_space<vmem>>, vector<1x1x1x8xf32>
    %19 = vector.shape_cast %18 : vector<1x1x1x8xf32> to vector<1x8xf32>
    %20 = vector.broadcast %19 : vector<1x8xf32> to vector<16x8xf32>
    %21 = arith.addf %17, %20 : vector<16x8xf32>
    %c0_23 = arith.constant 0 : index
    %c0_24 = arith.constant 0 : index
    %c0_25 = arith.constant 0 : index
    %c0_26 = arith.constant 0 : index
    %22 = vector.load %arg13[%c0_23, %c0_24, %c0_25, %c0_26] : memref<1x4x32x8xf32, #tpu.memory_space<vmem>>, vector<1x1x32x8xf32>
    %23 = vector.shape_cast %22 : vector<1x1x32x8xf32> to vector<32x8xf32>
    %cst_27 = arith.constant dense<0.000000e+00> : vector<16x8xf32>
    %24 = tpu.matmul %3, %23, %cst_27 {dimension_numbers = #tpu.dot_dimension_numbers<[1], [0], [0], [1], [0, 0, 1, 1], [], []>} : vector<16x32xf32>, vector<32x8xf32>, vector<16x8xf32> -> vector<16x8xf32>
    %c0_28 = arith.constant 0 : index
    %c0_29 = arith.constant 0 : index
    %c0_30 = arith.constant 0 : index
    %c0_31 = arith.constant 0 : index
    %25 = vector.load %arg14[%c0_28, %c0_29, %c0_30, %c0_31] : memref<1x4x1x8xf32, #tpu.memory_space<vmem>>, vector<1x1x1x8xf32>
    %26 = vector.shape_cast %25 : vector<1x1x1x8xf32> to vector<1x8xf32>
    %27 = vector.broadcast %26 : vector<1x8xf32> to vector<16x8xf32>
    %28 = arith.addf %24, %27 : vector<16x8xf32>
    %cst_32 = arith.constant dense<0.000000e+00> : vector<16x16xf32>
    %29 = tpu.matmul %14, %21, %cst_32 {dimension_numbers = #tpu.dot_dimension_numbers<[1], [1], [0], [0], [0, 0, 1, 0], [], []>} : vector<16x8xf32>, vector<16x8xf32>, vector<16x16xf32> -> vector<16x16xf32>
    %30 = arith.addf %29, %4 : vector<16x16xf32>
    %cst_33 = arith.constant dense<0xFF800000> : vector<16xf32>
    %31 = vector.multi_reduction <maximumf>, %30, %cst_33 [1] : vector<16x16xf32> to vector<16xf32>
    %32 = vector.shape_cast %31 : vector<16xf32> to vector<16x1xf32>
    %33 = vector.broadcast %32 : vector<16x1xf32> to vector<16x16xf32>
    %34 = arith.subf %30, %33 : vector<16x16xf32>
    %35 = math.exp %34 : vector<16x16xf32>
    %cst_34 = arith.constant dense<0.000000e+00> : vector<16xf32>
    %36 = vector.multi_reduction <add>, %35, %cst_34 [1] : vector<16x16xf32> to vector<16xf32>
    %37 = vector.shape_cast %36 : vector<16xf32> to vector<16x1xf32>
    %38 = tpu.reciprocal %37 {approx = true} : vector<16x1xf32> -> vector<16x1xf32>
    %39 = vector.broadcast %38 : vector<16x1xf32> to vector<16x16xf32>
    %40 = arith.mulf %35, %39 : vector<16x16xf32>
    %cst_35 = arith.constant dense<0.000000e+00> : vector<16x8xf32>
    %41 = tpu.matmul %40, %28, %cst_35 {dimension_numbers = #tpu.dot_dimension_numbers<[1], [0], [0], [1], [0, 0, 1, 1], [], []>} : vector<16x16xf32>, vector<16x8xf32>, vector<16x8xf32> -> vector<16x8xf32>
    %c0_36 = arith.constant 0 : index
    %c0_37 = arith.constant 0 : index
    %c0_38 = arith.constant 0 : index
    %c0_39 = arith.constant 0 : index
    %42 = vector.load %arg15[%c0_36, %c0_37, %c0_38, %c0_39] : memref<1x4x8x32xf32, #tpu.memory_space<vmem>>, vector<1x1x8x32xf32>
    %43 = vector.shape_cast %42 : vector<1x1x8x32xf32> to vector<8x32xf32>
    %cst_40 = arith.constant dense<0.000000e+00> : vector<16x32xf32>
    %44 = tpu.matmul %41, %43, %cst_40 {dimension_numbers = #tpu.dot_dimension_numbers<[1], [0], [0], [1], [0, 0, 1, 1], [], []>} : vector<16x8xf32>, vector<8x32xf32>, vector<16x32xf32> -> vector<16x32xf32>
    %45 = arith.addf %5, %44 : vector<16x32xf32>
    %c0_41 = arith.constant 0 : index
    %c1 = arith.constant 1 : index
    %c0_42 = arith.constant 0 : index
    %c0_43 = arith.constant 0 : index
    %46 = vector.load %arg9[%c0_41, %c1, %c0_42, %c0_43] : memref<1x4x32x8xf32, #tpu.memory_space<vmem>>, vector<1x1x32x8xf32>
    %47 = vector.shape_cast %46 : vector<1x1x32x8xf32> to vector<32x8xf32>
    %cst_44 = arith.constant dense<0.000000e+00> : vector<16x8xf32>
    %48 = tpu.matmul %3, %47, %cst_44 {dimension_numbers = #tpu.dot_dimension_numbers<[1], [0], [0], [1], [0, 0, 1, 1], [], []>} : vector<16x32xf32>, vector<32x8xf32>, vector<16x8xf32> -> vector<16x8xf32>
    %c0_45 = arith.constant 0 : index
    %c1_46 = arith.constant 1 : index
    %c0_47 = arith.constant 0 : index
    %c0_48 = arith.constant 0 : index
    %49 = vector.load %arg10[%c0_45, %c1_46, %c0_47, %c0_48] : memref<1x4x1x8xf32, #tpu.memory_space<vmem>>, vector<1x1x1x8xf32>
    %50 = vector.shape_cast %49 : vector<1x1x1x8xf32> to vector<1x8xf32>
    %51 = vector.broadcast %50 : vector<1x8xf32> to vector<16x8xf32>
    %52 = arith.addf %48, %51 : vector<16x8xf32>
    %cst_49 = arith.constant 0.353553385 : f32
    %53 = vector.broadcast %cst_49 : f32 to vector<16x8xf32>
    %54 = arith.mulf %52, %53 : vector<16x8xf32>
    %c0_50 = arith.constant 0 : index
    %c1_51 = arith.constant 1 : index
    %c0_52 = arith.constant 0 : index
    %c0_53 = arith.constant 0 : index
    %55 = vector.load %arg11[%c0_50, %c1_51, %c0_52, %c0_53] : memref<1x4x32x8xf32, #tpu.memory_space<vmem>>, vector<1x1x32x8xf32>
    %56 = vector.shape_cast %55 : vector<1x1x32x8xf32> to vector<32x8xf32>
    %cst_54 = arith.constant dense<0.000000e+00> : vector<16x8xf32>
    %57 = tpu.matmul %3, %56, %cst_54 {dimension_numbers = #tpu.dot_dimension_numbers<[1], [0], [0], [1], [0, 0, 1, 1], [], []>} : vector<16x32xf32>, vector<32x8xf32>, vector<16x8xf32> -> vector<16x8xf32>
    %c0_55 = arith.constant 0 : index
    %c1_56 = arith.constant 1 : index
    %c0_57 = arith.constant 0 : index
    %c0_58 = arith.constant 0 : index
    %58 = vector.load %arg12[%c0_55, %c1_56, %c0_57, %c0_58] : memref<1x4x1x8xf32, #tpu.memory_space<vmem>>, vector<1x1x1x8xf32>
    %59 = vector.shape_cast %58 : vector<1x1x1x8xf32> to vector<1x8xf32>
    %60 = vector.broadcast %59 : vector<1x8xf32> to vector<16x8xf32>
    %61 = arith.addf %57, %60 : vector<16x8xf32>
    %c0_59 = arith.constant 0 : index
    %c1_60 = arith.constant 1 : index
    %c0_61 = arith.constant 0 : index
    %c0_62 = arith.constant 0 : index
    %62 = vector.load %arg13[%c0_59, %c1_60, %c0_61, %c0_62] : memref<1x4x32x8xf32, #tpu.memory_space<vmem>>, vector<1x1x32x8xf32>
    %63 = vector.shape_cast %62 : vector<1x1x32x8xf32> to vector<32x8xf32>
    %cst_63 = arith.constant dense<0.000000e+00> : vector<16x8xf32>
    %64 = tpu.matmul %3, %63, %cst_63 {dimension_numbers = #tpu.dot_dimension_numbers<[1], [0], [0], [1], [0, 0, 1, 1], [], []>} : vector<16x32xf32>, vector<32x8xf32>, vector<16x8xf32> -> vector<16x8xf32>
    %c0_64 = arith.constant 0 : index
    %c1_65 = arith.constant 1 : index
    %c0_66 = arith.constant 0 : index
    %c0_67 = arith.constant 0 : index
    %65 = vector.load %arg14[%c0_64, %c1_65, %c0_66, %c0_67] : memref<1x4x1x8xf32, #tpu.memory_space<vmem>>, vector<1x1x1x8xf32>
    %66 = vector.shape_cast %65 : vector<1x1x1x8xf32> to vector<1x8xf32>
    %67 = vector.broadcast %66 : vector<1x8xf32> to vector<16x8xf32>
    %68 = arith.addf %64, %67 : vector<16x8xf32>
    %cst_68 = arith.constant dense<0.000000e+00> : vector<16x16xf32>
    %69 = tpu.matmul %54, %61, %cst_68 {dimension_numbers = #tpu.dot_dimension_numbers<[1], [1], [0], [0], [0, 0, 1, 0], [], []>} : vector<16x8xf32>, vector<16x8xf32>, vector<16x16xf32> -> vector<16x16xf32>
    %70 = arith.addf %69, %4 : vector<16x16xf32>
    %cst_69 = arith.constant dense<0xFF800000> : vector<16xf32>
    %71 = vector.multi_reduction <maximumf>, %70, %cst_69 [1] : vector<16x16xf32> to vector<16xf32>
    %72 = vector.shape_cast %71 : vector<16xf32> to vector<16x1xf32>
    %73 = vector.broadcast %72 : vector<16x1xf32> to vector<16x16xf32>
    %74 = arith.subf %70, %73 : vector<16x16xf32>
    %75 = math.exp %74 : vector<16x16xf32>
    %cst_70 = arith.constant dense<0.000000e+00> : vector<16xf32>
    %76 = vector.multi_reduction <add>, %75, %cst_70 [1] : vector<16x16xf32> to vector<16xf32>
    %77 = vector.shape_cast %76 : vector<16xf32> to vector<16x1xf32>
    %78 = tpu.reciprocal %77 {approx = true} : vector<16x1xf32> -> vector<16x1xf32>
    %79 = vector.broadcast %78 : vector<16x1xf32> to vector<16x16xf32>
    %80 = arith.mulf %75, %79 : vector<16x16xf32>
    %cst_71 = arith.constant dense<0.000000e+00> : vector<16x8xf32>
    %81 = tpu.matmul %80, %68, %cst_71 {dimension_numbers = #tpu.dot_dimension_numbers<[1], [0], [0], [1], [0, 0, 1, 1], [], []>} : vector<16x16xf32>, vector<16x8xf32>, vector<16x8xf32> -> vector<16x8xf32>
    %c0_72 = arith.constant 0 : index
    %c1_73 = arith.constant 1 : index
    %c0_74 = arith.constant 0 : index
    %c0_75 = arith.constant 0 : index
    %82 = vector.load %arg15[%c0_72, %c1_73, %c0_74, %c0_75] : memref<1x4x8x32xf32, #tpu.memory_space<vmem>>, vector<1x1x8x32xf32>
    %83 = vector.shape_cast %82 : vector<1x1x8x32xf32> to vector<8x32xf32>
    %cst_76 = arith.constant dense<0.000000e+00> : vector<16x32xf32>
    %84 = tpu.matmul %81, %83, %cst_76 {dimension_numbers = #tpu.dot_dimension_numbers<[1], [0], [0], [1], [0, 0, 1, 1], [], []>} : vector<16x8xf32>, vector<8x32xf32>, vector<16x32xf32> -> vector<16x32xf32>
    %85 = arith.addf %45, %84 : vector<16x32xf32>
    %c0_77 = arith.constant 0 : index
    %c2 = arith.constant 2 : index
    %c0_78 = arith.constant 0 : index
    %c0_79 = arith.constant 0 : index
    %86 = vector.load %arg9[%c0_77, %c2, %c0_78, %c0_79] : memref<1x4x32x8xf32, #tpu.memory_space<vmem>>, vector<1x1x32x8xf32>
    %87 = vector.shape_cast %86 : vector<1x1x32x8xf32> to vector<32x8xf32>
    %cst_80 = arith.constant dense<0.000000e+00> : vector<16x8xf32>
    %88 = tpu.matmul %3, %87, %cst_80 {dimension_numbers = #tpu.dot_dimension_numbers<[1], [0], [0], [1], [0, 0, 1, 1], [], []>} : vector<16x32xf32>, vector<32x8xf32>, vector<16x8xf32> -> vector<16x8xf32>
    %c0_81 = arith.constant 0 : index
    %c2_82 = arith.constant 2 : index
    %c0_83 = arith.constant 0 : index
    %c0_84 = arith.constant 0 : index
    %89 = vector.load %arg10[%c0_81, %c2_82, %c0_83, %c0_84] : memref<1x4x1x8xf32, #tpu.memory_space<vmem>>, vector<1x1x1x8xf32>
    %90 = vector.shape_cast %89 : vector<1x1x1x8xf32> to vector<1x8xf32>
    %91 = vector.broadcast %90 : vector<1x8xf32> to vector<16x8xf32>
    %92 = arith.addf %88, %91 : vector<16x8xf32>
    %cst_85 = arith.constant 0.353553385 : f32
    %93 = vector.broadcast %cst_85 : f32 to vector<16x8xf32>
    %94 = arith.mulf %92, %93 : vector<16x8xf32>
    %c0_86 = arith.constant 0 : index
    %c2_87 = arith.constant 2 : index
    %c0_88 = arith.constant 0 : index
    %c0_89 = arith.constant 0 : index
    %95 = vector.load %arg11[%c0_86, %c2_87, %c0_88, %c0_89] : memref<1x4x32x8xf32, #tpu.memory_space<vmem>>, vector<1x1x32x8xf32>
    %96 = vector.shape_cast %95 : vector<1x1x32x8xf32> to vector<32x8xf32>
    %cst_90 = arith.constant dense<0.000000e+00> : vector<16x8xf32>
    %97 = tpu.matmul %3, %96, %cst_90 {dimension_numbers = #tpu.dot_dimension_numbers<[1], [0], [0], [1], [0, 0, 1, 1], [], []>} : vector<16x32xf32>, vector<32x8xf32>, vector<16x8xf32> -> vector<16x8xf32>
    %c0_91 = arith.constant 0 : index
    %c2_92 = arith.constant 2 : index
    %c0_93 = arith.constant 0 : index
    %c0_94 = arith.constant 0 : index
    %98 = vector.load %arg12[%c0_91, %c2_92, %c0_93, %c0_94] : memref<1x4x1x8xf32, #tpu.memory_space<vmem>>, vector<1x1x1x8xf32>
    %99 = vector.shape_cast %98 : vector<1x1x1x8xf32> to vector<1x8xf32>
    %100 = vector.broadcast %99 : vector<1x8xf32> to vector<16x8xf32>
    %101 = arith.addf %97, %100 : vector<16x8xf32>
    %c0_95 = arith.constant 0 : index
    %c2_96 = arith.constant 2 : index
    %c0_97 = arith.constant 0 : index
    %c0_98 = arith.constant 0 : index
    %102 = vector.load %arg13[%c0_95, %c2_96, %c0_97, %c0_98] : memref<1x4x32x8xf32, #tpu.memory_space<vmem>>, vector<1x1x32x8xf32>
    %103 = vector.shape_cast %102 : vector<1x1x32x8xf32> to vector<32x8xf32>
    %cst_99 = arith.constant dense<0.000000e+00> : vector<16x8xf32>
    %104 = tpu.matmul %3, %103, %cst_99 {dimension_numbers = #tpu.dot_dimension_numbers<[1], [0], [0], [1], [0, 0, 1, 1], [], []>} : vector<16x32xf32>, vector<32x8xf32>, vector<16x8xf32> -> vector<16x8xf32>
    %c0_100 = arith.constant 0 : index
    %c2_101 = arith.constant 2 : index
    %c0_102 = arith.constant 0 : index
    %c0_103 = arith.constant 0 : index
    %105 = vector.load %arg14[%c0_100, %c2_101, %c0_102, %c0_103] : memref<1x4x1x8xf32, #tpu.memory_space<vmem>>, vector<1x1x1x8xf32>
    %106 = vector.shape_cast %105 : vector<1x1x1x8xf32> to vector<1x8xf32>
    %107 = vector.broadcast %106 : vector<1x8xf32> to vector<16x8xf32>
    %108 = arith.addf %104, %107 : vector<16x8xf32>
    %cst_104 = arith.constant dense<0.000000e+00> : vector<16x16xf32>
    %109 = tpu.matmul %94, %101, %cst_104 {dimension_numbers = #tpu.dot_dimension_numbers<[1], [1], [0], [0], [0, 0, 1, 0], [], []>} : vector<16x8xf32>, vector<16x8xf32>, vector<16x16xf32> -> vector<16x16xf32>
    %110 = arith.addf %109, %4 : vector<16x16xf32>
    %cst_105 = arith.constant dense<0xFF800000> : vector<16xf32>
    %111 = vector.multi_reduction <maximumf>, %110, %cst_105 [1] : vector<16x16xf32> to vector<16xf32>
    %112 = vector.shape_cast %111 : vector<16xf32> to vector<16x1xf32>
    %113 = vector.broadcast %112 : vector<16x1xf32> to vector<16x16xf32>
    %114 = arith.subf %110, %113 : vector<16x16xf32>
    %115 = math.exp %114 : vector<16x16xf32>
    %cst_106 = arith.constant dense<0.000000e+00> : vector<16xf32>
    %116 = vector.multi_reduction <add>, %115, %cst_106 [1] : vector<16x16xf32> to vector<16xf32>
    %117 = vector.shape_cast %116 : vector<16xf32> to vector<16x1xf32>
    %118 = tpu.reciprocal %117 {approx = true} : vector<16x1xf32> -> vector<16x1xf32>
    %119 = vector.broadcast %118 : vector<16x1xf32> to vector<16x16xf32>
    %120 = arith.mulf %115, %119 : vector<16x16xf32>
    %cst_107 = arith.constant dense<0.000000e+00> : vector<16x8xf32>
    %121 = tpu.matmul %120, %108, %cst_107 {dimension_numbers = #tpu.dot_dimension_numbers<[1], [0], [0], [1], [0, 0, 1, 1], [], []>} : vector<16x16xf32>, vector<16x8xf32>, vector<16x8xf32> -> vector<16x8xf32>
    %c0_108 = arith.constant 0 : index
    %c2_109 = arith.constant 2 : index
    %c0_110 = arith.constant 0 : index
    %c0_111 = arith.constant 0 : index
    %122 = vector.load %arg15[%c0_108, %c2_109, %c0_110, %c0_111] : memref<1x4x8x32xf32, #tpu.memory_space<vmem>>, vector<1x1x8x32xf32>
    %123 = vector.shape_cast %122 : vector<1x1x8x32xf32> to vector<8x32xf32>
    %cst_112 = arith.constant dense<0.000000e+00> : vector<16x32xf32>
    %124 = tpu.matmul %121, %123, %cst_112 {dimension_numbers = #tpu.dot_dimension_numbers<[1], [0], [0], [1], [0, 0, 1, 1], [], []>} : vector<16x8xf32>, vector<8x32xf32>, vector<16x32xf32> -> vector<16x32xf32>
    %125 = arith.addf %85, %124 : vector<16x32xf32>
    %c0_113 = arith.constant 0 : index
    %c3 = arith.constant 3 : index
    %c0_114 = arith.constant 0 : index
    %c0_115 = arith.constant 0 : index
    %126 = vector.load %arg9[%c0_113, %c3, %c0_114, %c0_115] : memref<1x4x32x8xf32, #tpu.memory_space<vmem>>, vector<1x1x32x8xf32>
    %127 = vector.shape_cast %126 : vector<1x1x32x8xf32> to vector<32x8xf32>
    %cst_116 = arith.constant dense<0.000000e+00> : vector<16x8xf32>
    %128 = tpu.matmul %3, %127, %cst_116 {dimension_numbers = #tpu.dot_dimension_numbers<[1], [0], [0], [1], [0, 0, 1, 1], [], []>} : vector<16x32xf32>, vector<32x8xf32>, vector<16x8xf32> -> vector<16x8xf32>
    %c0_117 = arith.constant 0 : index
    %c3_118 = arith.constant 3 : index
    %c0_119 = arith.constant 0 : index
    %c0_120 = arith.constant 0 : index
    %129 = vector.load %arg10[%c0_117, %c3_118, %c0_119, %c0_120] : memref<1x4x1x8xf32, #tpu.memory_space<vmem>>, vector<1x1x1x8xf32>
    %130 = vector.shape_cast %129 : vector<1x1x1x8xf32> to vector<1x8xf32>
    %131 = vector.broadcast %130 : vector<1x8xf32> to vector<16x8xf32>
    %132 = arith.addf %128, %131 : vector<16x8xf32>
    %cst_121 = arith.constant 0.353553385 : f32
    %133 = vector.broadcast %cst_121 : f32 to vector<16x8xf32>
    %134 = arith.mulf %132, %133 : vector<16x8xf32>
    %c0_122 = arith.constant 0 : index
    %c3_123 = arith.constant 3 : index
    %c0_124 = arith.constant 0 : index
    %c0_125 = arith.constant 0 : index
    %135 = vector.load %arg11[%c0_122, %c3_123, %c0_124, %c0_125] : memref<1x4x32x8xf32, #tpu.memory_space<vmem>>, vector<1x1x32x8xf32>
    %136 = vector.shape_cast %135 : vector<1x1x32x8xf32> to vector<32x8xf32>
    %cst_126 = arith.constant dense<0.000000e+00> : vector<16x8xf32>
    %137 = tpu.matmul %3, %136, %cst_126 {dimension_numbers = #tpu.dot_dimension_numbers<[1], [0], [0], [1], [0, 0, 1, 1], [], []>} : vector<16x32xf32>, vector<32x8xf32>, vector<16x8xf32> -> vector<16x8xf32>
    %c0_127 = arith.constant 0 : index
    %c3_128 = arith.constant 3 : index
    %c0_129 = arith.constant 0 : index
    %c0_130 = arith.constant 0 : index
    %138 = vector.load %arg12[%c0_127, %c3_128, %c0_129, %c0_130] : memref<1x4x1x8xf32, #tpu.memory_space<vmem>>, vector<1x1x1x8xf32>
    %139 = vector.shape_cast %138 : vector<1x1x1x8xf32> to vector<1x8xf32>
    %140 = vector.broadcast %139 : vector<1x8xf32> to vector<16x8xf32>
    %141 = arith.addf %137, %140 : vector<16x8xf32>
    %c0_131 = arith.constant 0 : index
    %c3_132 = arith.constant 3 : index
    %c0_133 = arith.constant 0 : index
    %c0_134 = arith.constant 0 : index
    %142 = vector.load %arg13[%c0_131, %c3_132, %c0_133, %c0_134] : memref<1x4x32x8xf32, #tpu.memory_space<vmem>>, vector<1x1x32x8xf32>
    %143 = vector.shape_cast %142 : vector<1x1x32x8xf32> to vector<32x8xf32>
    %cst_135 = arith.constant dense<0.000000e+00> : vector<16x8xf32>
    %144 = tpu.matmul %3, %143, %cst_135 {dimension_numbers = #tpu.dot_dimension_numbers<[1], [0], [0], [1], [0, 0, 1, 1], [], []>} : vector<16x32xf32>, vector<32x8xf32>, vector<16x8xf32> -> vector<16x8xf32>
    %c0_136 = arith.constant 0 : index
    %c3_137 = arith.constant 3 : index
    %c0_138 = arith.constant 0 : index
    %c0_139 = arith.constant 0 : index
    %145 = vector.load %arg14[%c0_136, %c3_137, %c0_138, %c0_139] : memref<1x4x1x8xf32, #tpu.memory_space<vmem>>, vector<1x1x1x8xf32>
    %146 = vector.shape_cast %145 : vector<1x1x1x8xf32> to vector<1x8xf32>
    %147 = vector.broadcast %146 : vector<1x8xf32> to vector<16x8xf32>
    %148 = arith.addf %144, %147 : vector<16x8xf32>
    %cst_140 = arith.constant dense<0.000000e+00> : vector<16x16xf32>
    %149 = tpu.matmul %134, %141, %cst_140 {dimension_numbers = #tpu.dot_dimension_numbers<[1], [1], [0], [0], [0, 0, 1, 0], [], []>} : vector<16x8xf32>, vector<16x8xf32>, vector<16x16xf32> -> vector<16x16xf32>
    %150 = arith.addf %149, %4 : vector<16x16xf32>
    %cst_141 = arith.constant dense<0xFF800000> : vector<16xf32>
    %151 = vector.multi_reduction <maximumf>, %150, %cst_141 [1] : vector<16x16xf32> to vector<16xf32>
    %152 = vector.shape_cast %151 : vector<16xf32> to vector<16x1xf32>
    %153 = vector.broadcast %152 : vector<16x1xf32> to vector<16x16xf32>
    %154 = arith.subf %150, %153 : vector<16x16xf32>
    %155 = math.exp %154 : vector<16x16xf32>
    %cst_142 = arith.constant dense<0.000000e+00> : vector<16xf32>
    %156 = vector.multi_reduction <add>, %155, %cst_142 [1] : vector<16x16xf32> to vector<16xf32>
    %157 = vector.shape_cast %156 : vector<16xf32> to vector<16x1xf32>
    %158 = tpu.reciprocal %157 {approx = true} : vector<16x1xf32> -> vector<16x1xf32>
    %159 = vector.broadcast %158 : vector<16x1xf32> to vector<16x16xf32>
    %160 = arith.mulf %155, %159 : vector<16x16xf32>
    %cst_143 = arith.constant dense<0.000000e+00> : vector<16x8xf32>
    %161 = tpu.matmul %160, %148, %cst_143 {dimension_numbers = #tpu.dot_dimension_numbers<[1], [0], [0], [1], [0, 0, 1, 1], [], []>} : vector<16x16xf32>, vector<16x8xf32>, vector<16x8xf32> -> vector<16x8xf32>
    %c0_144 = arith.constant 0 : index
    %c3_145 = arith.constant 3 : index
    %c0_146 = arith.constant 0 : index
    %c0_147 = arith.constant 0 : index
    %162 = vector.load %arg15[%c0_144, %c3_145, %c0_146, %c0_147] : memref<1x4x8x32xf32, #tpu.memory_space<vmem>>, vector<1x1x8x32xf32>
    %163 = vector.shape_cast %162 : vector<1x1x8x32xf32> to vector<8x32xf32>
    %cst_148 = arith.constant dense<0.000000e+00> : vector<16x32xf32>
    %164 = tpu.matmul %161, %163, %cst_148 {dimension_numbers = #tpu.dot_dimension_numbers<[1], [0], [0], [1], [0, 0, 1, 1], [], []>} : vector<16x8xf32>, vector<8x32xf32>, vector<16x32xf32> -> vector<16x32xf32>
    %165 = arith.addf %125, %164 : vector<16x32xf32>
    %c0_149 = arith.constant 0 : index
    %c0_150 = arith.constant 0 : index
    %c0_151 = arith.constant 0 : index
    %166 = vector.load %arg16[%c0_149, %c0_150, %c0_151] : memref<1x1x32xf32, #tpu.memory_space<vmem>>, vector<1x1x32xf32>
    %167 = vector.shape_cast %166 : vector<1x1x32xf32> to vector<1x32xf32>
    %168 = vector.broadcast %167 : vector<1x32xf32> to vector<16x32xf32>
    %169 = arith.addf %165, %168 : vector<16x32xf32>
    %170 = arith.addf %3, %169 : vector<16x32xf32>
    %c0_152 = arith.constant 0 : index
    %c0_153 = arith.constant 0 : index
    %c0_154 = arith.constant 0 : index
    %171 = vector.load %arg17[%c0_152, %c0_153, %c0_154] : memref<1x1x32xf32, #tpu.memory_space<vmem>>, vector<1x1x32xf32>
    %172 = vector.shape_cast %171 : vector<1x1x32xf32> to vector<1x32xf32>
    %c0_155 = arith.constant 0 : index
    %c0_156 = arith.constant 0 : index
    %c0_157 = arith.constant 0 : index
    %173 = vector.load %arg18[%c0_155, %c0_156, %c0_157] : memref<1x1x32xf32, #tpu.memory_space<vmem>>, vector<1x1x32xf32>
    %174 = vector.shape_cast %173 : vector<1x1x32xf32> to vector<1x32xf32>
    %cst_158 = arith.constant dense<0.000000e+00> : vector<16xf32>
    %175 = vector.multi_reduction <add>, %170, %cst_158 [1] : vector<16x32xf32> to vector<16xf32>
    %176 = vector.shape_cast %175 : vector<16xf32> to vector<16x1xf32>
    %cst_159 = arith.constant 3.200000e+01 : f32
    %177 = vector.broadcast %cst_159 : f32 to vector<16x1xf32>
    %178 = arith.divf %176, %177 : vector<16x1xf32>
    %179 = vector.broadcast %178 : vector<16x1xf32> to vector<16x32xf32>
    %180 = arith.subf %170, %179 : vector<16x32xf32>
    %181 = arith.mulf %180, %180 : vector<16x32xf32>
    %cst_160 = arith.constant dense<0.000000e+00> : vector<16xf32>
    %182 = vector.multi_reduction <add>, %181, %cst_160 [1] : vector<16x32xf32> to vector<16xf32>
    %183 = vector.shape_cast %182 : vector<16xf32> to vector<16x1xf32>
    %cst_161 = arith.constant 3.200000e+01 : f32
    %184 = vector.broadcast %cst_161 : f32 to vector<16x1xf32>
    %185 = arith.divf %183, %184 : vector<16x1xf32>
    %cst_162 = arith.constant 9.99999974E-6 : f32
    %186 = vector.broadcast %cst_162 : f32 to vector<16x1xf32>
    %187 = arith.addf %185, %186 : vector<16x1xf32>
    %188 = math.rsqrt %187 : vector<16x1xf32>
    %189 = vector.broadcast %188 : vector<16x1xf32> to vector<16x32xf32>
    %190 = arith.mulf %180, %189 : vector<16x32xf32>
    %191 = vector.broadcast %172 : vector<1x32xf32> to vector<16x32xf32>
    %192 = arith.mulf %190, %191 : vector<16x32xf32>
    %193 = vector.broadcast %174 : vector<1x32xf32> to vector<16x32xf32>
    %194 = arith.addf %192, %193 : vector<16x32xf32>
    %c0_163 = arith.constant 0 : index
    %c0_164 = arith.constant 0 : index
    %c0_165 = arith.constant 0 : index
    %195 = vector.load %arg19[%c0_163, %c0_164, %c0_165] : memref<1x32x64xf32, #tpu.memory_space<vmem>>, vector<1x32x64xf32>
    %196 = vector.shape_cast %195 : vector<1x32x64xf32> to vector<32x64xf32>
    %cst_166 = arith.constant dense<0.000000e+00> : vector<16x64xf32>
    %197 = tpu.matmul %194, %196, %cst_166 {dimension_numbers = #tpu.dot_dimension_numbers<[1], [0], [0], [1], [0, 0, 1, 1], [], []>} : vector<16x32xf32>, vector<32x64xf32>, vector<16x64xf32> -> vector<16x64xf32>
    %c0_167 = arith.constant 0 : index
    %c0_168 = arith.constant 0 : index
    %c0_169 = arith.constant 0 : index
    %198 = vector.load %arg20[%c0_167, %c0_168, %c0_169] : memref<1x1x64xf32, #tpu.memory_space<vmem>>, vector<1x1x64xf32>
    %199 = vector.shape_cast %198 : vector<1x1x64xf32> to vector<1x64xf32>
    %200 = vector.broadcast %199 : vector<1x64xf32> to vector<16x64xf32>
    %201 = arith.addf %197, %200 : vector<16x64xf32>
    %cst_170 = arith.constant 0.000000e+00 : f32
    %202 = vector.broadcast %cst_170 : f32 to vector<16x64xf32>
    %203 = arith.maximumf %201, %202 : vector<16x64xf32>
    %c0_171 = arith.constant 0 : index
    %c0_172 = arith.constant 0 : index
    %c0_173 = arith.constant 0 : index
    %204 = vector.load %arg21[%c0_171, %c0_172, %c0_173] : memref<1x64x32xf32, #tpu.memory_space<vmem>>, vector<1x64x32xf32>
    %205 = vector.shape_cast %204 : vector<1x64x32xf32> to vector<64x32xf32>
    %cst_174 = arith.constant dense<0.000000e+00> : vector<16x32xf32>
    %206 = tpu.matmul %203, %205, %cst_174 {dimension_numbers = #tpu.dot_dimension_numbers<[1], [0], [0], [1], [0, 0, 1, 1], [], []>} : vector<16x64xf32>, vector<64x32xf32>, vector<16x32xf32> -> vector<16x32xf32>
    %c0_175 = arith.constant 0 : index
    %c0_176 = arith.constant 0 : index
    %c0_177 = arith.constant 0 : index
    %207 = vector.load %arg22[%c0_175, %c0_176, %c0_177] : memref<1x1x32xf32, #tpu.memory_space<vmem>>, vector<1x1x32xf32>
    %208 = vector.shape_cast %207 : vector<1x1x32xf32> to vector<1x32xf32>
    %209 = vector.broadcast %208 : vector<1x32xf32> to vector<16x32xf32>
    %210 = arith.addf %206, %209 : vector<16x32xf32>
    %211 = arith.addf %194, %210 : vector<16x32xf32>
    %c0_178 = arith.constant 0 : index
    %c0_179 = arith.constant 0 : index
    %c0_180 = arith.constant 0 : index
    %212 = vector.load %arg23[%c0_178, %c0_179, %c0_180] : memref<1x1x32xf32, #tpu.memory_space<vmem>>, vector<1x1x32xf32>
    %213 = vector.shape_cast %212 : vector<1x1x32xf32> to vector<1x32xf32>
    %c0_181 = arith.constant 0 : index
    %c0_182 = arith.constant 0 : index
    %c0_183 = arith.constant 0 : index
    %214 = vector.load %arg24[%c0_181, %c0_182, %c0_183] : memref<1x1x32xf32, #tpu.memory_space<vmem>>, vector<1x1x32xf32>
    %215 = vector.shape_cast %214 : vector<1x1x32xf32> to vector<1x32xf32>
    %cst_184 = arith.constant dense<0.000000e+00> : vector<16xf32>
    %216 = vector.multi_reduction <add>, %211, %cst_184 [1] : vector<16x32xf32> to vector<16xf32>
    %217 = vector.shape_cast %216 : vector<16xf32> to vector<16x1xf32>
    %cst_185 = arith.constant 3.200000e+01 : f32
    %218 = vector.broadcast %cst_185 : f32 to vector<16x1xf32>
    %219 = arith.divf %217, %218 : vector<16x1xf32>
    %220 = vector.broadcast %219 : vector<16x1xf32> to vector<16x32xf32>
    %221 = arith.subf %211, %220 : vector<16x32xf32>
    %222 = arith.mulf %221, %221 : vector<16x32xf32>
    %cst_186 = arith.constant dense<0.000000e+00> : vector<16xf32>
    %223 = vector.multi_reduction <add>, %222, %cst_186 [1] : vector<16x32xf32> to vector<16xf32>
    %224 = vector.shape_cast %223 : vector<16xf32> to vector<16x1xf32>
    %cst_187 = arith.constant 3.200000e+01 : f32
    %225 = vector.broadcast %cst_187 : f32 to vector<16x1xf32>
    %226 = arith.divf %224, %225 : vector<16x1xf32>
    %cst_188 = arith.constant 9.99999974E-6 : f32
    %227 = vector.broadcast %cst_188 : f32 to vector<16x1xf32>
    %228 = arith.addf %226, %227 : vector<16x1xf32>
    %229 = math.rsqrt %228 : vector<16x1xf32>
    %230 = vector.broadcast %229 : vector<16x1xf32> to vector<16x32xf32>
    %231 = arith.mulf %221, %230 : vector<16x32xf32>
    %232 = vector.broadcast %213 : vector<1x32xf32> to vector<16x32xf32>
    %233 = arith.mulf %231, %232 : vector<16x32xf32>
    %234 = vector.broadcast %215 : vector<1x32xf32> to vector<16x32xf32>
    %235 = arith.addf %233, %234 : vector<16x32xf32>
    %c0_189 = arith.constant 0 : index
    %c0_190 = arith.constant 0 : index
    %236 = vector.load %arg32[%c0_189, %c0_190] : memref<16x32xf32, #tpu.memory_space<vmem>>, vector<16x32xf32>
    tpu.vector_store %arg32[%c0_189, %c0_190], %235 {strides = array<i32>} : memref<16x32xf32, #tpu.memory_space<vmem>>, vector<16x32xf32>,
    %c1_i32 = arith.constant 1 : i32
    %237 = arith.cmpi eq, %arg0, %c1_i32 : i32
    %238 = arith.extui %237 : i1 to i32
    %c0_i32_191 = arith.constant 0 : i32
    %239 = arith.cmpi ne, %238, %c0_i32_191 : i32
    scf.if %239 {
      %c0_192 = arith.constant 0 : index
      %c0_193 = arith.constant 0 : index
      %240 = vector.load %arg25[%c0_192, %c0_193] : memref<1x32xf32, #tpu.memory_space<vmem>>, vector<1x32xf32>
      %c0_194 = arith.constant 0 : index
      %c0_195 = arith.constant 0 : index
      %241 = vector.load %arg26[%c0_194, %c0_195] : memref<1x32xf32, #tpu.memory_space<vmem>>, vector<1x32xf32>
      %cst_196 = arith.constant dense<0.000000e+00> : vector<16xf32>
      %242 = vector.multi_reduction <add>, %235, %cst_196 [1] : vector<16x32xf32> to vector<16xf32>
      %243 = vector.shape_cast %242 : vector<16xf32> to vector<16x1xf32>
      %cst_197 = arith.constant 3.200000e+01 : f32
      %244 = vector.broadcast %cst_197 : f32 to vector<16x1xf32>
      %245 = arith.divf %243, %244 : vector<16x1xf32>
      %246 = vector.broadcast %245 : vector<16x1xf32> to vector<16x32xf32>
      %247 = arith.subf %235, %246 : vector<16x32xf32>
      %248 = arith.mulf %247, %247 : vector<16x32xf32>
      %cst_198 = arith.constant dense<0.000000e+00> : vector<16xf32>
      %249 = vector.multi_reduction <add>, %248, %cst_198 [1] : vector<16x32xf32> to vector<16xf32>
      %250 = vector.shape_cast %249 : vector<16xf32> to vector<16x1xf32>
      %cst_199 = arith.constant 3.200000e+01 : f32
      %251 = vector.broadcast %cst_199 : f32 to vector<16x1xf32>
      %252 = arith.divf %250, %251 : vector<16x1xf32>
      %cst_200 = arith.constant 9.99999974E-6 : f32
      %253 = vector.broadcast %cst_200 : f32 to vector<16x1xf32>
      %254 = arith.addf %252, %253 : vector<16x1xf32>
      %255 = math.rsqrt %254 : vector<16x1xf32>
      %256 = vector.broadcast %255 : vector<16x1xf32> to vector<16x32xf32>
      %257 = arith.mulf %247, %256 : vector<16x32xf32>
      %258 = vector.broadcast %240 : vector<1x32xf32> to vector<16x32xf32>
      %259 = arith.mulf %257, %258 : vector<16x32xf32>
      %260 = vector.broadcast %241 : vector<1x32xf32> to vector<16x32xf32>
      %261 = arith.addf %259, %260 : vector<16x32xf32>
      %c0_201 = arith.constant 0 : index
      %c0_202 = arith.constant 0 : index
      %262 = vector.load %arg27[%c0_201, %c0_202] : memref<32x32xf32, #tpu.memory_space<vmem>>, vector<32x32xf32>
      %cst_203 = arith.constant dense<0.000000e+00> : vector<16x32xf32>
      %263 = tpu.matmul %261, %262, %cst_203 {dimension_numbers = #tpu.dot_dimension_numbers<[1], [0], [0], [1], [0, 0, 1, 1], [], []>} : vector<16x32xf32>, vector<32x32xf32>, vector<16x32xf32> -> vector<16x32xf32>
      %c0_204 = arith.constant 0 : index
      %c0_205 = arith.constant 0 : index
      %264 = vector.load %arg4[%c0_204, %c0_205] : memref<16x4xf32, #tpu.memory_space<vmem>>, vector<16x4xf32>
      %c0_206 = arith.constant 0 : index
      %c0_207 = arith.constant 0 : index
      %265 = vector.load %arg28[%c0_206, %c0_207] : memref<4x32xf32, #tpu.memory_space<vmem>>, vector<4x32xf32>
      %cst_208 = arith.constant dense<0.000000e+00> : vector<16x32xf32>
      %266 = tpu.matmul %264, %265, %cst_208 {dimension_numbers = #tpu.dot_dimension_numbers<[1], [0], [0], [1], [0, 0, 1, 1], [], []>} : vector<16x4xf32>, vector<4x32xf32>, vector<16x32xf32> -> vector<16x32xf32>
      %267 = arith.addf %263, %266 : vector<16x32xf32>
      %c0_209 = arith.constant 0 : index
      %c0_210 = arith.constant 0 : index
      %268 = vector.load %arg29[%c0_209, %c0_210] : memref<1x32xf32, #tpu.memory_space<vmem>>, vector<1x32xf32>
      %269 = vector.broadcast %268 : vector<1x32xf32> to vector<16x32xf32>
      %270 = arith.addf %267, %269 : vector<16x32xf32>
      %cst_211 = arith.constant 0.000000e+00 : f32
      %271 = vector.broadcast %cst_211 : f32 to vector<16x32xf32>
      %272 = arith.maximumf %270, %271 : vector<16x32xf32>
      %c0_212 = arith.constant 0 : index
      %c0_213 = arith.constant 0 : index
      %273 = vector.load %arg30[%c0_212, %c0_213] : memref<32x32xf32, #tpu.memory_space<vmem>>, vector<32x32xf32>
      %cst_214 = arith.constant dense<0.000000e+00> : vector<16x32xf32>
      %274 = tpu.matmul %272, %273, %cst_214 {dimension_numbers = #tpu.dot_dimension_numbers<[1], [0], [0], [1], [0, 0, 1, 1], [], []>} : vector<16x32xf32>, vector<32x32xf32>, vector<16x32xf32> -> vector<16x32xf32>
      %c0_215 = arith.constant 0 : index
      %c0_216 = arith.constant 0 : index
      %275 = vector.load %arg31[%c0_215, %c0_216] : memref<1x32xf32, #tpu.memory_space<vmem>>, vector<1x32xf32>
      %276 = vector.broadcast %275 : vector<1x32xf32> to vector<16x32xf32>
      %277 = arith.addf %274, %276 : vector<16x32xf32>
      %cst_217 = arith.constant 0.000000e+00 : f32
      %278 = vector.broadcast %cst_217 : f32 to vector<16x32xf32>
      %279 = arith.maximumf %277, %278 : vector<16x32xf32>
      %c0_218 = arith.constant 0 : index
      %c0_219 = arith.constant 0 : index
      %280 = vector.load %arg32[%c0_218, %c0_219] : memref<16x32xf32, #tpu.memory_space<vmem>>, vector<16x32xf32>
      tpu.vector_store %arg32[%c0_218, %c0_219], %279 {strides = array<i32>} : memref<16x32xf32, #tpu.memory_space<vmem>>, vector<16x32xf32>,
    } else {
    }
    return
  }
  func.func @transform_0(%arg0: i32) -> (i32, i32) {
    %c0_i32 = arith.constant 0 : i32
    %c0_i32_0 = arith.constant 0 : i32
    %c0_i32_1 = arith.constant 0 : i32
    return %c0_i32, %c0_i32_0 : i32, i32
  }
  func.func @transform_1(%arg0: i32) -> (i32, i32) {
    %c0_i32 = arith.constant 0 : i32
    %c0_i32_0 = arith.constant 0 : i32
    %c0_i32_1 = arith.constant 0 : i32
    return %c0_i32, %c0_i32_0 : i32, i32
  }
  func.func @transform_2(%arg0: i32) -> (i32, i32) {
    %c0_i32 = arith.constant 0 : i32
    %c0_i32_0 = arith.constant 0 : i32
    %c0_i32_1 = arith.constant 0 : i32
    return %c0_i32, %c0_i32_0 : i32, i32
  }
  func.func @transform_3(%arg0: i32) -> (i32, i32) {
    %c0_i32 = arith.constant 0 : i32
    %c0_i32_0 = arith.constant 0 : i32
    %c0_i32_1 = arith.constant 0 : i32
    return %c0_i32, %c0_i32_0 : i32, i32
  }
  func.func @transform_4(%arg0: i32) -> (i32, i32) {
    %c0_i32 = arith.constant 0 : i32
    %c0_i32_0 = arith.constant 0 : i32
    %c0_i32_1 = arith.constant 0 : i32
    return %c0_i32, %c0_i32_0 : i32, i32
  }
  func.func @transform_5(%arg0: i32) -> (i32, i32) {
    %c0_i32 = arith.constant 0 : i32
    %c0_i32_0 = arith.constant 0 : i32
    %c0_i32_1 = arith.constant 0 : i32
    return %c0_i32, %c0_i32_0 : i32, i32
  }
  func.func @transform_6(%arg0: i32) -> (i32, i32) {
    %c0_i32 = arith.constant 0 : i32
    %c0_i32_0 = arith.constant 0 : i32
    %c0_i32_1 = arith.constant 0 : i32
    return %c0_i32, %c0_i32_0 : i32, i32
  }
  func.func @transform_7(%arg0: i32) -> (i32, i32) {
    %c0_i32 = arith.constant 0 : i32
    %c0_i32_0 = arith.constant 0 : i32
    %c0_i32_1 = arith.constant 0 : i32
    return %c0_i32, %c0_i32_0 : i32, i32
  }
  func.func @transform_8(%arg0: i32) -> (i32, i32, i32, i32) {
    %c0_i32 = arith.constant 0 : i32
    %c0_i32_0 = arith.constant 0 : i32
    %c0_i32_1 = arith.constant 0 : i32
    %c0_i32_2 = arith.constant 0 : i32
    return %arg0, %c0_i32, %c0_i32_0, %c0_i32_1 : i32, i32, i32, i32
  }
  func.func @transform_9(%arg0: i32) -> (i32, i32, i32, i32) {
    %c0_i32 = arith.constant 0 : i32
    %c0_i32_0 = arith.constant 0 : i32
    %c0_i32_1 = arith.constant 0 : i32
    %c0_i32_2 = arith.constant 0 : i32
    return %arg0, %c0_i32, %c0_i32_0, %c0_i32_1 : i32, i32, i32, i32
  }
  func.func @transform_10(%arg0: i32) -> (i32, i32, i32, i32) {
    %c0_i32 = arith.constant 0 : i32
    %c0_i32_0 = arith.constant 0 : i32
    %c0_i32_1 = arith.constant 0 : i32
    %c0_i32_2 = arith.constant 0 : i32
    return %arg0, %c0_i32, %c0_i32_0, %c0_i32_1 : i32, i32, i32, i32
  }
  func.func @transform_11(%arg0: i32) -> (i32, i32, i32, i32) {
    %c0_i32 = arith.constant 0 : i32
    %c0_i32_0 = arith.constant 0 : i32
    %c0_i32_1 = arith.constant 0 : i32
    %c0_i32_2 = arith.constant 0 : i32
    return %arg0, %c0_i32, %c0_i32_0, %c0_i32_1 : i32, i32, i32, i32
  }
  func.func @transform_12(%arg0: i32) -> (i32, i32, i32, i32) {
    %c0_i32 = arith.constant 0 : i32
    %c0_i32_0 = arith.constant 0 : i32
    %c0_i32_1 = arith.constant 0 : i32
    %c0_i32_2 = arith.constant 0 : i32
    return %arg0, %c0_i32, %c0_i32_0, %c0_i32_1 : i32, i32, i32, i32
  }
  func.func @transform_13(%arg0: i32) -> (i32, i32, i32, i32) {
    %c0_i32 = arith.constant 0 : i32
    %c0_i32_0 = arith.constant 0 : i32
    %c0_i32_1 = arith.constant 0 : i32
    %c0_i32_2 = arith.constant 0 : i32
    return %arg0, %c0_i32, %c0_i32_0, %c0_i32_1 : i32, i32, i32, i32
  }
  func.func @transform_14(%arg0: i32) -> (i32, i32, i32, i32) {
    %c0_i32 = arith.constant 0 : i32
    %c0_i32_0 = arith.constant 0 : i32
    %c0_i32_1 = arith.constant 0 : i32
    %c0_i32_2 = arith.constant 0 : i32
    return %arg0, %c0_i32, %c0_i32_0, %c0_i32_1 : i32, i32, i32, i32
  }
  func.func @transform_15(%arg0: i32) -> (i32, i32, i32) {
    %c0_i32 = arith.constant 0 : i32
    %c0_i32_0 = arith.constant 0 : i32
    %c0_i32_1 = arith.constant 0 : i32
    return %arg0, %c0_i32, %c0_i32_0 : i32, i32, i32
  }
  func.func @transform_16(%arg0: i32) -> (i32, i32, i32) {
    %c0_i32 = arith.constant 0 : i32
    %c0_i32_0 = arith.constant 0 : i32
    %c0_i32_1 = arith.constant 0 : i32
    return %arg0, %c0_i32, %c0_i32_0 : i32, i32, i32
  }
  func.func @transform_17(%arg0: i32) -> (i32, i32, i32) {
    %c0_i32 = arith.constant 0 : i32
    %c0_i32_0 = arith.constant 0 : i32
    %c0_i32_1 = arith.constant 0 : i32
    return %arg0, %c0_i32, %c0_i32_0 : i32, i32, i32
  }
  func.func @transform_18(%arg0: i32) -> (i32, i32, i32) {
    %c0_i32 = arith.constant 0 : i32
    %c0_i32_0 = arith.constant 0 : i32
    %c0_i32_1 = arith.constant 0 : i32
    return %arg0, %c0_i32, %c0_i32_0 : i32, i32, i32
  }
  func.func @transform_19(%arg0: i32) -> (i32, i32, i32) {
    %c0_i32 = arith.constant 0 : i32
    %c0_i32_0 = arith.constant 0 : i32
    %c0_i32_1 = arith.constant 0 : i32
    return %arg0, %c0_i32, %c0_i32_0 : i32, i32, i32
  }
  func.func @transform_20(%arg0: i32) -> (i32, i32, i32) {
    %c0_i32 = arith.constant 0 : i32
    %c0_i32_0 = arith.constant 0 : i32
    %c0_i32_1 = arith.constant 0 : i32
    return %arg0, %c0_i32, %c0_i32_0 : i32, i32, i32
  }
  func.func @transform_21(%arg0: i32) -> (i32, i32, i32) {
    %c0_i32 = arith.constant 0 : i32
    %c0_i32_0 = arith.constant 0 : i32
    %c0_i32_1 = arith.constant 0 : i32
    return %arg0, %c0_i32, %c0_i32_0 : i32, i32, i32
  }
  func.func @transform_22(%arg0: i32) -> (i32, i32, i32) {
    %c0_i32 = arith.constant 0 : i32
    %c0_i32_0 = arith.constant 0 : i32
    %c0_i32_1 = arith.constant 0 : i32
    return %arg0, %c0_i32, %c0_i32_0 : i32, i32, i32
  }
  func.func @transform_23(%arg0: i32) -> (i32, i32, i32) {
    %c0_i32 = arith.constant 0 : i32
    %c0_i32_0 = arith.constant 0 : i32
    %c0_i32_1 = arith.constant 0 : i32
    return %arg0, %c0_i32, %c0_i32_0 : i32, i32, i32
  }
  func.func @transform_24(%arg0: i32) -> (i32, i32) {
    %c0_i32 = arith.constant 0 : i32
    %c0_i32_0 = arith.constant 0 : i32
    %c0_i32_1 = arith.constant 0 : i32
    return %c0_i32, %c0_i32_0 : i32, i32
  }
  func.func @transform_25(%arg0: i32) -> (i32, i32) {
    %c0_i32 = arith.constant 0 : i32
    %c0_i32_0 = arith.constant 0 : i32
    %c0_i32_1 = arith.constant 0 : i32
    return %c0_i32, %c0_i32_0 : i32, i32
  }
  func.func @transform_26(%arg0: i32) -> (i32, i32) {
    %c0_i32 = arith.constant 0 : i32
    %c0_i32_0 = arith.constant 0 : i32
    %c0_i32_1 = arith.constant 0 : i32
    return %c0_i32, %c0_i32_0 : i32, i32
  }
  func.func @transform_27(%arg0: i32) -> (i32, i32) {
    %c0_i32 = arith.constant 0 : i32
    %c0_i32_0 = arith.constant 0 : i32
    %c0_i32_1 = arith.constant 0 : i32
    return %c0_i32, %c0_i32_0 : i32, i32
  }
  func.func @transform_28(%arg0: i32) -> (i32, i32) {
    %c0_i32 = arith.constant 0 : i32
    %c0_i32_0 = arith.constant 0 : i32
    %c0_i32_1 = arith.constant 0 : i32
    return %c0_i32, %c0_i32_0 : i32, i32
  }
  func.func @transform_29(%arg0: i32) -> (i32, i32) {
    %c0_i32 = arith.constant 0 : i32
    %c0_i32_0 = arith.constant 0 : i32
    %c0_i32_1 = arith.constant 0 : i32
    return %c0_i32, %c0_i32_0 : i32, i32
  }
  func.func @transform_30(%arg0: i32) -> (i32, i32) {
    %c0_i32 = arith.constant 0 : i32
    %c0_i32_0 = arith.constant 0 : i32
    %c0_i32_1 = arith.constant 0 : i32
    return %c0_i32, %c0_i32_0 : i32, i32
  }
  func.func @transform_31(%arg0: i32) -> (i32, i32) {
    %c0_i32 = arith.constant 0 : i32
    %c0_i32_0 = arith.constant 0 : i32
    %c0_i32_1 = arith.constant 0 : i32
    return %c0_i32, %c0_i32_0 : i32, i32
  }
}

</mosaic_0001>

<llo_original>
// kernel: run.1
$region0: #{run.1}
  #allocation0 [shape = 'u32[]', space=smem, size = 0x4, offset = 0x4, fixed_abs, tag = 'smem constant byte address 0x4 - core index']
  #allocation1 [shape = 'u32[144,128]{1,0:T(1,128)}', space=vmem, size = 0x12000, scoped, tag = 'internal scratch']
  %s0 = inlined_call_operand.smem [shape: u32[32], index: -1, kind: input, shape index: {}]
  %s1 = sld [smem:[%s0]]
  %s2 = scalar_lea.smem %s0, 1
  %s3 = sld [smem:[%s2]]
  %s4 = scalar_lea.smem %s0, 2
  %s5 = sld [smem:[%s4]]
  %s6 = scalar_lea.smem %s0, 3
  %s7 = sld [smem:[%s6]]
  %s8 = scalar_lea.smem %s0, 4
  %s9 = sld [smem:[%s8]]
  %s10 = scalar_lea.smem %s0, 5
  %s11 = sld [smem:[%s10]]
  %s12 = scalar_lea.smem %s0, 6
  %s13 = sld [smem:[%s12]]
  %s14 = scalar_lea.smem %s0, 7
  %s15 = sld [smem:[%s14]]
  %s16 = scalar_lea.smem %s0, 8
  %s17 = sld [smem:[%s16]]
  %s18 = scalar_lea.smem %s0, 9
  %s19 = sld [smem:[%s18]]
  %s20 = scalar_lea.smem %s0, 10
  %s21 = sld [smem:[%s20]]
  %s22 = scalar_lea.smem %s0, 11
  %s23 = sld [smem:[%s22]]
  %s24 = scalar_lea.smem %s0, 12
  %s25 = sld [smem:[%s24]]
  %s26 = scalar_lea.smem %s0, 13
  %s27 = sld [smem:[%s26]]
  %s28 = scalar_lea.smem %s0, 14
  %s29 = sld [smem:[%s28]]
  %s30 = scalar_lea.smem %s0, 15
  %s31 = sld [smem:[%s30]]
  %s32 = scalar_lea.smem %s0, 16
  %s33 = sld [smem:[%s32]]
  %s34 = scalar_lea.smem %s0, 17
  %s35 = sld [smem:[%s34]]
  %s36 = scalar_lea.smem %s0, 18
  %s37 = sld [smem:[%s36]]
  %s38 = scalar_lea.smem %s0, 19
  %s39 = sld [smem:[%s38]]
  %s40 = scalar_lea.smem %s0, 20
  %s41 = sld [smem:[%s40]]
  %s42 = scalar_lea.smem %s0, 21
  %s43 = sld [smem:[%s42]]
  %s44 = scalar_lea.smem %s0, 22
  %s45 = sld [smem:[%s44]]
  %s46 = scalar_lea.smem %s0, 23
  %s47 = sld [smem:[%s46]]
  %s48 = scalar_lea.smem %s0, 24
  %s49 = sld [smem:[%s48]]
  %s50 = scalar_lea.smem %s0, 25
  %s51 = sld [smem:[%s50]]
  %s52 = scalar_lea.smem %s0, 26
  %s53 = sld [smem:[%s52]]
  %s54 = scalar_lea.smem %s0, 27
  %s55 = sld [smem:[%s54]]
  %s56 = scalar_lea.smem %s0, 28
  %s57 = sld [smem:[%s56]]
  %s58 = scalar_lea.smem %s0, 29
  %s59 = sld [smem:[%s58]]
  %s60 = scalar_lea.smem %s0, 30
  %s61 = sld [smem:[%s60]]
  %s62 = scalar_lea.smem %s0, 31
  %s63 = sld [smem:[%s62]]
  %s64 = sld [smem:[#allocation0]]
  $region165: #{run.1} parent=0
    _
  %s66 = ssub.s32 1, %s64
  %s67 = scalar_select 0, %s66, %s64
  $region1: #{run.1} parent=0
    #allocation2 [shape = 'u8[8192]{0}', space=vmem, size = 0x2000, scoped, tag = 'output window, operand 0, single buffered']
    #allocation3 [shape = 's32[2]{0}', space=sflag, size = 0x8, scoped, tag = 'scoped memory for run.1']
    %68 = vsyncpa [#allocation3], 0
    loop: start=0, step=1, limit=4
    $region2: #{run.1} parent=1 // loop_pre_header
      _
    $region3: #{run.1} parent=1 // loop_header
      %s70 = sphi 0, %s74
      %p71 = scmp.ge.s32.totalorder %s70, 4
      %s78 = sphi 0, %s78
      %s80 = sphi 0, %s78
      %s81 = sphi 0, %s80
      %s95 = sphi 0, %s81
      %s99 = sphi 0, %s99
      %s101 = sphi 0, %s99
      %s102 = sphi 0, %s101
      %s116 = sphi 0, %s102
      %s120 = sphi 0, %s120
      %s122 = sphi 0, %s120
      %s123 = sphi 0, %s122
      %s137 = sphi 0, %s123
      %s141 = sphi 0, %s141
      %s143 = sphi 0, %s141
      %s144 = sphi 0, %s143
      %s158 = sphi 0, %s144
      %s162 = sphi 0, %s162
      %s164 = sphi 0, %s162
      %s165 = sphi 0, %s164
      %s179 = sphi 0, %s165
      %s183 = sphi 0, %s183
      %s185 = sphi 0, %s183
      %s186 = sphi 0, %s185
      %s200 = sphi 0, %s186
      %s204 = sphi 0, %s204
      %s206 = sphi 0, %s204
      %s207 = sphi 0, %s206
      %s221 = sphi 0, %s207
      %s225 = sphi 0, %s225
      %s227 = sphi 0, %s225
      %s228 = sphi 0, %s227
      %s242 = sphi 0, %s228
      %s248 = sphi 0, %s250
      %s251 = sphi 0, %s248
      %s252 = sphi 0, %s251
      %s268 = sphi 0, %s252
      %s274 = sphi 0, %s276
      %s277 = sphi 0, %s274
      %s278 = sphi 0, %s277
      %s294 = sphi 0, %s278
      %s300 = sphi 0, %s302
      %s303 = sphi 0, %s300
      %s304 = sphi 0, %s303
      %s320 = sphi 0, %s304
      %s326 = sphi 0, %s328
      %s329 = sphi 0, %s326
      %s330 = sphi 0, %s329
      %s346 = sphi 0, %s330
      %s352 = sphi 0, %s354
      %s355 = sphi 0, %s352
      %s356 = sphi 0, %s355
      %s372 = sphi 0, %s356
      %s378 = sphi 0, %s380
      %s381 = sphi 0, %s378
      %s382 = sphi 0, %s381
      %s398 = sphi 0, %s382
      %s404 = sphi 0, %s406
      %s407 = sphi 0, %s404
      %s408 = sphi 0, %s407
      %s424 = sphi 0, %s408
      %s430 = sphi 0, %s432
      %s433 = sphi 0, %s430
      %s434 = sphi 0, %s433
      %s450 = sphi 0, %s434
      %s456 = sphi 0, %s458
      %s459 = sphi 0, %s456
      %s460 = sphi 0, %s459
      %s476 = sphi 0, %s460
      %s482 = sphi 0, %s484
      %s485 = sphi 0, %s482
      %s486 = sphi 0, %s485
      %s502 = sphi 0, %s486
      %s508 = sphi 0, %s510
      %s511 = sphi 0, %s508
      %s512 = sphi 0, %s511
      %s528 = sphi 0, %s512
      %s534 = sphi 0, %s536
      %s537 = sphi 0, %s534
      %s538 = sphi 0, %s537
      %s554 = sphi 0, %s538
      %s560 = sphi 0, %s562
      %s563 = sphi 0, %s560
      %s564 = sphi 0, %s563
      %s580 = sphi 0, %s564
      %s586 = sphi 0, %s588
      %s589 = sphi 0, %s586
      %s590 = sphi 0, %s589
      %s606 = sphi 0, %s590
      %s612 = sphi 0, %s614
      %s615 = sphi 0, %s612
      %s616 = sphi 0, %s615
      %s632 = sphi 0, %s616
      %s638 = sphi 0, %s640
      %s641 = sphi 0, %s638
      %s642 = sphi 0, %s641
      %s658 = sphi 0, %s642
      %s662 = sphi 0, %s662
      %s664 = sphi 0, %s662
      %s665 = sphi 0, %s664
      %s679 = sphi 0, %s665
      %s683 = sphi 0, %s683
      %s685 = sphi 0, %s683
      %s686 = sphi 0, %s685
      %s700 = sphi 0, %s686
      %s704 = sphi 0, %s704
      %s706 = sphi 0, %s704
      %s707 = sphi 0, %s706
      %s721 = sphi 0, %s707
      %s725 = sphi 0, %s725
      %s727 = sphi 0, %s725
      %s728 = sphi 0, %s727
      %s742 = sphi 0, %s728
      %s746 = sphi 0, %s746
      %s748 = sphi 0, %s746
      %s749 = sphi 0, %s748
      %s763 = sphi 0, %s749
      %s767 = sphi 0, %s767
      %s769 = sphi 0, %s767
      %s770 = sphi 0, %s769
      %s784 = sphi 0, %s770
      %s788 = sphi 0, %s788
      %s790 = sphi 0, %s788
      %s791 = sphi 0, %s790
      %s805 = sphi 0, %s791
      %s809 = sphi 0, %s809
      %s811 = sphi 0, %s809
      %s812 = sphi 0, %s811
      %s826 = sphi 0, %s812
    $region4: #{run.1} parent=1 // loop_header_branch
      %73 = sbr.rel (%p71) target = $region8
    $region5: #{run.1} parent=1 // loop_body
      %s75 = ssub.s32 %s70, 1
      %s76 = ssub.s32 %s70, 2
      %s77 = sadd.s32 %s70, 1
      %s79 = sadd.s32 %s78, 1
      %p82 = scmp.eq.s32.totalorder %s70, 1
      %p83 = scmp.ne.s32.totalorder %s78, %s80
      %p84 = scmp.eq.s32.totalorder %s70, 0
      %p85 = por %p83, %p84
      %p86 = scmp.ne.s32.totalorder %s78, %s80
      %p87 = scmp.eq.s32.totalorder %s75, 1
      %p88 = por %p86, %p87
      %p89 = scmp.ne.s32.totalorder %s80, %s81
      %p90 = scmp.eq.s32.totalorder %s75, 0
      %p91 = por %p89, %p90
      %p92 = scmp.ne.s32.totalorder %s80, %s81
      %p93 = scmp.eq.s32.totalorder %s76, 1
      %p94 = por %p92, %p93
      %p96 = scmp.ne.s32.totalorder %s81, %s95
      %p97 = scmp.eq.s32.totalorder %s76, 0
      %p98 = por %p96, %p97
      %s100 = sadd.s32 %s99, 1
      %p103 = scmp.eq.s32.totalorder %s70, 1
      %p104 = scmp.ne.s32.totalorder %s99, %s101
      %p105 = scmp.eq.s32.totalorder %s70, 0
      %p106 = por %p104, %p105
      %p107 = scmp.ne.s32.totalorder %s99, %s101
      %p108 = scmp.eq.s32.totalorder %s75, 1
      %p109 = por %p107, %p108
      %p110 = scmp.ne.s32.totalorder %s101, %s102
      %p111 = scmp.eq.s32.totalorder %s75, 0
      %p112 = por %p110, %p111
      %p113 = scmp.ne.s32.totalorder %s101, %s102
      %p114 = scmp.eq.s32.totalorder %s76, 1
      %p115 = por %p113, %p114
      %p117 = scmp.ne.s32.totalorder %s102, %s116
      %p118 = scmp.eq.s32.totalorder %s76, 0
      %p119 = por %p117, %p118
      %s121 = sadd.s32 %s120, 1
      %p124 = scmp.eq.s32.totalorder %s70, 1
      %p125 = scmp.ne.s32.totalorder %s120, %s122
      %p126 = scmp.eq.s32.totalorder %s70, 0
      %p127 = por %p125, %p126
      %p128 = scmp.ne.s32.totalorder %s120, %s122
      %p129 = scmp.eq.s32.totalorder %s75, 1
      %p130 = por %p128, %p129
      %p131 = scmp.ne.s32.totalorder %s122, %s123
      %p132 = scmp.eq.s32.totalorder %s75, 0
      %p133 = por %p131, %p132
      %p134 = scmp.ne.s32.totalorder %s122, %s123
      %p135 = scmp.eq.s32.totalorder %s76, 1
      %p136 = por %p134, %p135
      %p138 = scmp.ne.s32.totalorder %s123, %s137
      %p139 = scmp.eq.s32.totalorder %s76, 0
      %p140 = por %p138, %p139
      %s142 = sadd.s32 %s141, 1
      %p145 = scmp.eq.s32.totalorder %s70, 1
      %p146 = scmp.ne.s32.totalorder %s141, %s143
      %p147 = scmp.eq.s32.totalorder %s70, 0
      %p148 = por %p146, %p147
      %p149 = scmp.ne.s32.totalorder %s141, %s143
      %p150 = scmp.eq.s32.totalorder %s75, 1
      %p151 = por %p149, %p150
      %p152 = scmp.ne.s32.totalorder %s143, %s144
      %p153 = scmp.eq.s32.totalorder %s75, 0
      %p154 = por %p152, %p153
      %p155 = scmp.ne.s32.totalorder %s143, %s144
      %p156 = scmp.eq.s32.totalorder %s76, 1
      %p157 = por %p155, %p156
      %p159 = scmp.ne.s32.totalorder %s144, %s158
      %p160 = scmp.eq.s32.totalorder %s76, 0
      %p161 = por %p159, %p160
      %s163 = sadd.s32 %s162, 1
      %p166 = scmp.eq.s32.totalorder %s70, 1
      %p167 = scmp.ne.s32.totalorder %s162, %s164
      %p168 = scmp.eq.s32.totalorder %s70, 0
      %p169 = por %p167, %p168
      %p170 = scmp.ne.s32.totalorder %s162, %s164
      %p171 = scmp.eq.s32.totalorder %s75, 1
      %p172 = por %p170, %p171
      %p173 = scmp.ne.s32.totalorder %s164, %s165
      %p174 = scmp.eq.s32.totalorder %s75, 0
      %p175 = por %p173, %p174
      %p176 = scmp.ne.s32.totalorder %s164, %s165
      %p177 = scmp.eq.s32.totalorder %s76, 1
      %p178 = por %p176, %p177
      %p180 = scmp.ne.s32.totalorder %s165, %s179
      %p181 = scmp.eq.s32.totalorder %s76, 0
      %p182 = por %p180, %p181
      %s184 = sadd.s32 %s183, 1
      %p187 = scmp.eq.s32.totalorder %s70, 1
      %p188 = scmp.ne.s32.totalorder %s183, %s185
      %p189 = scmp.eq.s32.totalorder %s70, 0
      %p190 = por %p188, %p189
      %p191 = scmp.ne.s32.totalorder %s183, %s185
      %p192 = scmp.eq.s32.totalorder %s75, 1
      %p193 = por %p191, %p192
      %p194 = scmp.ne.s32.totalorder %s185, %s186
      %p195 = scmp.eq.s32.totalorder %s75, 0
      %p196 = por %p194, %p195
      %p197 = scmp.ne.s32.totalorder %s185, %s186
      %p198 = scmp.eq.s32.totalorder %s76, 1
      %p199 = por %p197, %p198
      %p201 = scmp.ne.s32.totalorder %s186, %s200
      %p202 = scmp.eq.s32.totalorder %s76, 0
      %p203 = por %p201, %p202
      %s205 = sadd.s32 %s204, 1
      %p208 = scmp.eq.s32.totalorder %s70, 1
      %p209 = scmp.ne.s32.totalorder %s204, %s206
      %p210 = scmp.eq.s32.totalorder %s70, 0
      %p211 = por %p209, %p210
      %p212 = scmp.ne.s32.totalorder %s204, %s206
      %p213 = scmp.eq.s32.totalorder %s75, 1
      %p214 = por %p212, %p213
      %p215 = scmp.ne.s32.totalorder %s206, %s207
      %p216 = scmp.eq.s32.totalorder %s75, 0
      %p217 = por %p215, %p216
      %p218 = scmp.ne.s32.totalorder %s206, %s207
      %p219 = scmp.eq.s32.totalorder %s76, 1
      %p220 = por %p218, %p219
      %p222 = scmp.ne.s32.totalorder %s207, %s221
      %p223 = scmp.eq.s32.totalorder %s76, 0
      %p224 = por %p222, %p223
      %s226 = sadd.s32 %s225, 1
      %p229 = scmp.eq.s32.totalorder %s70, 1
      %p230 = scmp.ne.s32.totalorder %s225, %s227
      %p231 = scmp.eq.s32.totalorder %s70, 0
      %p232 = por %p230, %p231
      %p233 = scmp.ne.s32.totalorder %s225, %s227
      %p234 = scmp.eq.s32.totalorder %s75, 1
      %p235 = por %p233, %p234
      %p236 = scmp.ne.s32.totalorder %s227, %s228
      %p237 = scmp.eq.s32.totalorder %s75, 0
      %p238 = por %p236, %p237
      %p239 = scmp.ne.s32.totalorder %s227, %s228
      %p240 = scmp.eq.s32.totalorder %s76, 1
      %p241 = por %p239, %p240
      %p243 = scmp.ne.s32.totalorder %s228, %s242
      %p244 = scmp.eq.s32.totalorder %s76, 0
      %p245 = por %p243, %p244
      %s246 = ssub.s32 %s70, %s77
      %p247 = scmp.eq.s32.totalorder %s246, 0
      %s249 = sadd.s32 %s248, 1
      %s250 = scalar_select %p247, %s248, %s249
      %p253 = pneg %p247
      %p254 = scmp.eq.s32.totalorder %s70, 1
      %p255 = por %p253, %p254
      %p256 = scmp.ne.s32.totalorder %s248, %s251
      %p257 = scmp.eq.s32.totalorder %s70, 0
      %p258 = por %p256, %p257
      %p259 = scmp.ne.s32.totalorder %s248, %s251
      %p260 = scmp.eq.s32.totalorder %s75, 1
      %p261 = por %p259, %p260
      %p262 = scmp.ne.s32.totalorder %s251, %s252
      %p263 = scmp.eq.s32.totalorder %s75, 0
      %p264 = por %p262, %p263
      %p265 = scmp.ne.s32.totalorder %s251, %s252
      %p266 = scmp.eq.s32.totalorder %s76, 1
      %p267 = por %p265, %p266
      %p269 = scmp.ne.s32.totalorder %s252, %s268
      %p270 = scmp.eq.s32.totalorder %s76, 0
      %p271 = por %p269, %p270
      %s272 = ssub.s32 %s70, %s77
      %p273 = scmp.eq.s32.totalorder %s272, 0
      %s275 = sadd.s32 %s274, 1
      %s276 = scalar_select %p273, %s274, %s275
      %p279 = pneg %p273
      %p280 = scmp.eq.s32.totalorder %s70, 1
      %p281 = por %p279, %p280
      %p282 = scmp.ne.s32.totalorder %s274, %s277
      %p283 = scmp.eq.s32.totalorder %s70, 0
      %p284 = por %p282, %p283
      %p285 = scmp.ne.s32.totalorder %s274, %s277
      %p286 = scmp.eq.s32.totalorder %s75, 1
      %p287 = por %p285, %p286
      %p288 = scmp.ne.s32.totalorder %s277, %s278
      %p289 = scmp.eq.s32.totalorder %s75, 0
      %p290 = por %p288, %p289
      %p291 = scmp.ne.s32.totalorder %s277, %s278
      %p292 = scmp.eq.s32.totalorder %s76, 1
      %p293 = por %p291, %p292
      %p295 = scmp.ne.s32.totalorder %s278, %s294
      %p296 = scmp.eq.s32.totalorder %s76, 0
      %p297 = por %p295, %p296
      %s298 = ssub.s32 %s70, %s77
      %p299 = scmp.eq.s32.totalorder %s298, 0
      %s301 = sadd.s32 %s300, 1
      %s302 = scalar_select %p299, %s300, %s301
      %p305 = pneg %p299
      %p306 = scmp.eq.s32.totalorder %s70, 1
      %p307 = por %p305, %p306
      %p308 = scmp.ne.s32.totalorder %s300, %s303
      %p309 = scmp.eq.s32.totalorder %s70, 0
      %p310 = por %p308, %p309
      %p311 = scmp.ne.s32.totalorder %s300, %s303
      %p312 = scmp.eq.s32.totalorder %s75, 1
      %p313 = por %p311, %p312
      %p314 = scmp.ne.s32.totalorder %s303, %s304
      %p315 = scmp.eq.s32.totalorder %s75, 0
      %p316 = por %p314, %p315
      %p317 = scmp.ne.s32.totalorder %s303, %s304
      %p318 = scmp.eq.s32.totalorder %s76, 1
      %p319 = por %p317, %p318
      %p321 = scmp.ne.s32.totalorder %s304, %s320
      %p322 = scmp.eq.s32.totalorder %s76, 0
      %p323 = por %p321, %p322
      %s324 = ssub.s32 %s70, %s77
      %p325 = scmp.eq.s32.totalorder %s324, 0
      %s327 = sadd.s32 %s326, 1
      %s328 = scalar_select %p325, %s326, %s327
      %p331 = pneg %p325
      %p332 = scmp.eq.s32.totalorder %s70, 1
      %p333 = por %p331, %p332
      %p334 = scmp.ne.s32.totalorder %s326, %s329
      %p335 = scmp.eq.s32.totalorder %s70, 0
      %p336 = por %p334, %p335
      %p337 = scmp.ne.s32.totalorder %s326, %s329
      %p338 = scmp.eq.s32.totalorder %s75, 1
      %p339 = por %p337, %p338
      %p340 = scmp.ne.s32.totalorder %s329, %s330
      %p341 = scmp.eq.s32.totalorder %s75, 0
      %p342 = por %p340, %p341
      %p343 = scmp.ne.s32.totalorder %s329, %s330
      %p344 = scmp.eq.s32.totalorder %s76, 1
      %p345 = por %p343, %p344
      %p347 = scmp.ne.s32.totalorder %s330, %s346
      %p348 = scmp.eq.s32.totalorder %s76, 0
      %p349 = por %p347, %p348
      %s350 = ssub.s32 %s70, %s77
      %p351 = scmp.eq.s32.totalorder %s350, 0
      %s353 = sadd.s32 %s352, 1
      %s354 = scalar_select %p351, %s352, %s353
      %p357 = pneg %p351
      %p358 = scmp.eq.s32.totalorder %s70, 1
      %p359 = por %p357, %p358
      %p360 = scmp.ne.s32.totalorder %s352, %s355
      %p361 = scmp.eq.s32.totalorder %s70, 0
      %p362 = por %p360, %p361
      %p363 = scmp.ne.s32.totalorder %s352, %s355
      %p364 = scmp.eq.s32.totalorder %s75, 1
      %p365 = por %p363, %p364
      %p366 = scmp.ne.s32.totalorder %s355, %s356
      %p367 = scmp.eq.s32.totalorder %s75, 0
      %p368 = por %p366, %p367
      %p369 = scmp.ne.s32.totalorder %s355, %s356
      %p370 = scmp.eq.s32.totalorder %s76, 1
      %p371 = por %p369, %p370
      %p373 = scmp.ne.s32.totalorder %s356, %s372
      %p374 = scmp.eq.s32.totalorder %s76, 0
      %p375 = por %p373, %p374
      %s376 = ssub.s32 %s70, %s77
      %p377 = scmp.eq.s32.totalorder %s376, 0
      %s379 = sadd.s32 %s378, 1
      %s380 = scalar_select %p377, %s378, %s379
      %p383 = pneg %p377
      %p384 = scmp.eq.s32.totalorder %s70, 1
      %p385 = por %p383, %p384
      %p386 = scmp.ne.s32.totalorder %s378, %s381
      %p387 = scmp.eq.s32.totalorder %s70, 0
      %p388 = por %p386, %p387
      %p389 = scmp.ne.s32.totalorder %s378, %s381
      %p390 = scmp.eq.s32.totalorder %s75, 1
      %p391 = por %p389, %p390
      %p392 = scmp.ne.s32.totalorder %s381, %s382
      %p393 = scmp.eq.s32.totalorder %s75, 0
      %p394 = por %p392, %p393
      %p395 = scmp.ne.s32.totalorder %s381, %s382
      %p396 = scmp.eq.s32.totalorder %s76, 1
      %p397 = por %p395, %p396
      %p399 = scmp.ne.s32.totalorder %s382, %s398
      %p400 = scmp.eq.s32.totalorder %s76, 0
      %p401 = por %p399, %p400
      %s402 = ssub.s32 %s70, %s77
      %p403 = scmp.eq.s32.totalorder %s402, 0
      %s405 = sadd.s32 %s404, 1
      %s406 = scalar_select %p403, %s404, %s405
      %p409 = pneg %p403
      %p410 = scmp.eq.s32.totalorder %s70, 1
      %p411 = por %p409, %p410
      %p412 = scmp.ne.s32.totalorder %s404, %s407
      %p413 = scmp.eq.s32.totalorder %s70, 0
      %p414 = por %p412, %p413
      %p415 = scmp.ne.s32.totalorder %s404, %s407
      %p416 = scmp.eq.s32.totalorder %s75, 1
      %p417 = por %p415, %p416
      %p418 = scmp.ne.s32.totalorder %s407, %s408
      %p419 = scmp.eq.s32.totalorder %s75, 0
      %p420 = por %p418, %p419
      %p421 = scmp.ne.s32.totalorder %s407, %s408
      %p422 = scmp.eq.s32.totalorder %s76, 1
      %p423 = por %p421, %p422
      %p425 = scmp.ne.s32.totalorder %s408, %s424
      %p426 = scmp.eq.s32.totalorder %s76, 0
      %p427 = por %p425, %p426
      %s428 = ssub.s32 %s70, %s77
      %p429 = scmp.eq.s32.totalorder %s428, 0
      %s431 = sadd.s32 %s430, 1
      %s432 = scalar_select %p429, %s430, %s431
      %p435 = pneg %p429
      %p436 = scmp.eq.s32.totalorder %s70, 1
      %p437 = por %p435, %p436
      %p438 = scmp.ne.s32.totalorder %s430, %s433
      %p439 = scmp.eq.s32.totalorder %s70, 0
      %p440 = por %p438, %p439
      %p441 = scmp.ne.s32.totalorder %s430, %s433
      %p442 = scmp.eq.s32.totalorder %s75, 1
      %p443 = por %p441, %p442
      %p444 = scmp.ne.s32.totalorder %s433, %s434
      %p445 = scmp.eq.s32.totalorder %s75, 0
      %p446 = por %p444, %p445
      %p447 = scmp.ne.s32.totalorder %s433, %s434
      %p448 = scmp.eq.s32.totalorder %s76, 1
      %p449 = por %p447, %p448
      %p451 = scmp.ne.s32.totalorder %s434, %s450
      %p452 = scmp.eq.s32.totalorder %s76, 0
      %p453 = por %p451, %p452
      %s454 = ssub.s32 %s70, %s77
      %p455 = scmp.eq.s32.totalorder %s454, 0
      %s457 = sadd.s32 %s456, 1
      %s458 = scalar_select %p455, %s456, %s457
      %p461 = pneg %p455
      %p462 = scmp.eq.s32.totalorder %s70, 1
      %p463 = por %p461, %p462
      %p464 = scmp.ne.s32.totalorder %s456, %s459
      %p465 = scmp.eq.s32.totalorder %s70, 0
      %p466 = por %p464, %p465
      %p467 = scmp.ne.s32.totalorder %s456, %s459
      %p468 = scmp.eq.s32.totalorder %s75, 1
      %p469 = por %p467, %p468
      %p470 = scmp.ne.s32.totalorder %s459, %s460
      %p471 = scmp.eq.s32.totalorder %s75, 0
      %p472 = por %p470, %p471
      %p473 = scmp.ne.s32.totalorder %s459, %s460
      %p474 = scmp.eq.s32.totalorder %s76, 1
      %p475 = por %p473, %p474
      %p477 = scmp.ne.s32.totalorder %s460, %s476
      %p478 = scmp.eq.s32.totalorder %s76, 0
      %p479 = por %p477, %p478
      %s480 = ssub.s32 %s70, %s77
      %p481 = scmp.eq.s32.totalorder %s480, 0
      %s483 = sadd.s32 %s482, 1
      %s484 = scalar_select %p481, %s482, %s483
      %p487 = pneg %p481
      %p488 = scmp.eq.s32.totalorder %s70, 1
      %p489 = por %p487, %p488
      %p490 = scmp.ne.s32.totalorder %s482, %s485
      %p491 = scmp.eq.s32.totalorder %s70, 0
      %p492 = por %p490, %p491
      %p493 = scmp.ne.s32.totalorder %s482, %s485
      %p494 = scmp.eq.s32.totalorder %s75, 1
      %p495 = por %p493, %p494
      %p496 = scmp.ne.s32.totalorder %s485, %s486
      %p497 = scmp.eq.s32.totalorder %s75, 0
      %p498 = por %p496, %p497
      %p499 = scmp.ne.s32.totalorder %s485, %s486
      %p500 = scmp.eq.s32.totalorder %s76, 1
      %p501 = por %p499, %p500
      %p503 = scmp.ne.s32.totalorder %s486, %s502
      %p504 = scmp.eq.s32.totalorder %s76, 0
      %p505 = por %p503, %p504
      %s506 = ssub.s32 %s70, %s77
      %p507 = scmp.eq.s32.totalorder %s506, 0
      %s509 = sadd.s32 %s508, 1
      %s510 = scalar_select %p507, %s508, %s509
      %p513 = pneg %p507
      %p514 = scmp.eq.s32.totalorder %s70, 1
      %p515 = por %p513, %p514
      %p516 = scmp.ne.s32.totalorder %s508, %s511
      %p517 = scmp.eq.s32.totalorder %s70, 0
      %p518 = por %p516, %p517
      %p519 = scmp.ne.s32.totalorder %s508, %s511
      %p520 = scmp.eq.s32.totalorder %s75, 1
      %p521 = por %p519, %p520
      %p522 = scmp.ne.s32.totalorder %s511, %s512
      %p523 = scmp.eq.s32.totalorder %s75, 0
      %p524 = por %p522, %p523
      %p525 = scmp.ne.s32.totalorder %s511, %s512
      %p526 = scmp.eq.s32.totalorder %s76, 1
      %p527 = por %p525, %p526
      %p529 = scmp.ne.s32.totalorder %s512, %s528
      %p530 = scmp.eq.s32.totalorder %s76, 0
      %p531 = por %p529, %p530
      %s532 = ssub.s32 %s70, %s77
      %p533 = scmp.eq.s32.totalorder %s532, 0
      %s535 = sadd.s32 %s534, 1
      %s536 = scalar_select %p533, %s534, %s535
      %p539 = pneg %p533
      %p540 = scmp.eq.s32.totalorder %s70, 1
      %p541 = por %p539, %p540
      %p542 = scmp.ne.s32.totalorder %s534, %s537
      %p543 = scmp.eq.s32.totalorder %s70, 0
      %p544 = por %p542, %p543
      %p545 = scmp.ne.s32.totalorder %s534, %s537
      %p546 = scmp.eq.s32.totalorder %s75, 1
      %p547 = por %p545, %p546
      %p548 = scmp.ne.s32.totalorder %s537, %s538
      %p549 = scmp.eq.s32.totalorder %s75, 0
      %p550 = por %p548, %p549
      %p551 = scmp.ne.s32.totalorder %s537, %s538
      %p552 = scmp.eq.s32.totalorder %s76, 1
      %p553 = por %p551, %p552
      %p555 = scmp.ne.s32.totalorder %s538, %s554
      %p556 = scmp.eq.s32.totalorder %s76, 0
      %p557 = por %p555, %p556
      %s558 = ssub.s32 %s70, %s77
      %p559 = scmp.eq.s32.totalorder %s558, 0
      %s561 = sadd.s32 %s560, 1
      %s562 = scalar_select %p559, %s560, %s561
      %p565 = pneg %p559
      %p566 = scmp.eq.s32.totalorder %s70, 1
      %p567 = por %p565, %p566
      %p568 = scmp.ne.s32.totalorder %s560, %s563
      %p569 = scmp.eq.s32.totalorder %s70, 0
      %p570 = por %p568, %p569
      %p571 = scmp.ne.s32.totalorder %s560, %s563
      %p572 = scmp.eq.s32.totalorder %s75, 1
      %p573 = por %p571, %p572
      %p574 = scmp.ne.s32.totalorder %s563, %s564
      %p575 = scmp.eq.s32.totalorder %s75, 0
      %p576 = por %p574, %p575
      %p577 = scmp.ne.s32.totalorder %s563, %s564
      %p578 = scmp.eq.s32.totalorder %s76, 1
      %p579 = por %p577, %p578
      %p581 = scmp.ne.s32.totalorder %s564, %s580
      %p582 = scmp.eq.s32.totalorder %s76, 0
      %p583 = por %p581, %p582
      %s584 = ssub.s32 %s70, %s77
      %p585 = scmp.eq.s32.totalorder %s584, 0
      %s587 = sadd.s32 %s586, 1
      %s588 = scalar_select %p585, %s586, %s587
      %p591 = pneg %p585
      %p592 = scmp.eq.s32.totalorder %s70, 1
      %p593 = por %p591, %p592
      %p594 = scmp.ne.s32.totalorder %s586, %s589
      %p595 = scmp.eq.s32.totalorder %s70, 0
      %p596 = por %p594, %p595
      %p597 = scmp.ne.s32.totalorder %s586, %s589
      %p598 = scmp.eq.s32.totalorder %s75, 1
      %p599 = por %p597, %p598
      %p600 = scmp.ne.s32.totalorder %s589, %s590
      %p601 = scmp.eq.s32.totalorder %s75, 0
      %p602 = por %p600, %p601
      %p603 = scmp.ne.s32.totalorder %s589, %s590
      %p604 = scmp.eq.s32.totalorder %s76, 1
      %p605 = por %p603, %p604
      %p607 = scmp.ne.s32.totalorder %s590, %s606
      %p608 = scmp.eq.s32.totalorder %s76, 0
      %p609 = por %p607, %p608
      %s610 = ssub.s32 %s70, %s77
      %p611 = scmp.eq.s32.totalorder %s610, 0
      %s613 = sadd.s32 %s612, 1
      %s614 = scalar_select %p611, %s612, %s613
      %p617 = pneg %p611
      %p618 = scmp.eq.s32.totalorder %s70, 1
      %p619 = por %p617, %p618
      %p620 = scmp.ne.s32.totalorder %s612, %s615
      %p621 = scmp.eq.s32.totalorder %s70, 0
      %p622 = por %p620, %p621
      %p623 = scmp.ne.s32.totalorder %s612, %s615
      %p624 = scmp.eq.s32.totalorder %s75, 1
      %p625 = por %p623, %p624
      %p626 = scmp.ne.s32.totalorder %s615, %s616
      %p627 = scmp.eq.s32.totalorder %s75, 0
      %p628 = por %p626, %p627
      %p629 = scmp.ne.s32.totalorder %s615, %s616
      %p630 = scmp.eq.s32.totalorder %s76, 1
      %p631 = por %p629, %p630
      %p633 = scmp.ne.s32.totalorder %s616, %s632
      %p634 = scmp.eq.s32.totalorder %s76, 0
      %p635 = por %p633, %p634
      %s636 = ssub.s32 %s70, %s77
      %p637 = scmp.eq.s32.totalorder %s636, 0
      %s639 = sadd.s32 %s638, 1
      %s640 = scalar_select %p637, %s638, %s639
      %p643 = pneg %p637
      %p644 = scmp.eq.s32.totalorder %s70, 1
      %p645 = por %p643, %p644
      %p646 = scmp.ne.s32.totalorder %s638, %s641
      %p647 = scmp.eq.s32.totalorder %s70, 0
      %p648 = por %p646, %p647
      %p649 = scmp.ne.s32.totalorder %s638, %s641
      %p650 = scmp.eq.s32.totalorder %s75, 1
      %p651 = por %p649, %p650
      %p652 = scmp.ne.s32.totalorder %s641, %s642
      %p653 = scmp.eq.s32.totalorder %s75, 0
      %p654 = por %p652, %p653
      %p655 = scmp.ne.s32.totalorder %s641, %s642
      %p656 = scmp.eq.s32.totalorder %s76, 1
      %p657 = por %p655, %p656
      %p659 = scmp.ne.s32.totalorder %s642, %s658
      %p660 = scmp.eq.s32.totalorder %s76, 0
      %p661 = por %p659, %p660
      %s663 = sadd.s32 %s662, 1
      %p666 = scmp.eq.s32.totalorder %s70, 1
      %p667 = scmp.ne.s32.totalorder %s662, %s664
      %p668 = scmp.eq.s32.totalorder %s70, 0
      %p669 = por %p667, %p668
      %p670 = scmp.ne.s32.totalorder %s662, %s664
      %p671 = scmp.eq.s32.totalorder %s75, 1
      %p672 = por %p670, %p671
      %p673 = scmp.ne.s32.totalorder %s664, %s665
      %p674 = scmp.eq.s32.totalorder %s75, 0
      %p675 = por %p673, %p674
      %p676 = scmp.ne.s32.totalorder %s664, %s665
      %p677 = scmp.eq.s32.totalorder %s76, 1
      %p678 = por %p676, %p677
      %p680 = scmp.ne.s32.totalorder %s665, %s679
      %p681 = scmp.eq.s32.totalorder %s76, 0
      %p682 = por %p680, %p681
      %s684 = sadd.s32 %s683, 1
      %p687 = scmp.eq.s32.totalorder %s70, 1
      %p688 = scmp.ne.s32.totalorder %s683, %s685
      %p689 = scmp.eq.s32.totalorder %s70, 0
      %p690 = por %p688, %p689
      %p691 = scmp.ne.s32.totalorder %s683, %s685
      %p692 = scmp.eq.s32.totalorder %s75, 1
      %p693 = por %p691, %p692
      %p694 = scmp.ne.s32.totalorder %s685, %s686
      %p695 = scmp.eq.s32.totalorder %s75, 0
      %p696 = por %p694, %p695
      %p697 = scmp.ne.s32.totalorder %s685, %s686
      %p698 = scmp.eq.s32.totalorder %s76, 1
      %p699 = por %p697, %p698
      %p701 = scmp.ne.s32.totalorder %s686, %s700
      %p702 = scmp.eq.s32.totalorder %s76, 0
      %p703 = por %p701, %p702
      %s705 = sadd.s32 %s704, 1
      %p708 = scmp.eq.s32.totalorder %s70, 1
      %p709 = scmp.ne.s32.totalorder %s704, %s706
      %p710 = scmp.eq.s32.totalorder %s70, 0
      %p711 = por %p709, %p710
      %p712 = scmp.ne.s32.totalorder %s704, %s706
      %p713 = scmp.eq.s32.totalorder %s75, 1
      %p714 = por %p712, %p713
      %p715 = scmp.ne.s32.totalorder %s706, %s707
      %p716 = scmp.eq.s32.totalorder %s75, 0
      %p717 = por %p715, %p716
      %p718 = scmp.ne.s32.totalorder %s706, %s707
      %p719 = scmp.eq.s32.totalorder %s76, 1
      %p720 = por %p718, %p719
      %p722 = scmp.ne.s32.totalorder %s707, %s721
      %p723 = scmp.eq.s32.totalorder %s76, 0
      %p724 = por %p722, %p723
      %s726 = sadd.s32 %s725, 1
      %p729 = scmp.eq.s32.totalorder %s70, 1
      %p730 = scmp.ne.s32.totalorder %s725, %s727
      %p731 = scmp.eq.s32.totalorder %s70, 0
      %p732 = por %p730, %p731
      %p733 = scmp.ne.s32.totalorder %s725, %s727
      %p734 = scmp.eq.s32.totalorder %s75, 1
      %p735 = por %p733, %p734
      %p736 = scmp.ne.s32.totalorder %s727, %s728
      %p737 = scmp.eq.s32.totalorder %s75, 0
      %p738 = por %p736, %p737
      %p739 = scmp.ne.s32.totalorder %s727, %s728
      %p740 = scmp.eq.s32.totalorder %s76, 1
      %p741 = por %p739, %p740
      %p743 = scmp.ne.s32.totalorder %s728, %s742
      %p744 = scmp.eq.s32.totalorder %s76, 0
      %p745 = por %p743, %p744
      %s747 = sadd.s32 %s746, 1
      %p750 = scmp.eq.s32.totalorder %s70, 1
      %p751 = scmp.ne.s32.totalorder %s746, %s748
      %p752 = scmp.eq.s32.totalorder %s70, 0
      %p753 = por %p751, %p752
      %p754 = scmp.ne.s32.totalorder %s746, %s748
      %p755 = scmp.eq.s32.totalorder %s75, 1
      %p756 = por %p754, %p755
      %p757 = scmp.ne.s32.totalorder %s748, %s749
      %p758 = scmp.eq.s32.totalorder %s75, 0
      %p759 = por %p757, %p758
      %p760 = scmp.ne.s32.totalorder %s748, %s749
      %p761 = scmp.eq.s32.totalorder %s76, 1
      %p762 = por %p760, %p761
      %p764 = scmp.ne.s32.totalorder %s749, %s763
      %p765 = scmp.eq.s32.totalorder %s76, 0
      %p766 = por %p764, %p765
      %s768 = sadd.s32 %s767, 1
      %p771 = scmp.eq.s32.totalorder %s70, 1
      %p772 = scmp.ne.s32.totalorder %s767, %s769
      %p773 = scmp.eq.s32.totalorder %s70, 0
      %p774 = por %p772, %p773
      %p775 = scmp.ne.s32.totalorder %s767, %s769
      %p776 = scmp.eq.s32.totalorder %s75, 1
      %p777 = por %p775, %p776
      %p778 = scmp.ne.s32.totalorder %s769, %s770
      %p779 = scmp.eq.s32.totalorder %s75, 0
      %p780 = por %p778, %p779
      %p781 = scmp.ne.s32.totalorder %s769, %s770
      %p782 = scmp.eq.s32.totalorder %s76, 1
      %p783 = por %p781, %p782
      %p785 = scmp.ne.s32.totalorder %s770, %s784
      %p786 = scmp.eq.s32.totalorder %s76, 0
      %p787 = por %p785, %p786
      %s789 = sadd.s32 %s788, 1
      %p792 = scmp.eq.s32.totalorder %s70, 1
      %p793 = scmp.ne.s32.totalorder %s788, %s790
      %p794 = scmp.eq.s32.totalorder %s70, 0
      %p795 = por %p793, %p794
      %p796 = scmp.ne.s32.totalorder %s788, %s790
      %p797 = scmp.eq.s32.totalorder %s75, 1
      %p798 = por %p796, %p797
      %p799 = scmp.ne.s32.totalorder %s790, %s791
      %p800 = scmp.eq.s32.totalorder %s75, 0
      %p801 = por %p799, %p800
      %p802 = scmp.ne.s32.totalorder %s790, %s791
      %p803 = scmp.eq.s32.totalorder %s76, 1
      %p804 = por %p802, %p803
      %p806 = scmp.ne.s32.totalorder %s791, %s805
      %p807 = scmp.eq.s32.totalorder %s76, 0
      %p808 = por %p806, %p807
      %s810 = sadd.s32 %s809, 1
      %p813 = scmp.eq.s32.totalorder %s70, 1
      %p814 = scmp.ne.s32.totalorder %s809, %s811
      %p815 = scmp.eq.s32.totalorder %s70, 0
      %p816 = por %p814, %p815
      %p817 = scmp.ne.s32.totalorder %s809, %s811
      %p818 = scmp.eq.s32.totalorder %s75, 1
      %p819 = por %p817, %p818
      %p820 = scmp.ne.s32.totalorder %s811, %s812
      %p821 = scmp.eq.s32.totalorder %s75, 0
      %p822 = por %p820, %p821
      %p823 = scmp.ne.s32.totalorder %s811, %s812
      %p824 = scmp.eq.s32.totalorder %s76, 1
      %p825 = por %p823, %p824
      %p827 = scmp.ne.s32.totalorder %s812, %s826
      %p828 = scmp.eq.s32.totalorder %s76, 0
      %p829 = por %p827, %p828
      %p830 = scmp.le.s32.totalorder 1, %s70
      %p831 = scmp.lt.s32.totalorder %s70, 3
      %p832 = pnand %p830, %p831
      %p833 = pneg %p832
      // Predicated region
      $region9: #{run.1} parent=5 // pred_check
        _
      $region10: #{run.1} parent=5 // pred_check_branch
        %835 = sbr.rel (%p832) target = $region12
      $region11: #{run.1} parent=5 // pred_region
        %s836 = ssub.s32 %s70, 1
        // Predicated region
        $region13: #{run.1} parent=11 // pred_check
          %p837 = pneg %p91
        $region14: #{run.1} parent=11 // pred_check_branch
          %839 = sbr.rel (%p837) target = $region16
        $region15: #{run.1} parent=11 // pred_region
          _
        $region16: #{run.1} parent=11 // pred_fallthru
          _
        // Predicated region
        $region17: #{run.1} parent=11 // pred_check
          %p840 = pneg %p112
        $region18: #{run.1} parent=11 // pred_check_branch
          %842 = sbr.rel (%p840) target = $region20
        $region19: #{run.1} parent=11 // pred_region
          _
        $region20: #{run.1} parent=11 // pred_fallthru
          _
        // Predicated region
        $region21: #{run.1} parent=11 // pred_check
          %p843 = pneg %p133
        $region22: #{run.1} parent=11 // pred_check_branch
          %845 = sbr.rel (%p843) target = $region24
        $region23: #{run.1} parent=11 // pred_region
          _
        $region24: #{run.1} parent=11 // pred_fallthru
          _
        // Predicated region
        $region25: #{run.1} parent=11 // pred_check
          %p846 = pneg %p154
        $region26: #{run.1} parent=11 // pred_check_branch
          %848 = sbr.rel (%p846) target = $region28
        $region27: #{run.1} parent=11 // pred_region
          _
        $region28: #{run.1} parent=11 // pred_fallthru
          _
        // Predicated region
        $region29: #{run.1} parent=11 // pred_check
          %p849 = pneg %p175
        $region30: #{run.1} parent=11 // pred_check_branch
          %851 = sbr.rel (%p849) target = $region32
        $region31: #{run.1} parent=11 // pred_region
          _
        $region32: #{run.1} parent=11 // pred_fallthru
          _
        // Predicated region
        $region33: #{run.1} parent=11 // pred_check
          %p852 = pneg %p196
        $region34: #{run.1} parent=11 // pred_check_branch
          %854 = sbr.rel (%p852) target = $region36
        $region35: #{run.1} parent=11 // pred_region
          _
        $region36: #{run.1} parent=11 // pred_fallthru
          _
        // Predicated region
        $region37: #{run.1} parent=11 // pred_check
          %p855 = pneg %p217
        $region38: #{run.1} parent=11 // pred_check_branch
          %857 = sbr.rel (%p855) target = $region40
        $region39: #{run.1} parent=11 // pred_region
          _
        $region40: #{run.1} parent=11 // pred_fallthru
          _
        // Predicated region
        $region41: #{run.1} parent=11 // pred_check
          %p858 = pneg %p238
        $region42: #{run.1} parent=11 // pred_check_branch
          %860 = sbr.rel (%p858) target = $region44
        $region43: #{run.1} parent=11 // pred_region
          _
        $region44: #{run.1} parent=11 // pred_fallthru
          _
        // Predicated region
        $region45: #{run.1} parent=11 // pred_check
          %p861 = pneg %p675
        $region46: #{run.1} parent=11 // pred_check_branch
          %863 = sbr.rel (%p861) target = $region48
        $region47: #{run.1} parent=11 // pred_region
          _
        $region48: #{run.1} parent=11 // pred_fallthru
          _
        // Predicated region
        $region49: #{run.1} parent=11 // pred_check
          %p864 = pneg %p696
        $region50: #{run.1} parent=11 // pred_check_branch
          %866 = sbr.rel (%p864) target = $region52
        $region51: #{run.1} parent=11 // pred_region
          _
        $region52: #{run.1} parent=11 // pred_fallthru
          _
        // Predicated region
        $region53: #{run.1} parent=11 // pred_check
          %p867 = pneg %p717
        $region54: #{run.1} parent=11 // pred_check_branch
          %869 = sbr.rel (%p867) target = $region56
        $region55: #{run.1} parent=11 // pred_region
          _
        $region56: #{run.1} parent=11 // pred_fallthru
          _
        // Predicated region
        $region57: #{run.1} parent=11 // pred_check
          %p870 = pneg %p738
        $region58: #{run.1} parent=11 // pred_check_branch
          %872 = sbr.rel (%p870) target = $region60
        $region59: #{run.1} parent=11 // pred_region
          _
        $region60: #{run.1} parent=11 // pred_fallthru
          _
        // Predicated region
        $region61: #{run.1} parent=11 // pred_check
          %p873 = pneg %p759
        $region62: #{run.1} parent=11 // pred_check_branch
          %875 = sbr.rel (%p873) target = $region64
        $region63: #{run.1} parent=11 // pred_region
          _
        $region64: #{run.1} parent=11 // pred_fallthru
          _
        // Predicated region
        $region65: #{run.1} parent=11 // pred_check
          %p876 = pneg %p780
        $region66: #{run.1} parent=11 // pred_check_branch
          %878 = sbr.rel (%p876) target = $region68
        $region67: #{run.1} parent=11 // pred_region
          _
        $region68: #{run.1} parent=11 // pred_fallthru
          _
        // Predicated region
        $region69: #{run.1} parent=11 // pred_check
          %p879 = pneg %p801
        $region70: #{run.1} parent=11 // pred_check_branch
          %881 = sbr.rel (%p879) target = $region72
        $region71: #{run.1} parent=11 // pred_region
          _
        $region72: #{run.1} parent=11 // pred_fallthru
          _
      $region12: #{run.1} parent=5 // pred_fallthru
        _
      %p882 = scmp.lt.s32.totalorder %s70, 2
      // Predicated region
      $region73: #{run.1} parent=5 // pred_check
        %p883 = pneg %p882
      $region74: #{run.1} parent=5 // pred_check_branch
        %885 = sbr.rel (%p883) target = $region76
      $region75: #{run.1} parent=5 // pred_region
        // Predicated region
        $region77: #{run.1} parent=75 // pred_check
          %p886 = pneg %p258
        $region78: #{run.1} parent=75 // pred_check_branch
          %888 = sbr.rel (%p886) target = $region80
        $region79: #{run.1} parent=75 // pred_region
          %p889 = scmp.lt.s32.totalorder %s70, 1
          %s890 = scalar_select %p889, %s70, 1
          %s891 = smul.addr %s890, 16
          %s892 = smul.addr %s891, 8
          %s893 = scalar_lea.vmem %s17, %s892
        $region80: #{run.1} parent=75 // pred_fallthru
          _
        // Predicated region
        $region81: #{run.1} parent=75 // pred_check
          %p894 = pneg %p284
        $region82: #{run.1} parent=75 // pred_check_branch
          %896 = sbr.rel (%p894) target = $region84
        $region83: #{run.1} parent=75 // pred_region
          %p897 = scmp.lt.s32.totalorder %s70, 1
          %s898 = scalar_select %p897, %s70, 1
          %s899 = smul.addr %s898, 4
          %s900 = scalar_lea.vmem %s19, %s899
        $region84: #{run.1} parent=75 // pred_fallthru
          _
        // Predicated region
        $region85: #{run.1} parent=75 // pred_check
          %p901 = pneg %p310
        $region86: #{run.1} parent=75 // pred_check_branch
          %903 = sbr.rel (%p901) target = $region88
        $region87: #{run.1} parent=75 // pred_region
          %p904 = scmp.lt.s32.totalorder %s70, 1
          %s905 = scalar_select %p904, %s70, 1
          %s906 = smul.addr %s905, 16
          %s907 = smul.addr %s906, 8
          %s908 = scalar_lea.vmem %s21, %s907
        $region88: #{run.1} parent=75 // pred_fallthru
          _
        // Predicated region
        $region89: #{run.1} parent=75 // pred_check
          %p909 = pneg %p336
        $region90: #{run.1} parent=75 // pred_check_branch
          %911 = sbr.rel (%p909) target = $region92
        $region91: #{run.1} parent=75 // pred_region
          %p912 = scmp.lt.s32.totalorder %s70, 1
          %s913 = scalar_select %p912, %s70, 1
          %s914 = smul.addr %s913, 4
          %s915 = scalar_lea.vmem %s23, %s914
        $region92: #{run.1} parent=75 // pred_fallthru
          _
        // Predicated region
        $region93: #{run.1} parent=75 // pred_check
          %p916 = pneg %p362
        $region94: #{run.1} parent=75 // pred_check_branch
          %918 = sbr.rel (%p916) target = $region96
        $region95: #{run.1} parent=75 // pred_region
          %p919 = scmp.lt.s32.totalorder %s70, 1
          %s920 = scalar_select %p919, %s70, 1
          %s921 = smul.addr %s920, 16
          %s922 = smul.addr %s921, 8
          %s923 = scalar_lea.vmem %s25, %s922
        $region96: #{run.1} parent=75 // pred_fallthru
          _
        // Predicated region
        $region97: #{run.1} parent=75 // pred_check
          %p924 = pneg %p388
        $region98: #{run.1} parent=75 // pred_check_branch
          %926 = sbr.rel (%p924) target = $region100
        $region99: #{run.1} parent=75 // pred_region
          %p927 = scmp.lt.s32.totalorder %s70, 1
          %s928 = scalar_select %p927, %s70, 1
          %s929 = smul.addr %s928, 4
          %s930 = scalar_lea.vmem %s27, %s929
        $region100: #{run.1} parent=75 // pred_fallthru
          _
        // Predicated region
        $region101: #{run.1} parent=75 // pred_check
          %p931 = pneg %p414
        $region102: #{run.1} parent=75 // pred_check_branch
          %933 = sbr.rel (%p931) target = $region104
        $region103: #{run.1} parent=75 // pred_region
          %p934 = scmp.lt.s32.totalorder %s70, 1
          %s935 = scalar_select %p934, %s70, 1
          %s936 = smul.addr %s935, 4
          %s937 = smul.addr %s936, 8
          %s938 = scalar_lea.vmem %s29, %s937
        $region104: #{run.1} parent=75 // pred_fallthru
          _
        // Predicated region
        $region105: #{run.1} parent=75 // pred_check
          %p939 = pneg %p440
        $region106: #{run.1} parent=75 // pred_check_branch
          %941 = sbr.rel (%p939) target = $region108
        $region107: #{run.1} parent=75 // pred_region
          %p942 = scmp.lt.s32.totalorder %s70, 1
          %s943 = scalar_select %p942, %s70, 1
          %s944 = scalar_lea.vmem %s31, %s943
        $region108: #{run.1} parent=75 // pred_fallthru
          _
        // Predicated region
        $region109: #{run.1} parent=75 // pred_check
          %p945 = pneg %p466
        $region110: #{run.1} parent=75 // pred_check_branch
          %947 = sbr.rel (%p945) target = $region112
        $region111: #{run.1} parent=75 // pred_region
          %p948 = scmp.lt.s32.totalorder %s70, 1
          %s949 = scalar_select %p948, %s70, 1
          %s950 = scalar_lea.vmem %s33, %s949
        $region112: #{run.1} parent=75 // pred_fallthru
          _
        // Predicated region
        $region113: #{run.1} parent=75 // pred_check
          %p951 = pneg %p492
        $region114: #{run.1} parent=75 // pred_check_branch
          %953 = sbr.rel (%p951) target = $region116
        $region115: #{run.1} parent=75 // pred_region
          %p954 = scmp.lt.s32.totalorder %s70, 1
          %s955 = scalar_select %p954, %s70, 1
          %s956 = scalar_lea.vmem %s35, %s955
        $region116: #{run.1} parent=75 // pred_fallthru
          _
        // Predicated region
        $region117: #{run.1} parent=75 // pred_check
          %p957 = pneg %p518
        $region118: #{run.1} parent=75 // pred_check_branch
          %959 = sbr.rel (%p957) target = $region120
        $region119: #{run.1} parent=75 // pred_region
          %p960 = scmp.lt.s32.totalorder %s70, 1
          %s961 = scalar_select %p960, %s70, 1
          %s962 = smul.addr %s961, 4
          %s963 = smul.addr %s962, 8
          %s964 = scalar_lea.vmem %s37, %s963
        $region120: #{run.1} parent=75 // pred_fallthru
          _
        // Predicated region
        $region121: #{run.1} parent=75 // pred_check
          %p965 = pneg %p544
        $region122: #{run.1} parent=75 // pred_check_branch
          %967 = sbr.rel (%p965) target = $region124
        $region123: #{run.1} parent=75 // pred_region
          %p968 = scmp.lt.s32.totalorder %s70, 1
          %s969 = scalar_select %p968, %s70, 1
          %s970 = scalar_lea.vmem %s39, %s969
        $region124: #{run.1} parent=75 // pred_fallthru
          _
        // Predicated region
        $region125: #{run.1} parent=75 // pred_check
          %p971 = pneg %p570
        $region126: #{run.1} parent=75 // pred_check_branch
          %973 = sbr.rel (%p971) target = $region128
        $region127: #{run.1} parent=75 // pred_region
          %p974 = scmp.lt.s32.totalorder %s70, 1
          %s975 = scalar_select %p974, %s70, 1
          %s976 = smul.addr %s975, 8
          %s977 = smul.addr %s976, 8
          %s978 = scalar_lea.vmem %s41, %s977
        $region128: #{run.1} parent=75 // pred_fallthru
          _
        // Predicated region
        $region129: #{run.1} parent=75 // pred_check
          %p979 = pneg %p596
        $region130: #{run.1} parent=75 // pred_check_branch
          %981 = sbr.rel (%p979) target = $region132
        $region131: #{run.1} parent=75 // pred_region
          %p982 = scmp.lt.s32.totalorder %s70, 1
          %s983 = scalar_select %p982, %s70, 1
          %s984 = scalar_lea.vmem %s43, %s983
        $region132: #{run.1} parent=75 // pred_fallthru
          _
        // Predicated region
        $region133: #{run.1} parent=75 // pred_check
          %p985 = pneg %p622
        $region134: #{run.1} parent=75 // pred_check_branch
          %987 = sbr.rel (%p985) target = $region136
        $region135: #{run.1} parent=75 // pred_region
          %p988 = scmp.lt.s32.totalorder %s70, 1
          %s989 = scalar_select %p988, %s70, 1
          %s990 = scalar_lea.vmem %s45, %s989
        $region136: #{run.1} parent=75 // pred_fallthru
          _
        // Predicated region
        $region137: #{run.1} parent=75 // pred_check
          %p991 = pneg %p648
        $region138: #{run.1} parent=75 // pred_check_branch
          %993 = sbr.rel (%p991) target = $region140
        $region139: #{run.1} parent=75 // pred_region
          %p994 = scmp.lt.s32.totalorder %s70, 1
          %s995 = scalar_select %p994, %s70, 1
          %s996 = scalar_lea.vmem %s47, %s995
        $region140: #{run.1} parent=75 // pred_fallthru
          _
      $region76: #{run.1} parent=5 // pred_fallthru
        _
      %p997 = scmp.le.s32.totalorder 1, %s70
      %p998 = scmp.lt.s32.totalorder %s70, 3
      %p999 = pnand %p997, %p998
      %p1000 = pneg %p999
      // Predicated region
      $region141: #{run.1} parent=5 // pred_check
        _
      $region142: #{run.1} parent=5 // pred_check_branch
        %1002 = sbr.rel (%p999) target = $region144
      $region143: #{run.1} parent=5 // pred_region
        %s1003 = ssub.s32 %s70, 1
        %p1004 = pneg %p91
        %p1005 = pneg %p88
        %p1006 = pneg %p112
        %p1007 = pneg %p109
        %p1008 = pneg %p133
        %p1009 = pneg %p130
        %p1010 = pneg %p154
        %p1011 = pneg %p151
        %p1012 = pneg %p175
        %p1013 = pneg %p172
        %p1014 = pneg %p196
        %p1015 = pneg %p193
        %p1016 = pneg %p217
        %p1017 = pneg %p214
        %p1018 = pneg %p238
        %p1019 = pneg %p235
        %p1020 = scmp.lt.s32.totalorder %s75, 1
        %s1021 = scalar_select %p1020, %s75, 1
        %s1022 = smul.addr %s1021, 16
        %s1023 = smul.addr %s1022, 8
        %s1024 = scalar_lea.vmem %s17, %s1023
        %p1025 = pneg %p264
        %p1026 = pneg %p261
        %p1027 = scmp.lt.s32.totalorder %s75, 1
        %s1028 = scalar_select %p1027, %s75, 1
        %s1029 = smul.addr %s1028, 4
        %s1030 = scalar_lea.vmem %s19, %s1029
        %p1031 = pneg %p290
        %p1032 = pneg %p287
        %p1033 = scmp.lt.s32.totalorder %s75, 1
        %s1034 = scalar_select %p1033, %s75, 1
        %s1035 = smul.addr %s1034, 16
        %s1036 = smul.addr %s1035, 8
        %s1037 = scalar_lea.vmem %s21, %s1036
        %p1038 = pneg %p316
        %p1039 = pneg %p313
        %p1040 = scmp.lt.s32.totalorder %s75, 1
        %s1041 = scalar_select %p1040, %s75, 1
        %s1042 = smul.addr %s1041, 4
        %s1043 = scalar_lea.vmem %s23, %s1042
        %p1044 = pneg %p342
        %p1045 = pneg %p339
        %p1046 = scmp.lt.s32.totalorder %s75, 1
        %s1047 = scalar_select %p1046, %s75, 1
        %s1048 = smul.addr %s1047, 16
        %s1049 = smul.addr %s1048, 8
        %s1050 = scalar_lea.vmem %s25, %s1049
        %p1051 = pneg %p368
        %p1052 = pneg %p365
        %p1053 = scmp.lt.s32.totalorder %s75, 1
        %s1054 = scalar_select %p1053, %s75, 1
        %s1055 = smul.addr %s1054, 4
        %s1056 = scalar_lea.vmem %s27, %s1055
        %p1057 = pneg %p394
        %p1058 = pneg %p391
        %p1059 = scmp.lt.s32.totalorder %s75, 1
        %s1060 = scalar_select %p1059, %s75, 1
        %s1061 = smul.addr %s1060, 4
        %s1062 = smul.addr %s1061, 8
        %s1063 = scalar_lea.vmem %s29, %s1062
        %p1064 = pneg %p420
        %p1065 = pneg %p417
        %p1066 = scmp.lt.s32.totalorder %s75, 1
        %s1067 = scalar_select %p1066, %s75, 1
        %s1068 = scalar_lea.vmem %s31, %s1067
        %p1069 = pneg %p446
        %p1070 = pneg %p443
        %p1071 = scmp.lt.s32.totalorder %s75, 1
        %s1072 = scalar_select %p1071, %s75, 1
        %s1073 = scalar_lea.vmem %s33, %s1072
        %p1074 = pneg %p472
        %p1075 = pneg %p469
        %p1076 = scmp.lt.s32.totalorder %s75, 1
        %s1077 = scalar_select %p1076, %s75, 1
        %s1078 = scalar_lea.vmem %s35, %s1077
        %p1079 = pneg %p498
        %p1080 = pneg %p495
        %p1081 = scmp.lt.s32.totalorder %s75, 1
        %s1082 = scalar_select %p1081, %s75, 1
        %s1083 = smul.addr %s1082, 4
        %s1084 = smul.addr %s1083, 8
        %s1085 = scalar_lea.vmem %s37, %s1084
        %p1086 = pneg %p524
        %p1087 = pneg %p521
        %p1088 = scmp.lt.s32.totalorder %s75, 1
        %s1089 = scalar_select %p1088, %s75, 1
        %s1090 = scalar_lea.vmem %s39, %s1089
        %p1091 = pneg %p550
        %p1092 = pneg %p547
        %p1093 = scmp.lt.s32.totalorder %s75, 1
        %s1094 = scalar_select %p1093, %s75, 1
        %s1095 = smul.addr %s1094, 8
        %s1096 = smul.addr %s1095, 8
        %s1097 = scalar_lea.vmem %s41, %s1096
        %p1098 = pneg %p576
        %p1099 = pneg %p573
        %p1100 = scmp.lt.s32.totalorder %s75, 1
        %s1101 = scalar_select %p1100, %s75, 1
        %s1102 = scalar_lea.vmem %s43, %s1101
        %p1103 = pneg %p602
        %p1104 = pneg %p599
        %p1105 = scmp.lt.s32.totalorder %s75, 1
        %s1106 = scalar_select %p1105, %s75, 1
        %s1107 = scalar_lea.vmem %s45, %s1106
        %p1108 = pneg %p628
        %p1109 = pneg %p625
        %p1110 = scmp.lt.s32.totalorder %s75, 1
        %s1111 = scalar_select %p1110, %s75, 1
        %s1112 = scalar_lea.vmem %s47, %s1111
        %p1113 = pneg %p654
        %p1114 = pneg %p651
        %p1115 = pneg %p675
        %p1116 = pneg %p672
        %p1117 = pneg %p696
        %p1118 = pneg %p693
        %p1119 = pneg %p717
        %p1120 = pneg %p714
        %p1121 = pneg %p738
        %p1122 = pneg %p735
        %p1123 = pneg %p759
        %p1124 = pneg %p756
        %p1125 = pneg %p780
        %p1126 = pneg %p777
        %p1127 = pneg %p801
        %p1128 = pneg %p798
        %p1129 = pneg %p822
        %p1130 = pneg %p819
        %p1131 = scmp.lt.s32.totalorder %s75, 1
        %s1132 = scalar_select %p1131, %s75, 1
        %s1133 = smul.addr %s1132, 16
        %s1134 = smul.addr %s1133, 8
        %s1135 = scalar_lea.vmem %s17, %s1134
        %p1136 = scmp.lt.s32.totalorder %s75, 1
        %s1137 = scalar_select %p1136, %s75, 1
        %s1138 = smul.addr %s1137, 4
        %s1139 = scalar_lea.vmem %s19, %s1138
        %p1140 = scmp.lt.s32.totalorder %s75, 1
        %s1141 = scalar_select %p1140, %s75, 1
        %s1142 = smul.addr %s1141, 16
        %s1143 = smul.addr %s1142, 8
        %s1144 = scalar_lea.vmem %s21, %s1143
        %p1145 = scmp.lt.s32.totalorder %s75, 1
        %s1146 = scalar_select %p1145, %s75, 1
        %s1147 = smul.addr %s1146, 4
        %s1148 = scalar_lea.vmem %s23, %s1147
        %p1149 = scmp.lt.s32.totalorder %s75, 1
        %s1150 = scalar_select %p1149, %s75, 1
        %s1151 = smul.addr %s1150, 16
        %s1152 = smul.addr %s1151, 8
        %s1153 = scalar_lea.vmem %s25, %s1152
        %p1154 = scmp.lt.s32.totalorder %s75, 1
        %s1155 = scalar_select %p1154, %s75, 1
        %s1156 = smul.addr %s1155, 4
        %s1157 = scalar_lea.vmem %s27, %s1156
        %p1158 = scmp.lt.s32.totalorder %s75, 1
        %s1159 = scalar_select %p1158, %s75, 1
        %s1160 = smul.addr %s1159, 4
        %s1161 = smul.addr %s1160, 8
        %s1162 = scalar_lea.vmem %s29, %s1161
        %p1163 = scmp.lt.s32.totalorder %s75, 1
        %s1164 = scalar_select %p1163, %s75, 1
        %s1165 = scalar_lea.vmem %s31, %s1164
        %p1166 = scmp.lt.s32.totalorder %s75, 1
        %s1167 = scalar_select %p1166, %s75, 1
        %s1168 = scalar_lea.vmem %s33, %s1167
        %p1169 = scmp.lt.s32.totalorder %s75, 1
        %s1170 = scalar_select %p1169, %s75, 1
        %s1171 = scalar_lea.vmem %s35, %s1170
        %p1172 = scmp.lt.s32.totalorder %s75, 1
        %s1173 = scalar_select %p1172, %s75, 1
        %s1174 = smul.addr %s1173, 4
        %s1175 = smul.addr %s1174, 8
        %s1176 = scalar_lea.vmem %s37, %s1175
        %p1177 = scmp.lt.s32.totalorder %s75, 1
        %s1178 = scalar_select %p1177, %s75, 1
        %s1179 = scalar_lea.vmem %s39, %s1178
        %p1180 = scmp.lt.s32.totalorder %s75, 1
        %s1181 = scalar_select %p1180, %s75, 1
        %s1182 = smul.addr %s1181, 8
        %s1183 = smul.addr %s1182, 8
        %s1184 = scalar_lea.vmem %s41, %s1183
        %p1185 = scmp.lt.s32.totalorder %s75, 1
        %s1186 = scalar_select %p1185, %s75, 1
        %s1187 = scalar_lea.vmem %s43, %s1186
        %p1188 = scmp.lt.s32.totalorder %s75, 1
        %s1189 = scalar_select %p1188, %s75, 1
        %s1190 = scalar_lea.vmem %s45, %s1189
        %p1191 = scmp.lt.s32.totalorder %s75, 1
        %s1192 = scalar_select %p1191, %s75, 1
        %s1193 = scalar_lea.vmem %s47, %s1192
        %p1194 = scmp.eq.s32.totalorder %s75, 0
        // Predicated region
        $region145: #{run.1} parent=143 // pred_check
          %p1195 = pneg %p1194
        $region146: #{run.1} parent=143 // pred_check_branch
          %1197 = sbr.rel (%p1195) target = $region148
        $region147: #{run.1} parent=143 // pred_region
          %v1198 = vld [vmem:[%s1] sm:$0xff]
          %v1199 = vld [vmem:[%s1 + $0x8] sm:$0xff]
          %v1200 = vld [vmem:[%s9] sm:$0x3]
          %v1201 = vld [vmem:[%s11] sm:$0x1]
          %v1203 = vlaneseq
          %v1204 = vshrl.u32 %v1203, 7
          %v1205 = vsub.s32 0, %v1204
          %v1206 = vrot.slane %v1201, %v1205
          %vm1208 = vcmask 15360
          %v1210 = vsel %vm1208, %v1198, 0
          %v1213 = vsel %vm1208, %v1199, 0
          %vm1215 = vcmask 1041408
          %v1217 = vsel %vm1215, %v1200, 0
          %1219 = vmatprep.subr.mxu0 0.0
          %1220 = vmatpush1.msra.mxu0 0.0
          %1221 = vmatprep.subr.mxu0 0.0
          %1222 = vmatpush1.msra.mxu0 0.0
          %1223 = vmatprep.subr.mxu0 0.0
          %1224 = vmatpush1.msra.mxu0 0.0
          %1225 = vmatprep.subr.mxu0 0.0
          %1226 = vmatpush1.msra.mxu0 0.0
          %1227 = vmatprep.subr.mxu0 0.0
          %1228 = vmatpush1.msra.mxu0 0.0
          %1229 = vmatprep.subr.mxu0 0.0
          %1230 = vmatpush1.msra.mxu0 0.0
          %1231 = vmatprep.subr.mxu0 0.0
          %1232 = vmatpush1.msra.mxu0 0.0
          %1233 = vmatprep.subr.mxu0 0.0
          %1234 = vmatpush1.msra.mxu0 0.0
          %1235 = vmatprep.subr.mxu0 0.0
          %1236 = vmatpush1.msra.mxu0 0.0
          %1237 = vmatprep.subr.mxu0 0.0
          %1238 = vmatpush1.msra.mxu0 0.0
          %1239 = vmatprep.subr.mxu0 0.0
          %1240 = vmatpush1.msra.mxu0 0.0
          %1241 = vmatprep.subr.mxu0 0.0
          %1242 = vmatpush1.msra.mxu0 0.0
          %1243 = vmatprep.subr.mxu0 0.0
          %1244 = vmatpush1.msra.mxu0 0.0
          %1245 = vmatprep.subr.mxu0 0.0
          %1246 = vmatpush1.msra.mxu0 0.0
          %1247 = vmatprep.subr.mxu0 0.0
          %1248 = vmatpush1.msra.mxu0 0.0
          %1249 = vmatprep.subr.mxu0 0.0
          %1250 = vmatpush1.msra.mxu0 %v1217
          %1251 = vmatprep.subr.mxu0 0.0
          %1252 = vmatpush2.msra.mxu0 0.0
          %1253 = vmatprep.subr.mxu0 0.0
          %1254 = vmatpush2.msra.mxu0 0.0
          %1255 = vmatprep.subr.mxu0 0.0
          %1256 = vmatpush2.msra.mxu0 0.0
          %1257 = vmatprep.subr.mxu0 0.0
          %1258 = vmatpush2.msra.mxu0 0.0
          %1259 = vmatprep.subr.mxu0 0.0
          %1260 = vmatpush2.msra.mxu0 0.0
          %1261 = vmatprep.subr.mxu0 0.0
          %1262 = vmatpush2.msra.mxu0 0.0
          %1263 = vmatprep.subr.mxu0 0.0
          %1264 = vmatpush2.msra.mxu0 0.0
          %1265 = vmatprep.subr.mxu0 0.0
          %1266 = vmatpush2.msra.mxu0 0.0
          %1267 = vmatprep.subr.mxu0 0.0
          %1268 = vmatpush2.msra.mxu0 0.0
          %1269 = vmatprep.subr.mxu0 0.0
          %1270 = vmatpush2.msra.mxu0 0.0
          %1271 = vmatprep.subr.mxu0 0.0
          %1272 = vmatpush2.msra.mxu0 0.0
          %1273 = vmatprep.subr.mxu0 0.0
          %1274 = vmatpush2.msra.mxu0 0.0
          %1275 = vmatprep.subr.mxu0 0.0
          %1276 = vmatpush2.msra.mxu0 0.0
          %1277 = vmatprep.subr.mxu0 0.0
          %1278 = vmatpush2.msra.mxu0 0.0
          %1279 = vmatprep.subr.mxu0 0.0
          %1280 = vmatpush2.msra.mxu0 0.0
          %1281 = vmatprep.subr.mxu0 0.0
          %1282 = vmatpush2.msra.mxu0 0.0
          %1283 = vmatprep.mubr.f32.mxu0 0.0
          %1284 = vmatmul.mubr.f32.gmra.mxu0 %v1210
          %v1285 = vpop.f32.mrf.mxu0
          %v1286 = vadd.f32 %v1206, %v1285
          %v1287 = vpop.f32.mrf.mxu0
          %1288 = vmatprep.mubr.f32.mxu0 0.0
          %1289 = vmatmul.mubr.f32.gmra.mxu0 %v1213
          %v1290 = vpop.f32.mrf.mxu0
          %v1291 = vadd.f32 %v1206, %v1290
          %v1292 = vpop.f32.mrf.mxu0
          %1293 = vdwg.mxu0
          %v1294 = vmax.f32 %v1286, 0.0
          %v1295 = vmax.f32 %v1291, 0.0
          %v1296 = vld [vmem:[%s13] sm:$0xff]
          %v1297 = vld [vmem:[%s13 + $0x8] sm:$0xff]
          %v1298 = vld [vmem:[%s15] sm:$0x1]
          %v1300 = vlaneseq
          %v1301 = vshrl.u32 %v1300, 7
          %v1302 = vsub.s32 0, %v1301
          %v1303 = vrot.slane %v1298, %v1302
          %vm1305 = vcmask 130048
          %v1307 = vsel %vm1305, %v1294, 0
          %v1310 = vsel %vm1305, %v1295, 0
          %1312 = vmatprep.subr.mxu0 0.0
          %1313 = vmatpush1.msra.mxu0 0.0
          %1314 = vmatprep.subr.mxu0 0.0
          %1315 = vmatpush1.msra.mxu0 0.0
          %1316 = vmatprep.subr.mxu0 0.0
          %1317 = vmatpush1.msra.mxu0 0.0
          %1318 = vmatprep.subr.mxu0 0.0
          %1319 = vmatpush1.msra.mxu0 0.0
          %1320 = vmatprep.subr.mxu0 0.0
          %1321 = vmatpush1.msra.mxu0 0.0
          %1322 = vmatprep.subr.mxu0 0.0
          %1323 = vmatpush1.msra.mxu0 0.0
          %1324 = vmatprep.subr.mxu0 0.0
          %1325 = vmatpush1.msra.mxu0 0.0
          %1326 = vmatprep.subr.mxu0 0.0
          %1327 = vmatpush1.msra.mxu0 0.0
          %1328 = vmatprep.subr.mxu0 0.0
          %1329 = vmatpush1.msra.mxu0 0.0
          %1330 = vmatprep.subr.mxu0 0.0
          %1331 = vmatpush1.msra.mxu0 0.0
          %1332 = vmatprep.subr.mxu0 0.0
          %1333 = vmatpush1.msra.mxu0 0.0
          %1334 = vmatprep.subr.mxu0 0.0
          %1335 = vmatpush1.msra.mxu0 0.0
          %1336 = vmatprep.subr.mxu0 0.0
          %1337 = vmatpush1.msra.mxu0 0.0
          %1338 = vmatprep.subr.mxu0 0.0
          %1339 = vmatpush1.msra.mxu0 0.0
          %1340 = vmatprep.subr.mxu0 0.0
          %1341 = vmatpush1.msra.mxu0 %v1297
          %1342 = vmatprep.subr.mxu0 0.0
          %1343 = vmatpush1.msra.mxu0 %v1296
          %1344 = vmatprep.subr.mxu0 0.0
          %1345 = vmatpush2.msra.mxu0 0.0
          %1346 = vmatprep.subr.mxu0 0.0
          %1347 = vmatpush2.msra.mxu0 0.0
          %1348 = vmatprep.subr.mxu0 0.0
          %1349 = vmatpush2.msra.mxu0 0.0
          %1350 = vmatprep.subr.mxu0 0.0
          %1351 = vmatpush2.msra.mxu0 0.0
          %1352 = vmatprep.subr.mxu0 0.0
          %1353 = vmatpush2.msra.mxu0 0.0
          %1354 = vmatprep.subr.mxu0 0.0
          %1355 = vmatpush2.msra.mxu0 0.0
          %1356 = vmatprep.subr.mxu0 0.0
          %1357 = vmatpush2.msra.mxu0 0.0
          %1358 = vmatprep.subr.mxu0 0.0
          %1359 = vmatpush2.msra.mxu0 0.0
          %1360 = vmatprep.subr.mxu0 0.0
          %1361 = vmatpush2.msra.mxu0 0.0
          %1362 = vmatprep.subr.mxu0 0.0
          %1363 = vmatpush2.msra.mxu0 0.0
          %1364 = vmatprep.subr.mxu0 0.0
          %1365 = vmatpush2.msra.mxu0 0.0
          %1366 = vmatprep.subr.mxu0 0.0
          %1367 = vmatpush2.msra.mxu0 0.0
          %1368 = vmatprep.subr.mxu0 0.0
          %1369 = vmatpush2.msra.mxu0 0.0
          %1370 = vmatprep.subr.mxu0 0.0
          %1371 = vmatpush2.msra.mxu0 0.0
          %1372 = vmatprep.subr.mxu0 0.0
          %1373 = vmatpush2.msra.mxu0 0.0
          %1374 = vmatprep.subr.mxu0 0.0
          %1375 = vmatpush2.msra.mxu0 0.0
          %1376 = vmatprep.mubr.f32.mxu0 0.0
          %1377 = vmatmul.mubr.f32.gmra.mxu0 %v1307
          %v1378 = vpop.f32.mrf.mxu0
          %v1379 = vadd.f32 %v1303, %v1378
          %v1380 = vpop.f32.mrf.mxu0
          %1381 = vmatprep.mubr.f32.mxu0 0.0
          %1382 = vmatmul.mubr.f32.gmra.mxu0 %v1310
          %v1383 = vpop.f32.mrf.mxu0
          %v1384 = vadd.f32 %v1303, %v1383
          %v1385 = vpop.f32.mrf.mxu0
          %1386 = vdwg.mxu0
          %v1387 = vlaneseq
          %v1388 = vshrl.u32 %v1387, 7
          %v1389 = vadd.s32 %v1388, 8
          %vm1390 = vcmp.ge.s32.totalorder %v1388, 2
          %vm1391 = vcmp.ge.s32.totalorder %v1389, 2
          %v1392 = vsel %vm1390, %v1379, 0.0
          %v1393 = vsel %vm1391, %v1384, 0.0
          %v1394 = vld [vmem:[%s3] sm:$0xff]
          %v1395 = vld [vmem:[%s3 + $0x8] sm:$0xff]
          %v1396 = vadd.f32 %v1394, %v1392
          %v1397 = vadd.f32 %v1395, %v1393
          %vm1398 = vcmask 261120
          %1399 = vst.msk [vmem:[#allocation2] sm:$0xff] %vm1398, %v1396
          %1400 = vst.msk [vmem:[#allocation2 + $0x8] sm:$0xff] %vm1398, %v1397
        $region148: #{run.1} parent=143 // pred_fallthru
          _
        %v1401 = vld [vmem:[#allocation2] sm:$0xff]
        %v1402 = vld [vmem:[#allocation2 + $0x8] sm:$0xff]
        %v1403 = vld [vmem:[%s5] sm:$0xff]
        %v1404 = vld [vmem:[%s5 + $0x8] sm:$0xff]
        %v1405 = vld [vmem:[%s1135] sm:$0xff]
        %v1406 = vld [vmem:[%s1135 + $0x8] sm:$0xff]
        %v1407 = vld [vmem:[%s1135 + $0x10] sm:$0xff]
        %v1408 = vld [vmem:[%s1135 + $0x18] sm:$0xff]
        %v1409 = vld [vmem:[%s1139] sm:$0x1]
        %v1411 = vlaneseq
        %v1412 = vshrl.u32 %v1411, 7
        %v1413 = vsub.s32 0, %v1412
        %v1414 = vrot.slane %v1409, %v1413
        %vm1416 = vcmask 261120
        %v1418 = vsel %vm1416, %v1401, 0
        %v1421 = vsel %vm1416, %v1402, 0
        %1423 = vmatprep.subr.mxu0 0.0
        %1424 = vmatpush1.msra.mxu0 0.0
        %1425 = vmatprep.subr.mxu0 0.0
        %1426 = vmatpush1.msra.mxu0 0.0
        %1427 = vmatprep.subr.mxu0 0.0
        %1428 = vmatpush1.msra.mxu0 0.0
        %1429 = vmatprep.subr.mxu0 0.0
        %1430 = vmatpush1.msra.mxu0 0.0
        %1431 = vmatprep.subr.mxu0 0.0
        %1432 = vmatpush1.msra.mxu0 0.0
        %1433 = vmatprep.subr.mxu0 0.0
        %1434 = vmatpush1.msra.mxu0 0.0
        %1435 = vmatprep.subr.mxu0 0.0
        %1436 = vmatpush1.msra.mxu0 0.0
        %1437 = vmatprep.subr.mxu0 0.0
        %1438 = vmatpush1.msra.mxu0 0.0
        %1439 = vmatprep.subr.mxu0 0.0
        %1440 = vmatpush1.msra.mxu0 0.0
        %1441 = vmatprep.subr.mxu0 0.0
        %1442 = vmatpush1.msra.mxu0 0.0
        %1443 = vmatprep.subr.mxu0 0.0
        %1444 = vmatpush1.msra.mxu0 0.0
        %1445 = vmatprep.subr.mxu0 0.0
        %1446 = vmatpush1.msra.mxu0 0.0
        %1447 = vmatprep.subr.mxu0 0.0
        %1448 = vmatpush1.msra.mxu0 %v1408
        %1449 = vmatprep.subr.mxu0 0.0
        %1450 = vmatpush1.msra.mxu0 %v1407
        %1451 = vmatprep.subr.mxu0 0.0
        %1452 = vmatpush1.msra.mxu0 %v1406
        %1453 = vmatprep.subr.mxu0 0.0
        %1454 = vmatpush1.msra.mxu0 %v1405
        %1455 = vmatprep.subr.mxu0 0.0
        %1456 = vmatpush2.msra.mxu0 0.0
        %1457 = vmatprep.subr.mxu0 0.0
        %1458 = vmatpush2.msra.mxu0 0.0
        %1459 = vmatprep.subr.mxu0 0.0
        %1460 = vmatpush2.msra.mxu0 0.0
        %1461 = vmatprep.subr.mxu0 0.0
        %1462 = vmatpush2.msra.mxu0 0.0
        %1463 = vmatprep.subr.mxu0 0.0
        %1464 = vmatpush2.msra.mxu0 0.0
        %1465 = vmatprep.subr.mxu0 0.0
        %1466 = vmatpush2.msra.mxu0 0.0
        %1467 = vmatprep.subr.mxu0 0.0
        %1468 = vmatpush2.msra.mxu0 0.0
        %1469 = vmatprep.subr.mxu0 0.0
        %1470 = vmatpush2.msra.mxu0 0.0
        %1471 = vmatprep.subr.mxu0 0.0
        %1472 = vmatpush2.msra.mxu0 0.0
        %1473 = vmatprep.subr.mxu0 0.0
        %1474 = vmatpush2.msra.mxu0 0.0
        %1475 = vmatprep.subr.mxu0 0.0
        %1476 = vmatpush2.msra.mxu0 0.0
        %1477 = vmatprep.subr.mxu0 0.0
        %1478 = vmatpush2.msra.mxu0 0.0
        %1479 = vmatprep.subr.mxu0 0.0
        %1480 = vmatpush2.msra.mxu0 0.0
        %1481 = vmatprep.subr.mxu0 0.0
        %1482 = vmatpush2.msra.mxu0 0.0
        %1483 = vmatprep.subr.mxu0 0.0
        %1484 = vmatpush2.msra.mxu0 0.0
        %1485 = vmatprep.subr.mxu0 0.0
        %1486 = vmatpush2.msra.mxu0 0.0
        %1487 = vmatprep.mubr.f32.mxu0 0.0
        %1488 = vmatmul.mubr.f32.gmra.mxu0 %v1418
        %v1489 = vpop.f32.mrf.mxu0
        %v1490 = vadd.f32 %v1414, %v1489
        %v1491 = vpop.f32.mrf.mxu0
        %1492 = vmatprep.mubr.f32.mxu0 0.0
        %1493 = vmatmul.mubr.f32.gmra.mxu0 %v1421
        %v1494 = vpop.f32.mrf.mxu0
        %v1495 = vadd.f32 %v1414, %v1494
        %v1496 = vpop.f32.mrf.mxu0
        %1497 = vdwg.mxu0
        %v1498 = vmul.f32 %v1490, 0.35355338
        %v1499 = vmul.f32 %v1495, 0.35355338
        %v1500 = vld [vmem:[%s1144] sm:$0xff]
        %v1501 = vld [vmem:[%s1144 + $0x8] sm:$0xff]
        %v1502 = vld [vmem:[%s1144 + $0x10] sm:$0xff]
        %v1503 = vld [vmem:[%s1144 + $0x18] sm:$0xff]
        %v1504 = vld [vmem:[%s1148] sm:$0x1]
        %v1506 = vlaneseq
        %v1507 = vshrl.u32 %v1506, 7
        %v1508 = vsub.s32 0, %v1507
        %v1509 = vrot.slane %v1504, %v1508
        %1511 = vmatprep.subr.mxu0 0.0
        %1512 = vmatpush1.msra.mxu0 0.0
        %1513 = vmatprep.subr.mxu0 0.0
        %1514 = vmatpush1.msra.mxu0 0.0
        %1515 = vmatprep.subr.mxu0 0.0
        %1516 = vmatpush1.msra.mxu0 0.0
        %1517 = vmatprep.subr.mxu0 0.0
        %1518 = vmatpush1.msra.mxu0 0.0
        %1519 = vmatprep.subr.mxu0 0.0
        %1520 = vmatpush1.msra.mxu0 0.0
        %1521 = vmatprep.subr.mxu0 0.0
        %1522 = vmatpush1.msra.mxu0 0.0
        %1523 = vmatprep.subr.mxu0 0.0
        %1524 = vmatpush1.msra.mxu0 0.0
        %1525 = vmatprep.subr.mxu0 0.0
        %1526 = vmatpush1.msra.mxu0 0.0
        %1527 = vmatprep.subr.mxu0 0.0
        %1528 = vmatpush1.msra.mxu0 0.0
        %1529 = vmatprep.subr.mxu0 0.0
        %1530 = vmatpush1.msra.mxu0 0.0
        %1531 = vmatprep.subr.mxu0 0.0
        %1532 = vmatpush1.msra.mxu0 0.0
        %1533 = vmatprep.subr.mxu0 0.0
        %1534 = vmatpush1.msra.mxu0 0.0
        %1535 = vmatprep.subr.mxu0 0.0
        %1536 = vmatpush1.msra.mxu0 %v1503
        %1537 = vmatprep.subr.mxu0 0.0
        %1538 = vmatpush1.msra.mxu0 %v1502
        %1539 = vmatprep.subr.mxu0 0.0
        %1540 = vmatpush1.msra.mxu0 %v1501
        %1541 = vmatprep.subr.mxu0 0.0
        %1542 = vmatpush1.msra.mxu0 %v1500
        %1543 = vmatprep.subr.mxu0 0.0
        %1544 = vmatpush2.msra.mxu0 0.0
        %1545 = vmatprep.subr.mxu0 0.0
        %1546 = vmatpush2.msra.mxu0 0.0
        %1547 = vmatprep.subr.mxu0 0.0
        %1548 = vmatpush2.msra.mxu0 0.0
        %1549 = vmatprep.subr.mxu0 0.0
        %1550 = vmatpush2.msra.mxu0 0.0
        %1551 = vmatprep.subr.mxu0 0.0
        %1552 = vmatpush2.msra.mxu0 0.0
        %1553 = vmatprep.subr.mxu0 0.0
        %1554 = vmatpush2.msra.mxu0 0.0
        %1555 = vmatprep.subr.mxu0 0.0
        %1556 = vmatpush2.msra.mxu0 0.0
        %1557 = vmatprep.subr.mxu0 0.0
        %1558 = vmatpush2.msra.mxu0 0.0
        %1559 = vmatprep.subr.mxu0 0.0
        %1560 = vmatpush2.msra.mxu0 0.0
        %1561 = vmatprep.subr.mxu0 0.0
        %1562 = vmatpush2.msra.mxu0 0.0
        %1563 = vmatprep.subr.mxu0 0.0
        %1564 = vmatpush2.msra.mxu0 0.0
        %1565 = vmatprep.subr.mxu0 0.0
        %1566 = vmatpush2.msra.mxu0 0.0
        %1567 = vmatprep.subr.mxu0 0.0
        %1568 = vmatpush2.msra.mxu0 0.0
        %1569 = vmatprep.subr.mxu0 0.0
        %1570 = vmatpush2.msra.mxu0 0.0
        %1571 = vmatprep.subr.mxu0 0.0
        %1572 = vmatpush2.msra.mxu0 0.0
        %1573 = vmatprep.subr.mxu0 0.0
        %1574 = vmatpush2.msra.mxu0 0.0
        %1575 = vmatprep.mubr.f32.mxu0 0.0
        %1576 = vmatmul.mubr.f32.gmra.mxu0 %v1418
        %v1577 = vpop.f32.mrf.mxu0
        %v1578 = vadd.f32 %v1509, %v1577
        %v1579 = vpop.f32.mrf.mxu0
        %1580 = vmatprep.mubr.f32.mxu0 0.0
        %1581 = vmatmul.mubr.f32.gmra.mxu0 %v1421
        %v1582 = vpop.f32.mrf.mxu0
        %v1583 = vadd.f32 %v1509, %v1582
        %v1584 = vpop.f32.mrf.mxu0
        %1585 = vdwg.mxu0
        %v1586 = vld [vmem:[%s1153] sm:$0xff]
        %v1587 = vld [vmem:[%s1153 + $0x8] sm:$0xff]
        %v1588 = vld [vmem:[%s1153 + $0x10] sm:$0xff]
        %v1589 = vld [vmem:[%s1153 + $0x18] sm:$0xff]
        %v1590 = vld [vmem:[%s1157] sm:$0x1]
        %v1592 = vlaneseq
        %v1593 = vshrl.u32 %v1592, 7
        %v1594 = vsub.s32 0, %v1593
        %v1595 = vrot.slane %v1590, %v1594
        %1597 = vmatprep.subr.mxu0 0.0
        %1598 = vmatpush1.msra.mxu0 0.0
        %1599 = vmatprep.subr.mxu0 0.0
        %1600 = vmatpush1.msra.mxu0 0.0
        %1601 = vmatprep.subr.mxu0 0.0
        %1602 = vmatpush1.msra.mxu0 0.0
        %1603 = vmatprep.subr.mxu0 0.0
        %1604 = vmatpush1.msra.mxu0 0.0
        %1605 = vmatprep.subr.mxu0 0.0
        %1606 = vmatpush1.msra.mxu0 0.0
        %1607 = vmatprep.subr.mxu0 0.0
        %1608 = vmatpush1.msra.mxu0 0.0
        %1609 = vmatprep.subr.mxu0 0.0
        %1610 = vmatpush1.msra.mxu0 0.0
        %1611 = vmatprep.subr.mxu0 0.0
        %1612 = vmatpush1.msra.mxu0 0.0
        %1613 = vmatprep.subr.mxu0 0.0
        %1614 = vmatpush1.msra.mxu0 0.0
        %1615 = vmatprep.subr.mxu0 0.0
        %1616 = vmatpush1.msra.mxu0 0.0
        %1617 = vmatprep.subr.mxu0 0.0
        %1618 = vmatpush1.msra.mxu0 0.0
        %1619 = vmatprep.subr.mxu0 0.0
        %1620 = vmatpush1.msra.mxu0 0.0
        %1621 = vmatprep.subr.mxu0 0.0
        %1622 = vmatpush1.msra.mxu0 %v1589
        %1623 = vmatprep.subr.mxu0 0.0
        %1624 = vmatpush1.msra.mxu0 %v1588
        %1625 = vmatprep.subr.mxu0 0.0
        %1626 = vmatpush1.msra.mxu0 %v1587
        %1627 = vmatprep.subr.mxu0 0.0
        %1628 = vmatpush1.msra.mxu0 %v1586
        %1629 = vmatprep.subr.mxu0 0.0
        %1630 = vmatpush2.msra.mxu0 0.0
        %1631 = vmatprep.subr.mxu0 0.0
        %1632 = vmatpush2.msra.mxu0 0.0
        %1633 = vmatprep.subr.mxu0 0.0
        %1634 = vmatpush2.msra.mxu0 0.0
        %1635 = vmatprep.subr.mxu0 0.0
        %1636 = vmatpush2.msra.mxu0 0.0
        %1637 = vmatprep.subr.mxu0 0.0
        %1638 = vmatpush2.msra.mxu0 0.0
        %1639 = vmatprep.subr.mxu0 0.0
        %1640 = vmatpush2.msra.mxu0 0.0
        %1641 = vmatprep.subr.mxu0 0.0
        %1642 = vmatpush2.msra.mxu0 0.0
        %1643 = vmatprep.subr.mxu0 0.0
        %1644 = vmatpush2.msra.mxu0 0.0
        %1645 = vmatprep.subr.mxu0 0.0
        %1646 = vmatpush2.msra.mxu0 0.0
        %1647 = vmatprep.subr.mxu0 0.0
        %1648 = vmatpush2.msra.mxu0 0.0
        %1649 = vmatprep.subr.mxu0 0.0
        %1650 = vmatpush2.msra.mxu0 0.0
        %1651 = vmatprep.subr.mxu0 0.0
        %1652 = vmatpush2.msra.mxu0 0.0
        %1653 = vmatprep.subr.mxu0 0.0
        %1654 = vmatpush2.msra.mxu0 0.0
        %1655 = vmatprep.subr.mxu0 0.0
        %1656 = vmatpush2.msra.mxu0 0.0
        %1657 = vmatprep.subr.mxu0 0.0
        %1658 = vmatpush2.msra.mxu0 0.0
        %1659 = vmatprep.subr.mxu0 0.0
        %1660 = vmatpush2.msra.mxu0 0.0
        %1661 = vmatprep.mubr.f32.mxu0 0.0
        %1662 = vmatmul.mubr.f32.gmra.mxu0 %v1418
        %v1663 = vpop.f32.mrf.mxu0
        %v1664 = vadd.f32 %v1595, %v1663
        %v1665 = vpop.f32.mrf.mxu0
        %1666 = vmatprep.mubr.f32.mxu0 0.0
        %1667 = vmatmul.mubr.f32.gmra.mxu0 %v1421
        %v1668 = vpop.f32.mrf.mxu0
        %v1669 = vadd.f32 %v1595, %v1668
        %v1670 = vpop.f32.mrf.mxu0
        %1671 = vdwg.mxu0
        %vm1672 = vcmask 64512
        %v1674 = vsel %vm1672, %v1498, 0
        %v1677 = vsel %vm1672, %v1499, 0
        %v1680 = vsel %vm1672, %v1578, 0
        %v1683 = vsel %vm1672, %v1583, 0
        %1685 = vmatprep.subr.mxu0 0.0
        %1686 = vmatpush1.xpose.msra.mxu0 0.0
        %1687 = vmatprep.subr.mxu0 0.0
        %1688 = vmatpush1.xpose.msra.mxu0 0.0
        %1689 = vmatprep.subr.mxu0 0.0
        %1690 = vmatpush1.xpose.msra.mxu0 0.0
        %1691 = vmatprep.subr.mxu0 0.0
        %1692 = vmatpush1.xpose.msra.mxu0 0.0
        %1693 = vmatprep.subr.mxu0 0.0
        %1694 = vmatpush1.xpose.msra.mxu0 0.0
        %1695 = vmatprep.subr.mxu0 0.0
        %1696 = vmatpush1.xpose.msra.mxu0 0.0
        %1697 = vmatprep.subr.mxu0 0.0
        %1698 = vmatpush1.xpose.msra.mxu0 0.0
        %1699 = vmatprep.subr.mxu0 0.0
        %1700 = vmatpush1.xpose.msra.mxu0 0.0
        %1701 = vmatprep.subr.mxu0 0.0
        %1702 = vmatpush1.xpose.msra.mxu0 0.0
        %1703 = vmatprep.subr.mxu0 0.0
        %1704 = vmatpush1.xpose.msra.mxu0 0.0
        %1705 = vmatprep.subr.mxu0 0.0
        %1706 = vmatpush1.xpose.msra.mxu0 0.0
        %1707 = vmatprep.subr.mxu0 0.0
        %1708 = vmatpush1.xpose.msra.mxu0 0.0
        %1709 = vmatprep.subr.mxu0 0.0
        %1710 = vmatpush1.xpose.msra.mxu0 0.0
        %1711 = vmatprep.subr.mxu0 0.0
        %1712 = vmatpush1.xpose.msra.mxu0 0.0
        %1713 = vmatprep.subr.mxu0 0.0
        %1714 = vmatpush1.xpose.msra.mxu0 %v1683
        %1715 = vmatprep.subr.mxu0 0.0
        %1716 = vmatpush1.xpose.msra.mxu0 %v1680
        %1717 = vmatprep.subr.mxu0 0.0
        %1718 = vmatpush2.xpose.msra.mxu0 0.0
        %1719 = vmatprep.subr.mxu0 0.0
        %1720 = vmatpush2.xpose.msra.mxu0 0.0
        %1721 = vmatprep.subr.mxu0 0.0
        %1722 = vmatpush2.xpose.msra.mxu0 0.0
        %1723 = vmatprep.subr.mxu0 0.0
        %1724 = vmatpush2.xpose.msra.mxu0 0.0
        %1725 = vmatprep.subr.mxu0 0.0
        %1726 = vmatpush2.xpose.msra.mxu0 0.0
        %1727 = vmatprep.subr.mxu0 0.0
        %1728 = vmatpush2.xpose.msra.mxu0 0.0
        %1729 = vmatprep.subr.mxu0 0.0
        %1730 = vmatpush2.xpose.msra.mxu0 0.0
        %1731 = vmatprep.subr.mxu0 0.0
        %1732 = vmatpush2.xpose.msra.mxu0 0.0
        %1733 = vmatprep.subr.mxu0 0.0
        %1734 = vmatpush2.xpose.msra.mxu0 0.0
        %1735 = vmatprep.subr.mxu0 0.0
        %1736 = vmatpush2.xpose.msra.mxu0 0.0
        %1737 = vmatprep.subr.mxu0 0.0
        %1738 = vmatpush2.xpose.msra.mxu0 0.0
        %1739 = vmatprep.subr.mxu0 0.0
        %1740 = vmatpush2.xpose.msra.mxu0 0.0
        %1741 = vmatprep.subr.mxu0 0.0
        %1742 = vmatpush2.xpose.msra.mxu0 0.0
        %1743 = vmatprep.subr.mxu0 0.0
        %1744 = vmatpush2.xpose.msra.mxu0 0.0
        %1745 = vmatprep.subr.mxu0 0.0
        %1746 = vmatpush2.xpose.msra.mxu0 0.0
        %1747 = vmatprep.subr.mxu0 0.0
        %1748 = vmatpush2.xpose.msra.mxu0 0.0
        %1749 = vmatprep.mubr.f32.mxu0 0.0
        %1750 = vmatmul.mubr.f32.gmra.mxu0 %v1674
        %v1751 = vpop.f32.mrf.mxu0
        %v1752 = vadd.f32 %v1403, %v1751
        %v1753 = vpop.f32.mrf.mxu0
        %1754 = vmatprep.mubr.f32.mxu0 0.0
        %1755 = vmatmul.mubr.f32.gmra.mxu0 %v1677
        %v1756 = vpop.f32.mrf.mxu0
        %v1757 = vadd.f32 %v1404, %v1756
        %v1758 = vpop.f32.mrf.mxu0
        %1759 = vdwg.mxu0
        %vm1760 = vcmask 130048
        %v1761 = vsel %vm1760, %v1752, -inf
        %1762 = vmax.xlane.f32.xlu0 %v1761
        %v1763 = vpop.xlane.xlu0 %1762
        %v1764 = vsel %vm1760, %v1757, -inf
        %1765 = vmax.xlane.f32.xlu0 %v1764
        %v1766 = vpop.xlane.xlu0 %1765
        %v1767 = vsub.f32 %v1752, %v1763
        %v1768 = vsub.f32 %v1757, %v1766
        %v1769 = vmul.f32 %v1767, 1.442695
        %v1770 = vpow.pop %v1769
        %v1771 = vmul.f32 %v1768, 1.442695
        %v1772 = vpow.pop %v1771
        %v1773 = vsel %vm1760, %v1770, 0.0
        %1774 = vadd.xlane.f32.xlu0 %v1773
        %v1775 = vpop.xlane.xlu0 %1774
        %v1776 = vsel %vm1760, %v1772, 0.0
        %1777 = vadd.xlane.f32.xlu0 %v1776
        %v1778 = vpop.xlane.xlu0 %1777
        %v1779 = vrcp.pop %v1775
        %v1780 = vrcp.pop %v1778
        %v1781 = vmul.f32 %v1770, %v1779
        %v1782 = vmul.f32 %v1772, %v1780
        %v1784 = vsel %vm1760, %v1781, 0
        %v1787 = vsel %vm1760, %v1782, 0
        %1789 = vmatprep.subr.mxu0 0.0
        %1790 = vmatpush1.msra.mxu0 0.0
        %1791 = vmatprep.subr.mxu0 0.0
        %1792 = vmatpush1.msra.mxu0 0.0
        %1793 = vmatprep.subr.mxu0 0.0
        %1794 = vmatpush1.msra.mxu0 0.0
        %1795 = vmatprep.subr.mxu0 0.0
        %1796 = vmatpush1.msra.mxu0 0.0
        %1797 = vmatprep.subr.mxu0 0.0
        %1798 = vmatpush1.msra.mxu0 0.0
        %1799 = vmatprep.subr.mxu0 0.0
        %1800 = vmatpush1.msra.mxu0 0.0
        %1801 = vmatprep.subr.mxu0 0.0
        %1802 = vmatpush1.msra.mxu0 0.0
        %1803 = vmatprep.subr.mxu0 0.0
        %1804 = vmatpush1.msra.mxu0 0.0
        %1805 = vmatprep.subr.mxu0 0.0
        %1806 = vmatpush1.msra.mxu0 0.0
        %1807 = vmatprep.subr.mxu0 0.0
        %1808 = vmatpush1.msra.mxu0 0.0
        %1809 = vmatprep.subr.mxu0 0.0
        %1810 = vmatpush1.msra.mxu0 0.0
        %1811 = vmatprep.subr.mxu0 0.0
        %1812 = vmatpush1.msra.mxu0 0.0
        %1813 = vmatprep.subr.mxu0 0.0
        %1814 = vmatpush1.msra.mxu0 0.0
        %1815 = vmatprep.subr.mxu0 0.0
        %1816 = vmatpush1.msra.mxu0 0.0
        %1817 = vmatprep.subr.mxu0 0.0
        %1818 = vmatpush1.msra.mxu0 %v1669
        %1819 = vmatprep.subr.mxu0 0.0
        %1820 = vmatpush1.msra.mxu0 %v1664
        %1821 = vmatprep.subr.mxu0 0.0
        %1822 = vmatpush2.msra.mxu0 0.0
        %1823 = vmatprep.subr.mxu0 0.0
        %1824 = vmatpush2.msra.mxu0 0.0
        %1825 = vmatprep.subr.mxu0 0.0
        %1826 = vmatpush2.msra.mxu0 0.0
        %1827 = vmatprep.subr.mxu0 0.0
        %1828 = vmatpush2.msra.mxu0 0.0
        %1829 = vmatprep.subr.mxu0 0.0
        %1830 = vmatpush2.msra.mxu0 0.0
        %1831 = vmatprep.subr.mxu0 0.0
        %1832 = vmatpush2.msra.mxu0 0.0
        %1833 = vmatprep.subr.mxu0 0.0
        %1834 = vmatpush2.msra.mxu0 0.0
        %1835 = vmatprep.subr.mxu0 0.0
        %1836 = vmatpush2.msra.mxu0 0.0
        %1837 = vmatprep.subr.mxu0 0.0
        %1838 = vmatpush2.msra.mxu0 0.0
        %1839 = vmatprep.subr.mxu0 0.0
        %1840 = vmatpush2.msra.mxu0 0.0
        %1841 = vmatprep.subr.mxu0 0.0
        %1842 = vmatpush2.msra.mxu0 0.0
        %1843 = vmatprep.subr.mxu0 0.0
        %1844 = vmatpush2.msra.mxu0 0.0
        %1845 = vmatprep.subr.mxu0 0.0
        %1846 = vmatpush2.msra.mxu0 0.0
        %1847 = vmatprep.subr.mxu0 0.0
        %1848 = vmatpush2.msra.mxu0 0.0
        %1849 = vmatprep.subr.mxu0 0.0
        %1850 = vmatpush2.msra.mxu0 0.0
        %1851 = vmatprep.subr.mxu0 0.0
        %1852 = vmatpush2.msra.mxu0 0.0
        %1853 = vmatprep.mubr.f32.mxu0 0.0
        %1854 = vmatmul.mubr.f32.gmra.mxu0 %v1784
        %v1855 = vpop.f32.mrf.mxu0
        %v1856 = vadd.f32 0.0, %v1855
        %v1857 = vpop.f32.mrf.mxu0
        %1858 = vmatprep.mubr.f32.mxu0 0.0
        %1859 = vmatmul.mubr.f32.gmra.mxu0 %v1787
        %v1860 = vpop.f32.mrf.mxu0
        %v1861 = vadd.f32 0.0, %v1860
        %v1862 = vpop.f32.mrf.mxu0
        %1863 = vdwg.mxu0
        %v1864 = vld [vmem:[%s1162] sm:$0xff]
        %s1865 = scalar_lea.vmem %s1135, 32
        %v1866 = vld [vmem:[%s1865] sm:$0xff]
        %v1867 = vld [vmem:[%s1865 + $0x8] sm:$0xff]
        %v1868 = vld [vmem:[%s1865 + $0x10] sm:$0xff]
        %v1869 = vld [vmem:[%s1865 + $0x18] sm:$0xff]
        %s1870 = scalar_lea.vmem %s1139, 1
        %v1871 = vld [vmem:[%s1870] sm:$0x1]
        %v1873 = vlaneseq
        %v1874 = vshrl.u32 %v1873, 7
        %v1875 = vsub.s32 0, %v1874
        %v1876 = vrot.slane %v1871, %v1875
        %1878 = vmatprep.subr.mxu0 0.0
        %1879 = vmatpush1.msra.mxu0 0.0
        %1880 = vmatprep.subr.mxu0 0.0
        %1881 = vmatpush1.msra.mxu0 0.0
        %1882 = vmatprep.subr.mxu0 0.0
        %1883 = vmatpush1.msra.mxu0 0.0
        %1884 = vmatprep.subr.mxu0 0.0
        %1885 = vmatpush1.msra.mxu0 0.0
        %1886 = vmatprep.subr.mxu0 0.0
        %1887 = vmatpush1.msra.mxu0 0.0
        %1888 = vmatprep.subr.mxu0 0.0
        %1889 = vmatpush1.msra.mxu0 0.0
        %1890 = vmatprep.subr.mxu0 0.0
        %1891 = vmatpush1.msra.mxu0 0.0
        %1892 = vmatprep.subr.mxu0 0.0
        %1893 = vmatpush1.msra.mxu0 0.0
        %1894 = vmatprep.subr.mxu0 0.0
        %1895 = vmatpush1.msra.mxu0 0.0
        %1896 = vmatprep.subr.mxu0 0.0
        %1897 = vmatpush1.msra.mxu0 0.0
        %1898 = vmatprep.subr.mxu0 0.0
        %1899 = vmatpush1.msra.mxu0 0.0
        %1900 = vmatprep.subr.mxu0 0.0
        %1901 = vmatpush1.msra.mxu0 0.0
        %1902 = vmatprep.subr.mxu0 0.0
        %1903 = vmatpush1.msra.mxu0 %v1869
        %1904 = vmatprep.subr.mxu0 0.0
        %1905 = vmatpush1.msra.mxu0 %v1868
        %1906 = vmatprep.subr.mxu0 0.0
        %1907 = vmatpush1.msra.mxu0 %v1867
        %1908 = vmatprep.subr.mxu0 0.0
        %1909 = vmatpush1.msra.mxu0 %v1866
        %1910 = vmatprep.subr.mxu0 0.0
        %1911 = vmatpush2.msra.mxu0 0.0
        %1912 = vmatprep.subr.mxu0 0.0
        %1913 = vmatpush2.msra.mxu0 0.0
        %1914 = vmatprep.subr.mxu0 0.0
        %1915 = vmatpush2.msra.mxu0 0.0
        %1916 = vmatprep.subr.mxu0 0.0
        %1917 = vmatpush2.msra.mxu0 0.0
        %1918 = vmatprep.subr.mxu0 0.0
        %1919 = vmatpush2.msra.mxu0 0.0
        %1920 = vmatprep.subr.mxu0 0.0
        %1921 = vmatpush2.msra.mxu0 0.0
        %1922 = vmatprep.subr.mxu0 0.0
        %1923 = vmatpush2.msra.mxu0 0.0
        %1924 = vmatprep.subr.mxu0 0.0
        %1925 = vmatpush2.msra.mxu0 0.0
        %1926 = vmatprep.subr.mxu0 0.0
        %1927 = vmatpush2.msra.mxu0 0.0
        %1928 = vmatprep.subr.mxu0 0.0
        %1929 = vmatpush2.msra.mxu0 0.0
        %1930 = vmatprep.subr.mxu0 0.0
        %1931 = vmatpush2.msra.mxu0 0.0
        %1932 = vmatprep.subr.mxu0 0.0
        %1933 = vmatpush2.msra.mxu0 0.0
        %1934 = vmatprep.subr.mxu0 0.0
        %1935 = vmatpush2.msra.mxu0 0.0
        %1936 = vmatprep.subr.mxu0 0.0
        %1937 = vmatpush2.msra.mxu0 0.0
        %1938 = vmatprep.subr.mxu0 0.0
        %1939 = vmatpush2.msra.mxu0 0.0
        %1940 = vmatprep.subr.mxu0 0.0
        %1941 = vmatpush2.msra.mxu0 0.0
        %1942 = vmatprep.mubr.f32.mxu0 0.0
        %1943 = vmatmul.mubr.f32.gmra.mxu0 %v1418
        %v1944 = vpop.f32.mrf.mxu0
        %v1945 = vadd.f32 %v1876, %v1944
        %v1946 = vpop.f32.mrf.mxu0
        %1947 = vmatprep.mubr.f32.mxu0 0.0
        %1948 = vmatmul.mubr.f32.gmra.mxu0 %v1421
        %v1949 = vpop.f32.mrf.mxu0
        %v1950 = vadd.f32 %v1876, %v1949
        %v1951 = vpop.f32.mrf.mxu0
        %1952 = vdwg.mxu0
        %v1953 = vmul.f32 %v1945, 0.35355338
        %v1954 = vmul.f32 %v1950, 0.35355338
        %s1955 = scalar_lea.vmem %s1144, 32
        %v1956 = vld [vmem:[%s1955] sm:$0xff]
        %v1957 = vld [vmem:[%s1955 + $0x8] sm:$0xff]
        %v1958 = vld [vmem:[%s1955 + $0x10] sm:$0xff]
        %v1959 = vld [vmem:[%s1955 + $0x18] sm:$0xff]
        %s1960 = scalar_lea.vmem %s1148, 1
        %v1961 = vld [vmem:[%s1960] sm:$0x1]
        %v1963 = vlaneseq
        %v1964 = vshrl.u32 %v1963, 7
        %v1965 = vsub.s32 0, %v1964
        %v1966 = vrot.slane %v1961, %v1965
        %1968 = vmatprep.subr.mxu0 0.0
        %1969 = vmatpush1.msra.mxu0 0.0
        %1970 = vmatprep.subr.mxu0 0.0
        %1971 = vmatpush1.msra.mxu0 0.0
        %1972 = vmatprep.subr.mxu0 0.0
        %1973 = vmatpush1.msra.mxu0 0.0
        %1974 = vmatprep.subr.mxu0 0.0
        %1975 = vmatpush1.msra.mxu0 0.0
        %1976 = vmatprep.subr.mxu0 0.0
        %1977 = vmatpush1.msra.mxu0 0.0
        %1978 = vmatprep.subr.mxu0 0.0
        %1979 = vmatpush1.msra.mxu0 0.0
        %1980 = vmatprep.subr.mxu0 0.0
        %1981 = vmatpush1.msra.mxu0 0.0
        %1982 = vmatprep.subr.mxu0 0.0
        %1983 = vmatpush1.msra.mxu0 0.0
        %1984 = vmatprep.subr.mxu0 0.0
        %1985 = vmatpush1.msra.mxu0 0.0
        %1986 = vmatprep.subr.mxu0 0.0
        %1987 = vmatpush1.msra.mxu0 0.0
        %1988 = vmatprep.subr.mxu0 0.0
        %1989 = vmatpush1.msra.mxu0 0.0
        %1990 = vmatprep.subr.mxu0 0.0
        %1991 = vmatpush1.msra.mxu0 0.0
        %1992 = vmatprep.subr.mxu0 0.0
        %1993 = vmatpush1.msra.mxu0 %v1959
        %1994 = vmatprep.subr.mxu0 0.0
        %1995 = vmatpush1.msra.mxu0 %v1958
        %1996 = vmatprep.subr.mxu0 0.0
        %1997 = vmatpush1.msra.mxu0 %v1957
        %1998 = vmatprep.subr.mxu0 0.0
        %1999 = vmatpush1.msra.mxu0 %v1956
        %2000 = vmatprep.subr.mxu0 0.0
        %2001 = vmatpush2.msra.mxu0 0.0
        %2002 = vmatprep.subr.mxu0 0.0
        %2003 = vmatpush2.msra.mxu0 0.0
        %2004 = vmatprep.subr.mxu0 0.0
        %2005 = vmatpush2.msra.mxu0 0.0
        %2006 = vmatprep.subr.mxu0 0.0
        %2007 = vmatpush2.msra.mxu0 0.0
        %2008 = vmatprep.subr.mxu0 0.0
        %2009 = vmatpush2.msra.mxu0 0.0
        %2010 = vmatprep.subr.mxu0 0.0
        %2011 = vmatpush2.msra.mxu0 0.0
        %2012 = vmatprep.subr.mxu0 0.0
        %2013 = vmatpush2.msra.mxu0 0.0
        %2014 = vmatprep.subr.mxu0 0.0
        %2015 = vmatpush2.msra.mxu0 0.0
        %2016 = vmatprep.subr.mxu0 0.0
        %2017 = vmatpush2.msra.mxu0 0.0
        %2018 = vmatprep.subr.mxu0 0.0
        %2019 = vmatpush2.msra.mxu0 0.0
        %2020 = vmatprep.subr.mxu0 0.0
        %2021 = vmatpush2.msra.mxu0 0.0
        %2022 = vmatprep.subr.mxu0 0.0
        %2023 = vmatpush2.msra.mxu0 0.0
        %2024 = vmatprep.subr.mxu0 0.0
        %2025 = vmatpush2.msra.mxu0 0.0
        %2026 = vmatprep.subr.mxu0 0.0
        %2027 = vmatpush2.msra.mxu0 0.0
        %2028 = vmatprep.subr.mxu0 0.0
        %2029 = vmatpush2.msra.mxu0 0.0
        %2030 = vmatprep.subr.mxu0 0.0
        %2031 = vmatpush2.msra.mxu0 0.0
        %2032 = vmatprep.mubr.f32.mxu0 0.0
        %2033 = vmatmul.mubr.f32.gmra.mxu0 %v1418
        %v2034 = vpop.f32.mrf.mxu0
        %v2035 = vadd.f32 %v1966, %v2034
        %v2036 = vpop.f32.mrf.mxu0
        %2037 = vmatprep.mubr.f32.mxu0 0.0
        %2038 = vmatmul.mubr.f32.gmra.mxu0 %v1421
        %v2039 = vpop.f32.mrf.mxu0
        %v2040 = vadd.f32 %v1966, %v2039
        %v2041 = vpop.f32.mrf.mxu0
        %2042 = vdwg.mxu0
        %s2043 = scalar_lea.vmem %s1153, 32
        %v2044 = vld [vmem:[%s2043] sm:$0xff]
        %v2045 = vld [vmem:[%s2043 + $0x8] sm:$0xff]
        %v2046 = vld [vmem:[%s2043 + $0x10] sm:$0xff]
        %v2047 = vld [vmem:[%s2043 + $0x18] sm:$0xff]
        %s2048 = scalar_lea.vmem %s1157, 1
        %v2049 = vld [vmem:[%s2048] sm:$0x1]
        %v2051 = vlaneseq
        %v2052 = vshrl.u32 %v2051, 7
        %v2053 = vsub.s32 0, %v2052
        %v2054 = vrot.slane %v2049, %v2053
        %2056 = vmatprep.subr.mxu0 0.0
        %2057 = vmatpush1.msra.mxu0 0.0
        %2058 = vmatprep.subr.mxu0 0.0
        %2059 = vmatpush1.msra.mxu0 0.0
        %2060 = vmatprep.subr.mxu0 0.0
        %2061 = vmatpush1.msra.mxu0 0.0
        %2062 = vmatprep.subr.mxu0 0.0
        %2063 = vmatpush1.msra.mxu0 0.0
        %2064 = vmatprep.subr.mxu0 0.0
        %2065 = vmatpush1.msra.mxu0 0.0
        %2066 = vmatprep.subr.mxu0 0.0
        %2067 = vmatpush1.msra.mxu0 0.0
        %2068 = vmatprep.subr.mxu0 0.0
        %2069 = vmatpush1.msra.mxu0 0.0
        %2070 = vmatprep.subr.mxu0 0.0
        %2071 = vmatpush1.msra.mxu0 0.0
        %2072 = vmatprep.subr.mxu0 0.0
        %2073 = vmatpush1.msra.mxu0 0.0
        %2074 = vmatprep.subr.mxu0 0.0
        %2075 = vmatpush1.msra.mxu0 0.0
        %2076 = vmatprep.subr.mxu0 0.0
        %2077 = vmatpush1.msra.mxu0 0.0
        %2078 = vmatprep.subr.mxu0 0.0
        %2079 = vmatpush1.msra.mxu0 0.0
        %2080 = vmatprep.subr.mxu0 0.0
        %2081 = vmatpush1.msra.mxu0 %v2047
        %2082 = vmatprep.subr.mxu0 0.0
        %2083 = vmatpush1.msra.mxu0 %v2046
        %2084 = vmatprep.subr.mxu0 0.0
        %2085 = vmatpush1.msra.mxu0 %v2045
        %2086 = vmatprep.subr.mxu0 0.0
        %2087 = vmatpush1.msra.mxu0 %v2044
        %2088 = vmatprep.subr.mxu0 0.0
        %2089 = vmatpush2.msra.mxu0 0.0
        %2090 = vmatprep.subr.mxu0 0.0
        %2091 = vmatpush2.msra.mxu0 0.0
        %2092 = vmatprep.subr.mxu0 0.0
        %2093 = vmatpush2.msra.mxu0 0.0
        %2094 = vmatprep.subr.mxu0 0.0
        %2095 = vmatpush2.msra.mxu0 0.0
        %2096 = vmatprep.subr.mxu0 0.0
        %2097 = vmatpush2.msra.mxu0 0.0
        %2098 = vmatprep.subr.mxu0 0.0
        %2099 = vmatpush2.msra.mxu0 0.0
        %2100 = vmatprep.subr.mxu0 0.0
        %2101 = vmatpush2.msra.mxu0 0.0
        %2102 = vmatprep.subr.mxu0 0.0
        %2103 = vmatpush2.msra.mxu0 0.0
        %2104 = vmatprep.subr.mxu0 0.0
        %2105 = vmatpush2.msra.mxu0 0.0
        %2106 = vmatprep.subr.mxu0 0.0
        %2107 = vmatpush2.msra.mxu0 0.0
        %2108 = vmatprep.subr.mxu0 0.0
        %2109 = vmatpush2.msra.mxu0 0.0
        %2110 = vmatprep.subr.mxu0 0.0
        %2111 = vmatpush2.msra.mxu0 0.0
        %2112 = vmatprep.subr.mxu0 0.0
        %2113 = vmatpush2.msra.mxu0 0.0
        %2114 = vmatprep.subr.mxu0 0.0
        %2115 = vmatpush2.msra.mxu0 0.0
        %2116 = vmatprep.subr.mxu0 0.0
        %2117 = vmatpush2.msra.mxu0 0.0
        %2118 = vmatprep.subr.mxu0 0.0
        %2119 = vmatpush2.msra.mxu0 0.0
        %2120 = vmatprep.mubr.f32.mxu0 0.0
        %2121 = vmatmul.mubr.f32.gmra.mxu0 %v1418
        %v2122 = vpop.f32.mrf.mxu0
        %v2123 = vadd.f32 %v2054, %v2122
        %v2124 = vpop.f32.mrf.mxu0
        %2125 = vmatprep.mubr.f32.mxu0 0.0
        %2126 = vmatmul.mubr.f32.gmra.mxu0 %v1421
        %v2127 = vpop.f32.mrf.mxu0
        %v2128 = vadd.f32 %v2054, %v2127
        %v2129 = vpop.f32.mrf.mxu0
        %2130 = vdwg.mxu0
        %v2132 = vsel %vm1672, %v1953, 0
        %v2135 = vsel %vm1672, %v1954, 0
        %v2138 = vsel %vm1672, %v2035, 0
        %v2141 = vsel %vm1672, %v2040, 0
        %2143 = vmatprep.subr.mxu0 0.0
        %2144 = vmatpush1.xpose.msra.mxu0 0.0
        %2145 = vmatprep.subr.mxu0 0.0
        %2146 = vmatpush1.xpose.msra.mxu0 0.0
        %2147 = vmatprep.subr.mxu0 0.0
        %2148 = vmatpush1.xpose.msra.mxu0 0.0
        %2149 = vmatprep.subr.mxu0 0.0
        %2150 = vmatpush1.xpose.msra.mxu0 0.0
        %2151 = vmatprep.subr.mxu0 0.0
        %2152 = vmatpush1.xpose.msra.mxu0 0.0
        %2153 = vmatprep.subr.mxu0 0.0
        %2154 = vmatpush1.xpose.msra.mxu0 0.0
        %2155 = vmatprep.subr.mxu0 0.0
        %2156 = vmatpush1.xpose.msra.mxu0 0.0
        %2157 = vmatprep.subr.mxu0 0.0
        %2158 = vmatpush1.xpose.msra.mxu0 0.0
        %2159 = vmatprep.subr.mxu0 0.0
        %2160 = vmatpush1.xpose.msra.mxu0 0.0
        %2161 = vmatprep.subr.mxu0 0.0
        %2162 = vmatpush1.xpose.msra.mxu0 0.0
        %2163 = vmatprep.subr.mxu0 0.0
        %2164 = vmatpush1.xpose.msra.mxu0 0.0
        %2165 = vmatprep.subr.mxu0 0.0
        %2166 = vmatpush1.xpose.msra.mxu0 0.0
        %2167 = vmatprep.subr.mxu0 0.0
        %2168 = vmatpush1.xpose.msra.mxu0 0.0
        %2169 = vmatprep.subr.mxu0 0.0
        %2170 = vmatpush1.xpose.msra.mxu0 0.0
        %2171 = vmatprep.subr.mxu0 0.0
        %2172 = vmatpush1.xpose.msra.mxu0 %v2141
        %2173 = vmatprep.subr.mxu0 0.0
        %2174 = vmatpush1.xpose.msra.mxu0 %v2138
        %2175 = vmatprep.subr.mxu0 0.0
        %2176 = vmatpush2.xpose.msra.mxu0 0.0
        %2177 = vmatprep.subr.mxu0 0.0
        %2178 = vmatpush2.xpose.msra.mxu0 0.0
        %2179 = vmatprep.subr.mxu0 0.0
        %2180 = vmatpush2.xpose.msra.mxu0 0.0
        %2181 = vmatprep.subr.mxu0 0.0
        %2182 = vmatpush2.xpose.msra.mxu0 0.0
        %2183 = vmatprep.subr.mxu0 0.0
        %2184 = vmatpush2.xpose.msra.mxu0 0.0
        %2185 = vmatprep.subr.mxu0 0.0
        %2186 = vmatpush2.xpose.msra.mxu0 0.0
        %2187 = vmatprep.subr.mxu0 0.0
        %2188 = vmatpush2.xpose.msra.mxu0 0.0
        %2189 = vmatprep.subr.mxu0 0.0
        %2190 = vmatpush2.xpose.msra.mxu0 0.0
        %2191 = vmatprep.subr.mxu0 0.0
        %2192 = vmatpush2.xpose.msra.mxu0 0.0
        %2193 = vmatprep.subr.mxu0 0.0
        %2194 = vmatpush2.xpose.msra.mxu0 0.0
        %2195 = vmatprep.subr.mxu0 0.0
        %2196 = vmatpush2.xpose.msra.mxu0 0.0
        %2197 = vmatprep.subr.mxu0 0.0
        %2198 = vmatpush2.xpose.msra.mxu0 0.0
        %2199 = vmatprep.subr.mxu0 0.0
        %2200 = vmatpush2.xpose.msra.mxu0 0.0
        %2201 = vmatprep.subr.mxu0 0.0
        %2202 = vmatpush2.xpose.msra.mxu0 0.0
        %2203 = vmatprep.subr.mxu0 0.0
        %2204 = vmatpush2.xpose.msra.mxu0 0.0
        %2205 = vmatprep.subr.mxu0 0.0
        %2206 = vmatpush2.xpose.msra.mxu0 0.0
        %2207 = vmatprep.mubr.f32.mxu0 0.0
        %2208 = vmatmul.mubr.f32.gmra.mxu0 %v2132
        %v2209 = vpop.f32.mrf.mxu0
        %v2210 = vadd.f32 %v1403, %v2209
        %v2211 = vpop.f32.mrf.mxu0
        %2212 = vmatprep.mubr.f32.mxu0 0.0
        %2213 = vmatmul.mubr.f32.gmra.mxu0 %v2135
        %v2214 = vpop.f32.mrf.mxu0
        %v2215 = vadd.f32 %v1404, %v2214
        %v2216 = vpop.f32.mrf.mxu0
        %2217 = vdwg.mxu0
        %v2218 = vsel %vm1760, %v2210, -inf
        %2219 = vmax.xlane.f32.xlu0 %v2218
        %v2220 = vpop.xlane.xlu0 %2219
        %v2221 = vsel %vm1760, %v2215, -inf
        %2222 = vmax.xlane.f32.xlu0 %v2221
        %v2223 = vpop.xlane.xlu0 %2222
        %v2224 = vsub.f32 %v2210, %v2220
        %v2225 = vsub.f32 %v2215, %v2223
        %v2226 = vmul.f32 %v2224, 1.442695
        %v2227 = vpow.pop %v2226
        %v2228 = vmul.f32 %v2225, 1.442695
        %v2229 = vpow.pop %v2228
        %v2230 = vsel %vm1760, %v2227, 0.0
        %2231 = vadd.xlane.f32.xlu0 %v2230
        %v2232 = vpop.xlane.xlu0 %2231
        %v2233 = vsel %vm1760, %v2229, 0.0
        %2234 = vadd.xlane.f32.xlu0 %v2233
        %v2235 = vpop.xlane.xlu0 %2234
        %v2236 = vrcp.pop %v2232
        %v2237 = vrcp.pop %v2235
        %v2238 = vmul.f32 %v2227, %v2236
        %v2239 = vmul.f32 %v2229, %v2237
        %v2241 = vsel %vm1760, %v2238, 0
        %v2244 = vsel %vm1760, %v2239, 0
        %2246 = vmatprep.subr.mxu0 0.0
        %2247 = vmatpush1.msra.mxu0 0.0
        %2248 = vmatprep.subr.mxu0 0.0
        %2249 = vmatpush1.msra.mxu0 0.0
        %2250 = vmatprep.subr.mxu0 0.0
        %2251 = vmatpush1.msra.mxu0 0.0
        %2252 = vmatprep.subr.mxu0 0.0
        %2253 = vmatpush1.msra.mxu0 0.0
        %2254 = vmatprep.subr.mxu0 0.0
        %2255 = vmatpush1.msra.mxu0 0.0
        %2256 = vmatprep.subr.mxu0 0.0
        %2257 = vmatpush1.msra.mxu0 0.0
        %2258 = vmatprep.subr.mxu0 0.0
        %2259 = vmatpush1.msra.mxu0 0.0
        %2260 = vmatprep.subr.mxu0 0.0
        %2261 = vmatpush1.msra.mxu0 0.0
        %2262 = vmatprep.subr.mxu0 0.0
        %2263 = vmatpush1.msra.mxu0 0.0
        %2264 = vmatprep.subr.mxu0 0.0
        %2265 = vmatpush1.msra.mxu0 0.0
        %2266 = vmatprep.subr.mxu0 0.0
        %2267 = vmatpush1.msra.mxu0 0.0
        %2268 = vmatprep.subr.mxu0 0.0
        %2269 = vmatpush1.msra.mxu0 0.0
        %2270 = vmatprep.subr.mxu0 0.0
        %2271 = vmatpush1.msra.mxu0 0.0
        %2272 = vmatprep.subr.mxu0 0.0
        %2273 = vmatpush1.msra.mxu0 0.0
        %2274 = vmatprep.subr.mxu0 0.0
        %2275 = vmatpush1.msra.mxu0 %v2128
        %2276 = vmatprep.subr.mxu0 0.0
        %2277 = vmatpush1.msra.mxu0 %v2123
        %2278 = vmatprep.subr.mxu0 0.0
        %2279 = vmatpush2.msra.mxu0 0.0
        %2280 = vmatprep.subr.mxu0 0.0
        %2281 = vmatpush2.msra.mxu0 0.0
        %2282 = vmatprep.subr.mxu0 0.0
        %2283 = vmatpush2.msra.mxu0 0.0
        %2284 = vmatprep.subr.mxu0 0.0
        %2285 = vmatpush2.msra.mxu0 0.0
        %2286 = vmatprep.subr.mxu0 0.0
        %2287 = vmatpush2.msra.mxu0 0.0
        %2288 = vmatprep.subr.mxu0 0.0
        %2289 = vmatpush2.msra.mxu0 0.0
        %2290 = vmatprep.subr.mxu0 0.0
        %2291 = vmatpush2.msra.mxu0 0.0
        %2292 = vmatprep.subr.mxu0 0.0
        %2293 = vmatpush2.msra.mxu0 0.0
        %2294 = vmatprep.subr.mxu0 0.0
        %2295 = vmatpush2.msra.mxu0 0.0
        %2296 = vmatprep.subr.mxu0 0.0
        %2297 = vmatpush2.msra.mxu0 0.0
        %2298 = vmatprep.subr.mxu0 0.0
        %2299 = vmatpush2.msra.mxu0 0.0
        %2300 = vmatprep.subr.mxu0 0.0
        %2301 = vmatpush2.msra.mxu0 0.0
        %2302 = vmatprep.subr.mxu0 0.0
        %2303 = vmatpush2.msra.mxu0 0.0
        %2304 = vmatprep.subr.mxu0 0.0
        %2305 = vmatpush2.msra.mxu0 0.0
        %2306 = vmatprep.subr.mxu0 0.0
        %2307 = vmatpush2.msra.mxu0 0.0
        %2308 = vmatprep.subr.mxu0 0.0
        %2309 = vmatpush2.msra.mxu0 0.0
        %2310 = vmatprep.mubr.f32.mxu0 0.0
        %2311 = vmatmul.mubr.f32.gmra.mxu0 %v2241
        %v2312 = vpop.f32.mrf.mxu0
        %v2313 = vadd.f32 0.0, %v2312
        %v2314 = vpop.f32.mrf.mxu0
        %2315 = vmatprep.mubr.f32.mxu0 0.0
        %2316 = vmatmul.mubr.f32.gmra.mxu0 %v2244
        %v2317 = vpop.f32.mrf.mxu0
        %v2318 = vadd.f32 0.0, %v2317
        %v2319 = vpop.f32.mrf.mxu0
        %2320 = vdwg.mxu0
        %s2321 = scalar_lea.vmem %s1162, 8
        %v2322 = vld [vmem:[%s2321] sm:$0xff]
        %v2324 = vsel %vm1672, %v2313, 0
        %v2327 = vsel %vm1672, %v2318, 0
        %2329 = vmatprep.subr.mxu0 0.0
        %2330 = vmatpush1.msra.mxu0 0.0
        %2331 = vmatprep.subr.mxu0 0.0
        %2332 = vmatpush1.msra.mxu0 0.0
        %2333 = vmatprep.subr.mxu0 0.0
        %2334 = vmatpush1.msra.mxu0 0.0
        %2335 = vmatprep.subr.mxu0 0.0
        %2336 = vmatpush1.msra.mxu0 0.0
        %2337 = vmatprep.subr.mxu0 0.0
        %2338 = vmatpush1.msra.mxu0 0.0
        %2339 = vmatprep.subr.mxu0 0.0
        %2340 = vmatpush1.msra.mxu0 0.0
        %2341 = vmatprep.subr.mxu0 0.0
        %2342 = vmatpush1.msra.mxu0 0.0
        %2343 = vmatprep.subr.mxu0 0.0
        %2344 = vmatpush1.msra.mxu0 0.0
        %2345 = vmatprep.subr.mxu0 0.0
        %2346 = vmatpush1.msra.mxu0 0.0
        %2347 = vmatprep.subr.mxu0 0.0
        %2348 = vmatpush1.msra.mxu0 0.0
        %2349 = vmatprep.subr.mxu0 0.0
        %2350 = vmatpush1.msra.mxu0 0.0
        %2351 = vmatprep.subr.mxu0 0.0
        %2352 = vmatpush1.msra.mxu0 0.0
        %2353 = vmatprep.subr.mxu0 0.0
        %2354 = vmatpush1.msra.mxu0 0.0
        %2355 = vmatprep.subr.mxu0 0.0
        %2356 = vmatpush1.msra.mxu0 0.0
        %2357 = vmatprep.subr.mxu0 0.0
        %2358 = vmatpush1.msra.mxu0 0.0
        %2359 = vmatprep.subr.mxu0 0.0
        %2360 = vmatpush1.msra.mxu0 %v2322
        %2361 = vmatprep.subr.mxu0 0.0
        %2362 = vmatpush2.msra.mxu0 0.0
        %2363 = vmatprep.subr.mxu0 0.0
        %2364 = vmatpush2.msra.mxu0 0.0
        %2365 = vmatprep.subr.mxu0 0.0
        %2366 = vmatpush2.msra.mxu0 0.0
        %2367 = vmatprep.subr.mxu0 0.0
        %2368 = vmatpush2.msra.mxu0 0.0
        %2369 = vmatprep.subr.mxu0 0.0
        %2370 = vmatpush2.msra.mxu0 0.0
        %2371 = vmatprep.subr.mxu0 0.0
        %2372 = vmatpush2.msra.mxu0 0.0
        %2373 = vmatprep.subr.mxu0 0.0
        %2374 = vmatpush2.msra.mxu0 0.0
        %2375 = vmatprep.subr.mxu0 0.0
        %2376 = vmatpush2.msra.mxu0 0.0
        %2377 = vmatprep.subr.mxu0 0.0
        %2378 = vmatpush2.msra.mxu0 0.0
        %2379 = vmatprep.subr.mxu0 0.0
        %2380 = vmatpush2.msra.mxu0 0.0
        %2381 = vmatprep.subr.mxu0 0.0
        %2382 = vmatpush2.msra.mxu0 0.0
        %2383 = vmatprep.subr.mxu0 0.0
        %2384 = vmatpush2.msra.mxu0 0.0
        %2385 = vmatprep.subr.mxu0 0.0
        %2386 = vmatpush2.msra.mxu0 0.0
        %2387 = vmatprep.subr.mxu0 0.0
        %2388 = vmatpush2.msra.mxu0 0.0
        %2389 = vmatprep.subr.mxu0 0.0
        %2390 = vmatpush2.msra.mxu0 0.0
        %2391 = vmatprep.subr.mxu0 0.0
        %2392 = vmatpush2.msra.mxu0 0.0
        %2393 = vmatprep.mubr.f32.mxu0 0.0
        %2394 = vmatmul.mubr.f32.gmra.mxu0 %v2324
        %v2395 = vpop.f32.mrf.mxu0
        %v2396 = vadd.f32 0.0, %v2395
        %v2397 = vpop.f32.mrf.mxu0
        %2398 = vmatprep.mubr.f32.mxu0 0.0
        %2399 = vmatmul.mubr.f32.gmra.mxu0 %v2327
        %v2400 = vpop.f32.mrf.mxu0
        %v2401 = vadd.f32 0.0, %v2400
        %v2402 = vpop.f32.mrf.mxu0
        %2403 = vdwg.mxu0
        %v2405 = vsel %vm1672, %v1856, 0
        %v2408 = vsel %vm1672, %v1861, 0
        %2410 = vmatprep.subr.mxu0 0.0
        %2411 = vmatpush1.msra.mxu0 0.0
        %2412 = vmatprep.subr.mxu0 0.0
        %2413 = vmatpush1.msra.mxu0 0.0
        %2414 = vmatprep.subr.mxu0 0.0
        %2415 = vmatpush1.msra.mxu0 0.0
        %2416 = vmatprep.subr.mxu0 0.0
        %2417 = vmatpush1.msra.mxu0 0.0
        %2418 = vmatprep.subr.mxu0 0.0
        %2419 = vmatpush1.msra.mxu0 0.0
        %2420 = vmatprep.subr.mxu0 0.0
        %2421 = vmatpush1.msra.mxu0 0.0
        %2422 = vmatprep.subr.mxu0 0.0
        %2423 = vmatpush1.msra.mxu0 0.0
        %2424 = vmatprep.subr.mxu0 0.0
        %2425 = vmatpush1.msra.mxu0 0.0
        %2426 = vmatprep.subr.mxu0 0.0
        %2427 = vmatpush1.msra.mxu0 0.0
        %2428 = vmatprep.subr.mxu0 0.0
        %2429 = vmatpush1.msra.mxu0 0.0
        %2430 = vmatprep.subr.mxu0 0.0
        %2431 = vmatpush1.msra.mxu0 0.0
        %2432 = vmatprep.subr.mxu0 0.0
        %2433 = vmatpush1.msra.mxu0 0.0
        %2434 = vmatprep.subr.mxu0 0.0
        %2435 = vmatpush1.msra.mxu0 0.0
        %2436 = vmatprep.subr.mxu0 0.0
        %2437 = vmatpush1.msra.mxu0 0.0
        %2438 = vmatprep.subr.mxu0 0.0
        %2439 = vmatpush1.msra.mxu0 0.0
        %2440 = vmatprep.subr.mxu0 0.0
        %2441 = vmatpush1.msra.mxu0 %v1864
        %2442 = vmatprep.subr.mxu0 0.0
        %2443 = vmatpush2.msra.mxu0 0.0
        %2444 = vmatprep.subr.mxu0 0.0
        %2445 = vmatpush2.msra.mxu0 0.0
        %2446 = vmatprep.subr.mxu0 0.0
        %2447 = vmatpush2.msra.mxu0 0.0
        %2448 = vmatprep.subr.mxu0 0.0
        %2449 = vmatpush2.msra.mxu0 0.0
        %2450 = vmatprep.subr.mxu0 0.0
        %2451 = vmatpush2.msra.mxu0 0.0
        %2452 = vmatprep.subr.mxu0 0.0
        %2453 = vmatpush2.msra.mxu0 0.0
        %2454 = vmatprep.subr.mxu0 0.0
        %2455 = vmatpush2.msra.mxu0 0.0
        %2456 = vmatprep.subr.mxu0 0.0
        %2457 = vmatpush2.msra.mxu0 0.0
        %2458 = vmatprep.subr.mxu0 0.0
        %2459 = vmatpush2.msra.mxu0 0.0
        %2460 = vmatprep.subr.mxu0 0.0
        %2461 = vmatpush2.msra.mxu0 0.0
        %2462 = vmatprep.subr.mxu0 0.0
        %2463 = vmatpush2.msra.mxu0 0.0
        %2464 = vmatprep.subr.mxu0 0.0
        %2465 = vmatpush2.msra.mxu0 0.0
        %2466 = vmatprep.subr.mxu0 0.0
        %2467 = vmatpush2.msra.mxu0 0.0
        %2468 = vmatprep.subr.mxu0 0.0
        %2469 = vmatpush2.msra.mxu0 0.0
        %2470 = vmatprep.subr.mxu0 0.0
        %2471 = vmatpush2.msra.mxu0 0.0
        %2472 = vmatprep.subr.mxu0 0.0
        %2473 = vmatpush2.msra.mxu0 0.0
        %2474 = vmatprep.mubr.f32.mxu0 0.0
        %2475 = vmatmul.mubr.f32.gmra.mxu0 %v2405
        %v2476 = vpop.f32.mrf.mxu0
        %v2477 = vadd.f32 %v2396, %v2476
        %v2478 = vpop.f32.mrf.mxu0
        %2479 = vmatprep.mubr.f32.mxu0 0.0
        %2480 = vmatmul.mubr.f32.gmra.mxu0 %v2408
        %v2481 = vpop.f32.mrf.mxu0
        %v2482 = vadd.f32 %v2401, %v2481
        %v2483 = vpop.f32.mrf.mxu0
        %2484 = vdwg.mxu0
        %s2485 = scalar_lea.vmem %s1135, 64
        %v2486 = vld [vmem:[%s2485] sm:$0xff]
        %v2487 = vld [vmem:[%s2485 + $0x8] sm:$0xff]
        %v2488 = vld [vmem:[%s2485 + $0x10] sm:$0xff]
        %v2489 = vld [vmem:[%s2485 + $0x18] sm:$0xff]
        %s2490 = scalar_lea.vmem %s1139, 2
        %v2491 = vld [vmem:[%s2490] sm:$0x1]
        %v2493 = vlaneseq
        %v2494 = vshrl.u32 %v2493, 7
        %v2495 = vsub.s32 0, %v2494
        %v2496 = vrot.slane %v2491, %v2495
        %2498 = vmatprep.subr.mxu0 0.0
        %2499 = vmatpush1.msra.mxu0 0.0
        %2500 = vmatprep.subr.mxu0 0.0
        %2501 = vmatpush1.msra.mxu0 0.0
        %2502 = vmatprep.subr.mxu0 0.0
        %2503 = vmatpush1.msra.mxu0 0.0
        %2504 = vmatprep.subr.mxu0 0.0
        %2505 = vmatpush1.msra.mxu0 0.0
        %2506 = vmatprep.subr.mxu0 0.0
        %2507 = vmatpush1.msra.mxu0 0.0
        %2508 = vmatprep.subr.mxu0 0.0
        %2509 = vmatpush1.msra.mxu0 0.0
        %2510 = vmatprep.subr.mxu0 0.0
        %2511 = vmatpush1.msra.mxu0 0.0
        %2512 = vmatprep.subr.mxu0 0.0
        %2513 = vmatpush1.msra.mxu0 0.0
        %2514 = vmatprep.subr.mxu0 0.0
        %2515 = vmatpush1.msra.mxu0 0.0
        %2516 = vmatprep.subr.mxu0 0.0
        %2517 = vmatpush1.msra.mxu0 0.0
        %2518 = vmatprep.subr.mxu0 0.0
        %2519 = vmatpush1.msra.mxu0 0.0
        %2520 = vmatprep.subr.mxu0 0.0
        %2521 = vmatpush1.msra.mxu0 0.0
        %2522 = vmatprep.subr.mxu0 0.0
        %2523 = vmatpush1.msra.mxu0 %v2489
        %2524 = vmatprep.subr.mxu0 0.0
        %2525 = vmatpush1.msra.mxu0 %v2488
        %2526 = vmatprep.subr.mxu0 0.0
        %2527 = vmatpush1.msra.mxu0 %v2487
        %2528 = vmatprep.subr.mxu0 0.0
        %2529 = vmatpush1.msra.mxu0 %v2486
        %2530 = vmatprep.subr.mxu0 0.0
        %2531 = vmatpush2.msra.mxu0 0.0
        %2532 = vmatprep.subr.mxu0 0.0
        %2533 = vmatpush2.msra.mxu0 0.0
        %2534 = vmatprep.subr.mxu0 0.0
        %2535 = vmatpush2.msra.mxu0 0.0
        %2536 = vmatprep.subr.mxu0 0.0
        %2537 = vmatpush2.msra.mxu0 0.0
        %2538 = vmatprep.subr.mxu0 0.0
        %2539 = vmatpush2.msra.mxu0 0.0
        %2540 = vmatprep.subr.mxu0 0.0
        %2541 = vmatpush2.msra.mxu0 0.0
        %2542 = vmatprep.subr.mxu0 0.0
        %2543 = vmatpush2.msra.mxu0 0.0
        %2544 = vmatprep.subr.mxu0 0.0
        %2545 = vmatpush2.msra.mxu0 0.0
        %2546 = vmatprep.subr.mxu0 0.0
        %2547 = vmatpush2.msra.mxu0 0.0
        %2548 = vmatprep.subr.mxu0 0.0
        %2549 = vmatpush2.msra.mxu0 0.0
        %2550 = vmatprep.subr.mxu0 0.0
        %2551 = vmatpush2.msra.mxu0 0.0
        %2552 = vmatprep.subr.mxu0 0.0
        %2553 = vmatpush2.msra.mxu0 0.0
        %2554 = vmatprep.subr.mxu0 0.0
        %2555 = vmatpush2.msra.mxu0 0.0
        %2556 = vmatprep.subr.mxu0 0.0
        %2557 = vmatpush2.msra.mxu0 0.0
        %2558 = vmatprep.subr.mxu0 0.0
        %2559 = vmatpush2.msra.mxu0 0.0
        %2560 = vmatprep.subr.mxu0 0.0
        %2561 = vmatpush2.msra.mxu0 0.0
        %2562 = vmatprep.mubr.f32.mxu0 0.0
        %2563 = vmatmul.mubr.f32.gmra.mxu0 %v1418
        %v2564 = vpop.f32.mrf.mxu0
        %v2565 = vadd.f32 %v2496, %v2564
        %v2566 = vpop.f32.mrf.mxu0
        %2567 = vmatprep.mubr.f32.mxu0 0.0
        %2568 = vmatmul.mubr.f32.gmra.mxu0 %v1421
        %v2569 = vpop.f32.mrf.mxu0
        %v2570 = vadd.f32 %v2496, %v2569
        %v2571 = vpop.f32.mrf.mxu0
        %2572 = vdwg.mxu0
        %v2573 = vmul.f32 %v2565, 0.35355338
        %v2574 = vmul.f32 %v2570, 0.35355338
        %s2575 = scalar_lea.vmem %s1144, 64
        %v2576 = vld [vmem:[%s2575] sm:$0xff]
        %v2577 = vld [vmem:[%s2575 + $0x8] sm:$0xff]
        %v2578 = vld [vmem:[%s2575 + $0x10] sm:$0xff]
        %v2579 = vld [vmem:[%s2575 + $0x18] sm:$0xff]
        %s2580 = scalar_lea.vmem %s1148, 2
        %v2581 = vld [vmem:[%s2580] sm:$0x1]
        %v2583 = vlaneseq
        %v2584 = vshrl.u32 %v2583, 7
        %v2585 = vsub.s32 0, %v2584
        %v2586 = vrot.slane %v2581, %v2585
        %2588 = vmatprep.subr.mxu0 0.0
        %2589 = vmatpush1.msra.mxu0 0.0
        %2590 = vmatprep.subr.mxu0 0.0
        %2591 = vmatpush1.msra.mxu0 0.0
        %2592 = vmatprep.subr.mxu0 0.0
        %2593 = vmatpush1.msra.mxu0 0.0
        %2594 = vmatprep.subr.mxu0 0.0
        %2595 = vmatpush1.msra.mxu0 0.0
        %2596 = vmatprep.subr.mxu0 0.0
        %2597 = vmatpush1.msra.mxu0 0.0
        %2598 = vmatprep.subr.mxu0 0.0
        %2599 = vmatpush1.msra.mxu0 0.0
        %2600 = vmatprep.subr.mxu0 0.0
        %2601 = vmatpush1.msra.mxu0 0.0
        %2602 = vmatprep.subr.mxu0 0.0
        %2603 = vmatpush1.msra.mxu0 0.0
        %2604 = vmatprep.subr.mxu0 0.0
        %2605 = vmatpush1.msra.mxu0 0.0
        %2606 = vmatprep.subr.mxu0 0.0
        %2607 = vmatpush1.msra.mxu0 0.0
        %2608 = vmatprep.subr.mxu0 0.0
        %2609 = vmatpush1.msra.mxu0 0.0
        %2610 = vmatprep.subr.mxu0 0.0
        %2611 = vmatpush1.msra.mxu0 0.0
        %2612 = vmatprep.subr.mxu0 0.0
        %2613 = vmatpush1.msra.mxu0 %v2579
        %2614 = vmatprep.subr.mxu0 0.0
        %2615 = vmatpush1.msra.mxu0 %v2578
        %2616 = vmatprep.subr.mxu0 0.0
        %2617 = vmatpush1.msra.mxu0 %v2577
        %2618 = vmatprep.subr.mxu0 0.0
        %2619 = vmatpush1.msra.mxu0 %v2576
        %2620 = vmatprep.subr.mxu0 0.0
        %2621 = vmatpush2.msra.mxu0 0.0
        %2622 = vmatprep.subr.mxu0 0.0
        %2623 = vmatpush2.msra.mxu0 0.0
        %2624 = vmatprep.subr.mxu0 0.0
        %2625 = vmatpush2.msra.mxu0 0.0
        %2626 = vmatprep.subr.mxu0 0.0
        %2627 = vmatpush2.msra.mxu0 0.0
        %2628 = vmatprep.subr.mxu0 0.0
        %2629 = vmatpush2.msra.mxu0 0.0
        %2630 = vmatprep.subr.mxu0 0.0
        %2631 = vmatpush2.msra.mxu0 0.0
        %2632 = vmatprep.subr.mxu0 0.0
        %2633 = vmatpush2.msra.mxu0 0.0
        %2634 = vmatprep.subr.mxu0 0.0
        %2635 = vmatpush2.msra.mxu0 0.0
        %2636 = vmatprep.subr.mxu0 0.0
        %2637 = vmatpush2.msra.mxu0 0.0
        %2638 = vmatprep.subr.mxu0 0.0
        %2639 = vmatpush2.msra.mxu0 0.0
        %2640 = vmatprep.subr.mxu0 0.0
        %2641 = vmatpush2.msra.mxu0 0.0
        %2642 = vmatprep.subr.mxu0 0.0
        %2643 = vmatpush2.msra.mxu0 0.0
        %2644 = vmatprep.subr.mxu0 0.0
        %2645 = vmatpush2.msra.mxu0 0.0
        %2646 = vmatprep.subr.mxu0 0.0
        %2647 = vmatpush2.msra.mxu0 0.0
        %2648 = vmatprep.subr.mxu0 0.0
        %2649 = vmatpush2.msra.mxu0 0.0
        %2650 = vmatprep.subr.mxu0 0.0
        %2651 = vmatpush2.msra.mxu0 0.0
        %2652 = vmatprep.mubr.f32.mxu0 0.0
        %2653 = vmatmul.mubr.f32.gmra.mxu0 %v1418
        %v2654 = vpop.f32.mrf.mxu0
        %v2655 = vadd.f32 %v2586, %v2654
        %v2656 = vpop.f32.mrf.mxu0
        %2657 = vmatprep.mubr.f32.mxu0 0.0
        %2658 = vmatmul.mubr.f32.gmra.mxu0 %v1421
        %v2659 = vpop.f32.mrf.mxu0
        %v2660 = vadd.f32 %v2586, %v2659
        %v2661 = vpop.f32.mrf.mxu0
        %2662 = vdwg.mxu0
        %s2663 = scalar_lea.vmem %s1153, 64
        %v2664 = vld [vmem:[%s2663] sm:$0xff]
        %v2665 = vld [vmem:[%s2663 + $0x8] sm:$0xff]
        %v2666 = vld [vmem:[%s2663 + $0x10] sm:$0xff]
        %v2667 = vld [vmem:[%s2663 + $0x18] sm:$0xff]
        %s2668 = scalar_lea.vmem %s1157, 2
        %v2669 = vld [vmem:[%s2668] sm:$0x1]
        %v2671 = vlaneseq
        %v2672 = vshrl.u32 %v2671, 7
        %v2673 = vsub.s32 0, %v2672
        %v2674 = vrot.slane %v2669, %v2673
        %2676 = vmatprep.subr.mxu0 0.0
        %2677 = vmatpush1.msra.mxu0 0.0
        %2678 = vmatprep.subr.mxu0 0.0
        %2679 = vmatpush1.msra.mxu0 0.0
        %2680 = vmatprep.subr.mxu0 0.0
        %2681 = vmatpush1.msra.mxu0 0.0
        %2682 = vmatprep.subr.mxu0 0.0
        %2683 = vmatpush1.msra.mxu0 0.0
        %2684 = vmatprep.subr.mxu0 0.0
        %2685 = vmatpush1.msra.mxu0 0.0
        %2686 = vmatprep.subr.mxu0 0.0
        %2687 = vmatpush1.msra.mxu0 0.0
        %2688 = vmatprep.subr.mxu0 0.0
        %2689 = vmatpush1.msra.mxu0 0.0
        %2690 = vmatprep.subr.mxu0 0.0
        %2691 = vmatpush1.msra.mxu0 0.0
        %2692 = vmatprep.subr.mxu0 0.0
        %2693 = vmatpush1.msra.mxu0 0.0
        %2694 = vmatprep.subr.mxu0 0.0
        %2695 = vmatpush1.msra.mxu0 0.0
        %2696 = vmatprep.subr.mxu0 0.0
        %2697 = vmatpush1.msra.mxu0 0.0
        %2698 = vmatprep.subr.mxu0 0.0
        %2699 = vmatpush1.msra.mxu0 0.0
        %2700 = vmatprep.subr.mxu0 0.0
        %2701 = vmatpush1.msra.mxu0 %v2667
        %2702 = vmatprep.subr.mxu0 0.0
        %2703 = vmatpush1.msra.mxu0 %v2666
        %2704 = vmatprep.subr.mxu0 0.0
        %2705 = vmatpush1.msra.mxu0 %v2665
        %2706 = vmatprep.subr.mxu0 0.0
        %2707 = vmatpush1.msra.mxu0 %v2664
        %2708 = vmatprep.subr.mxu0 0.0
        %2709 = vmatpush2.msra.mxu0 0.0
        %2710 = vmatprep.subr.mxu0 0.0
        %2711 = vmatpush2.msra.mxu0 0.0
        %2712 = vmatprep.subr.mxu0 0.0
        %2713 = vmatpush2.msra.mxu0 0.0
        %2714 = vmatprep.subr.mxu0 0.0
        %2715 = vmatpush2.msra.mxu0 0.0
        %2716 = vmatprep.subr.mxu0 0.0
        %2717 = vmatpush2.msra.mxu0 0.0
        %2718 = vmatprep.subr.mxu0 0.0
        %2719 = vmatpush2.msra.mxu0 0.0
        %2720 = vmatprep.subr.mxu0 0.0
        %2721 = vmatpush2.msra.mxu0 0.0
        %2722 = vmatprep.subr.mxu0 0.0
        %2723 = vmatpush2.msra.mxu0 0.0
        %2724 = vmatprep.subr.mxu0 0.0
        %2725 = vmatpush2.msra.mxu0 0.0
        %2726 = vmatprep.subr.mxu0 0.0
        %2727 = vmatpush2.msra.mxu0 0.0
        %2728 = vmatprep.subr.mxu0 0.0
        %2729 = vmatpush2.msra.mxu0 0.0
        %2730 = vmatprep.subr.mxu0 0.0
        %2731 = vmatpush2.msra.mxu0 0.0
        %2732 = vmatprep.subr.mxu0 0.0
        %2733 = vmatpush2.msra.mxu0 0.0
        %2734 = vmatprep.subr.mxu0 0.0
        %2735 = vmatpush2.msra.mxu0 0.0
        %2736 = vmatprep.subr.mxu0 0.0
        %2737 = vmatpush2.msra.mxu0 0.0
        %2738 = vmatprep.subr.mxu0 0.0
        %2739 = vmatpush2.msra.mxu0 0.0
        %2740 = vmatprep.mubr.f32.mxu0 0.0
        %2741 = vmatmul.mubr.f32.gmra.mxu0 %v1418
        %v2742 = vpop.f32.mrf.mxu0
        %v2743 = vadd.f32 %v2674, %v2742
        %v2744 = vpop.f32.mrf.mxu0
        %2745 = vmatprep.mubr.f32.mxu0 0.0
        %2746 = vmatmul.mubr.f32.gmra.mxu0 %v1421
        %v2747 = vpop.f32.mrf.mxu0
        %v2748 = vadd.f32 %v2674, %v2747
        %v2749 = vpop.f32.mrf.mxu0
        %2750 = vdwg.mxu0
        %v2752 = vsel %vm1672, %v2573, 0
        %v2755 = vsel %vm1672, %v2574, 0
        %v2758 = vsel %vm1672, %v2655, 0
        %v2761 = vsel %vm1672, %v2660, 0
        %2763 = vmatprep.subr.mxu0 0.0
        %2764 = vmatpush1.xpose.msra.mxu0 0.0
        %2765 = vmatprep.subr.mxu0 0.0
        %2766 = vmatpush1.xpose.msra.mxu0 0.0
        %2767 = vmatprep.subr.mxu0 0.0
        %2768 = vmatpush1.xpose.msra.mxu0 0.0
        %2769 = vmatprep.subr.mxu0 0.0
        %2770 = vmatpush1.xpose.msra.mxu0 0.0
        %2771 = vmatprep.subr.mxu0 0.0
        %2772 = vmatpush1.xpose.msra.mxu0 0.0
        %2773 = vmatprep.subr.mxu0 0.0
        %2774 = vmatpush1.xpose.msra.mxu0 0.0
        %2775 = vmatprep.subr.mxu0 0.0
        %2776 = vmatpush1.xpose.msra.mxu0 0.0
        %2777 = vmatprep.subr.mxu0 0.0
        %2778 = vmatpush1.xpose.msra.mxu0 0.0
        %2779 = vmatprep.subr.mxu0 0.0
        %2780 = vmatpush1.xpose.msra.mxu0 0.0
        %2781 = vmatprep.subr.mxu0 0.0
        %2782 = vmatpush1.xpose.msra.mxu0 0.0
        %2783 = vmatprep.subr.mxu0 0.0
        %2784 = vmatpush1.xpose.msra.mxu0 0.0
        %2785 = vmatprep.subr.mxu0 0.0
        %2786 = vmatpush1.xpose.msra.mxu0 0.0
        %2787 = vmatprep.subr.mxu0 0.0
        %2788 = vmatpush1.xpose.msra.mxu0 0.0
        %2789 = vmatprep.subr.mxu0 0.0
        %2790 = vmatpush1.xpose.msra.mxu0 0.0
        %2791 = vmatprep.subr.mxu0 0.0
        %2792 = vmatpush1.xpose.msra.mxu0 %v2761
        %2793 = vmatprep.subr.mxu0 0.0
        %2794 = vmatpush1.xpose.msra.mxu0 %v2758
        %2795 = vmatprep.subr.mxu0 0.0
        %2796 = vmatpush2.xpose.msra.mxu0 0.0
        %2797 = vmatprep.subr.mxu0 0.0
        %2798 = vmatpush2.xpose.msra.mxu0 0.0
        %2799 = vmatprep.subr.mxu0 0.0
        %2800 = vmatpush2.xpose.msra.mxu0 0.0
        %2801 = vmatprep.subr.mxu0 0.0
        %2802 = vmatpush2.xpose.msra.mxu0 0.0
        %2803 = vmatprep.subr.mxu0 0.0
        %2804 = vmatpush2.xpose.msra.mxu0 0.0
        %2805 = vmatprep.subr.mxu0 0.0
        %2806 = vmatpush2.xpose.msra.mxu0 0.0
        %2807 = vmatprep.subr.mxu0 0.0
        %2808 = vmatpush2.xpose.msra.mxu0 0.0
        %2809 = vmatprep.subr.mxu0 0.0
        %2810 = vmatpush2.xpose.msra.mxu0 0.0
        %2811 = vmatprep.subr.mxu0 0.0
        %2812 = vmatpush2.xpose.msra.mxu0 0.0
        %2813 = vmatprep.subr.mxu0 0.0
        %2814 = vmatpush2.xpose.msra.mxu0 0.0
        %2815 = vmatprep.subr.mxu0 0.0
        %2816 = vmatpush2.xpose.msra.mxu0 0.0
        %2817 = vmatprep.subr.mxu0 0.0
        %2818 = vmatpush2.xpose.msra.mxu0 0.0
        %2819 = vmatprep.subr.mxu0 0.0
        %2820 = vmatpush2.xpose.msra.mxu0 0.0
        %2821 = vmatprep.subr.mxu0 0.0
        %2822 = vmatpush2.xpose.msra.mxu0 0.0
        %2823 = vmatprep.subr.mxu0 0.0
        %2824 = vmatpush2.xpose.msra.mxu0 0.0
        %2825 = vmatprep.subr.mxu0 0.0
        %2826 = vmatpush2.xpose.msra.mxu0 0.0
        %2827 = vmatprep.mubr.f32.mxu0 0.0
        %2828 = vmatmul.mubr.f32.gmra.mxu0 %v2752
        %v2829 = vpop.f32.mrf.mxu0
        %v2830 = vadd.f32 %v1403, %v2829
        %v2831 = vpop.f32.mrf.mxu0
        %2832 = vmatprep.mubr.f32.mxu0 0.0
        %2833 = vmatmul.mubr.f32.gmra.mxu0 %v2755
        %v2834 = vpop.f32.mrf.mxu0
        %v2835 = vadd.f32 %v1404, %v2834
        %v2836 = vpop.f32.mrf.mxu0
        %2837 = vdwg.mxu0
        %v2838 = vsel %vm1760, %v2830, -inf
        %2839 = vmax.xlane.f32.xlu0 %v2838
        %v2840 = vpop.xlane.xlu0 %2839
        %v2841 = vsel %vm1760, %v2835, -inf
        %2842 = vmax.xlane.f32.xlu0 %v2841
        %v2843 = vpop.xlane.xlu0 %2842
        %v2844 = vsub.f32 %v2830, %v2840
        %v2845 = vsub.f32 %v2835, %v2843
        %v2846 = vmul.f32 %v2844, 1.442695
        %v2847 = vpow.pop %v2846
        %v2848 = vmul.f32 %v2845, 1.442695
        %v2849 = vpow.pop %v2848
        %v2850 = vsel %vm1760, %v2847, 0.0
        %2851 = vadd.xlane.f32.xlu0 %v2850
        %v2852 = vpop.xlane.xlu0 %2851
        %v2853 = vsel %vm1760, %v2849, 0.0
        %2854 = vadd.xlane.f32.xlu0 %v2853
        %v2855 = vpop.xlane.xlu0 %2854
        %v2856 = vrcp.pop %v2852
        %v2857 = vrcp.pop %v2855
        %v2858 = vmul.f32 %v2847, %v2856
        %v2859 = vmul.f32 %v2849, %v2857
        %v2861 = vsel %vm1760, %v2858, 0
        %v2864 = vsel %vm1760, %v2859, 0
        %2866 = vmatprep.subr.mxu0 0.0
        %2867 = vmatpush1.msra.mxu0 0.0
        %2868 = vmatprep.subr.mxu0 0.0
        %2869 = vmatpush1.msra.mxu0 0.0
        %2870 = vmatprep.subr.mxu0 0.0
        %2871 = vmatpush1.msra.mxu0 0.0
        %2872 = vmatprep.subr.mxu0 0.0
        %2873 = vmatpush1.msra.mxu0 0.0
        %2874 = vmatprep.subr.mxu0 0.0
        %2875 = vmatpush1.msra.mxu0 0.0
        %2876 = vmatprep.subr.mxu0 0.0
        %2877 = vmatpush1.msra.mxu0 0.0
        %2878 = vmatprep.subr.mxu0 0.0
        %2879 = vmatpush1.msra.mxu0 0.0
        %2880 = vmatprep.subr.mxu0 0.0
        %2881 = vmatpush1.msra.mxu0 0.0
        %2882 = vmatprep.subr.mxu0 0.0
        %2883 = vmatpush1.msra.mxu0 0.0
        %2884 = vmatprep.subr.mxu0 0.0
        %2885 = vmatpush1.msra.mxu0 0.0
        %2886 = vmatprep.subr.mxu0 0.0
        %2887 = vmatpush1.msra.mxu0 0.0
        %2888 = vmatprep.subr.mxu0 0.0
        %2889 = vmatpush1.msra.mxu0 0.0
        %2890 = vmatprep.subr.mxu0 0.0
        %2891 = vmatpush1.msra.mxu0 0.0
        %2892 = vmatprep.subr.mxu0 0.0
        %2893 = vmatpush1.msra.mxu0 0.0
        %2894 = vmatprep.subr.mxu0 0.0
        %2895 = vmatpush1.msra.mxu0 %v2748
        %2896 = vmatprep.subr.mxu0 0.0
        %2897 = vmatpush1.msra.mxu0 %v2743
        %2898 = vmatprep.subr.mxu0 0.0
        %2899 = vmatpush2.msra.mxu0 0.0
        %2900 = vmatprep.subr.mxu0 0.0
        %2901 = vmatpush2.msra.mxu0 0.0
        %2902 = vmatprep.subr.mxu0 0.0
        %2903 = vmatpush2.msra.mxu0 0.0
        %2904 = vmatprep.subr.mxu0 0.0
        %2905 = vmatpush2.msra.mxu0 0.0
        %2906 = vmatprep.subr.mxu0 0.0
        %2907 = vmatpush2.msra.mxu0 0.0
        %2908 = vmatprep.subr.mxu0 0.0
        %2909 = vmatpush2.msra.mxu0 0.0
        %2910 = vmatprep.subr.mxu0 0.0
        %2911 = vmatpush2.msra.mxu0 0.0
        %2912 = vmatprep.subr.mxu0 0.0
        %2913 = vmatpush2.msra.mxu0 0.0
        %2914 = vmatprep.subr.mxu0 0.0
        %2915 = vmatpush2.msra.mxu0 0.0
        %2916 = vmatprep.subr.mxu0 0.0
        %2917 = vmatpush2.msra.mxu0 0.0
        %2918 = vmatprep.subr.mxu0 0.0
        %2919 = vmatpush2.msra.mxu0 0.0
        %2920 = vmatprep.subr.mxu0 0.0
        %2921 = vmatpush2.msra.mxu0 0.0
        %2922 = vmatprep.subr.mxu0 0.0
        %2923 = vmatpush2.msra.mxu0 0.0
        %2924 = vmatprep.subr.mxu0 0.0
        %2925 = vmatpush2.msra.mxu0 0.0
        %2926 = vmatprep.subr.mxu0 0.0
        %2927 = vmatpush2.msra.mxu0 0.0
        %2928 = vmatprep.subr.mxu0 0.0
        %2929 = vmatpush2.msra.mxu0 0.0
        %2930 = vmatprep.mubr.f32.mxu0 0.0
        %2931 = vmatmul.mubr.f32.gmra.mxu0 %v2861
        %v2932 = vpop.f32.mrf.mxu0
        %v2933 = vadd.f32 0.0, %v2932
        %v2934 = vpop.f32.mrf.mxu0
        %2935 = vmatprep.mubr.f32.mxu0 0.0
        %2936 = vmatmul.mubr.f32.gmra.mxu0 %v2864
        %v2937 = vpop.f32.mrf.mxu0
        %v2938 = vadd.f32 0.0, %v2937
        %v2939 = vpop.f32.mrf.mxu0
        %2940 = vdwg.mxu0
        %s2941 = scalar_lea.vmem %s1162, 16
        %v2942 = vld [vmem:[%s2941] sm:$0xff]
        %v2944 = vsel %vm1672, %v2933, 0
        %v2947 = vsel %vm1672, %v2938, 0
        %2949 = vmatprep.subr.mxu0 0.0
        %2950 = vmatpush1.msra.mxu0 0.0
        %2951 = vmatprep.subr.mxu0 0.0
        %2952 = vmatpush1.msra.mxu0 0.0
        %2953 = vmatprep.subr.mxu0 0.0
        %2954 = vmatpush1.msra.mxu0 0.0
        %2955 = vmatprep.subr.mxu0 0.0
        %2956 = vmatpush1.msra.mxu0 0.0
        %2957 = vmatprep.subr.mxu0 0.0
        %2958 = vmatpush1.msra.mxu0 0.0
        %2959 = vmatprep.subr.mxu0 0.0
        %2960 = vmatpush1.msra.mxu0 0.0
        %2961 = vmatprep.subr.mxu0 0.0
        %2962 = vmatpush1.msra.mxu0 0.0
        %2963 = vmatprep.subr.mxu0 0.0
        %2964 = vmatpush1.msra.mxu0 0.0
        %2965 = vmatprep.subr.mxu0 0.0
        %2966 = vmatpush1.msra.mxu0 0.0
        %2967 = vmatprep.subr.mxu0 0.0
        %2968 = vmatpush1.msra.mxu0 0.0
        %2969 = vmatprep.subr.mxu0 0.0
        %2970 = vmatpush1.msra.mxu0 0.0
        %2971 = vmatprep.subr.mxu0 0.0
        %2972 = vmatpush1.msra.mxu0 0.0
        %2973 = vmatprep.subr.mxu0 0.0
        %2974 = vmatpush1.msra.mxu0 0.0
        %2975 = vmatprep.subr.mxu0 0.0
        %2976 = vmatpush1.msra.mxu0 0.0
        %2977 = vmatprep.subr.mxu0 0.0
        %2978 = vmatpush1.msra.mxu0 0.0
        %2979 = vmatprep.subr.mxu0 0.0
        %2980 = vmatpush1.msra.mxu0 %v2942
        %2981 = vmatprep.subr.mxu0 0.0
        %2982 = vmatpush2.msra.mxu0 0.0
        %2983 = vmatprep.subr.mxu0 0.0
        %2984 = vmatpush2.msra.mxu0 0.0
        %2985 = vmatprep.subr.mxu0 0.0
        %2986 = vmatpush2.msra.mxu0 0.0
        %2987 = vmatprep.subr.mxu0 0.0
        %2988 = vmatpush2.msra.mxu0 0.0
        %2989 = vmatprep.subr.mxu0 0.0
        %2990 = vmatpush2.msra.mxu0 0.0
        %2991 = vmatprep.subr.mxu0 0.0
        %2992 = vmatpush2.msra.mxu0 0.0
        %2993 = vmatprep.subr.mxu0 0.0
        %2994 = vmatpush2.msra.mxu0 0.0
        %2995 = vmatprep.subr.mxu0 0.0
        %2996 = vmatpush2.msra.mxu0 0.0
        %2997 = vmatprep.subr.mxu0 0.0
        %2998 = vmatpush2.msra.mxu0 0.0
        %2999 = vmatprep.subr.mxu0 0.0
        %3000 = vmatpush2.msra.mxu0 0.0
        %3001 = vmatprep.subr.mxu0 0.0
        %3002 = vmatpush2.msra.mxu0 0.0
        %3003 = vmatprep.subr.mxu0 0.0
        %3004 = vmatpush2.msra.mxu0 0.0
        %3005 = vmatprep.subr.mxu0 0.0
        %3006 = vmatpush2.msra.mxu0 0.0
        %3007 = vmatprep.subr.mxu0 0.0
        %3008 = vmatpush2.msra.mxu0 0.0
        %3009 = vmatprep.subr.mxu0 0.0
        %3010 = vmatpush2.msra.mxu0 0.0
        %3011 = vmatprep.subr.mxu0 0.0
        %3012 = vmatpush2.msra.mxu0 0.0
        %3013 = vmatprep.mubr.f32.mxu0 0.0
        %3014 = vmatmul.mubr.f32.gmra.mxu0 %v2944
        %v3015 = vpop.f32.mrf.mxu0
        %v3016 = vadd.f32 0.0, %v3015
        %v3017 = vpop.f32.mrf.mxu0
        %3018 = vmatprep.mubr.f32.mxu0 0.0
        %3019 = vmatmul.mubr.f32.gmra.mxu0 %v2947
        %v3020 = vpop.f32.mrf.mxu0
        %v3021 = vadd.f32 0.0, %v3020
        %v3022 = vpop.f32.mrf.mxu0
        %3023 = vdwg.mxu0
        %v3024 = vadd.f32 %v2477, %v3016
        %v3025 = vadd.f32 %v2482, %v3021
        %s3026 = scalar_lea.vmem %s1135, 96
        %v3027 = vld [vmem:[%s3026] sm:$0xff]
        %v3028 = vld [vmem:[%s3026 + $0x8] sm:$0xff]
        %v3029 = vld [vmem:[%s3026 + $0x10] sm:$0xff]
        %v3030 = vld [vmem:[%s3026 + $0x18] sm:$0xff]
        %s3031 = scalar_lea.vmem %s1139, 3
        %v3032 = vld [vmem:[%s3031] sm:$0x1]
        %v3034 = vlaneseq
        %v3035 = vshrl.u32 %v3034, 7
        %v3036 = vsub.s32 0, %v3035
        %v3037 = vrot.slane %v3032, %v3036
        %3039 = vmatprep.subr.mxu0 0.0
        %3040 = vmatpush1.msra.mxu0 0.0
        %3041 = vmatprep.subr.mxu0 0.0
        %3042 = vmatpush1.msra.mxu0 0.0
        %3043 = vmatprep.subr.mxu0 0.0
        %3044 = vmatpush1.msra.mxu0 0.0
        %3045 = vmatprep.subr.mxu0 0.0
        %3046 = vmatpush1.msra.mxu0 0.0
        %3047 = vmatprep.subr.mxu0 0.0
        %3048 = vmatpush1.msra.mxu0 0.0
        %3049 = vmatprep.subr.mxu0 0.0
        %3050 = vmatpush1.msra.mxu0 0.0
        %3051 = vmatprep.subr.mxu0 0.0
        %3052 = vmatpush1.msra.mxu0 0.0
        %3053 = vmatprep.subr.mxu0 0.0
        %3054 = vmatpush1.msra.mxu0 0.0
        %3055 = vmatprep.subr.mxu0 0.0
        %3056 = vmatpush1.msra.mxu0 0.0
        %3057 = vmatprep.subr.mxu0 0.0
        %3058 = vmatpush1.msra.mxu0 0.0
        %3059 = vmatprep.subr.mxu0 0.0
        %3060 = vmatpush1.msra.mxu0 0.0
        %3061 = vmatprep.subr.mxu0 0.0
        %3062 = vmatpush1.msra.mxu0 0.0
        %3063 = vmatprep.subr.mxu0 0.0
        %3064 = vmatpush1.msra.mxu0 %v3030
        %3065 = vmatprep.subr.mxu0 0.0
        %3066 = vmatpush1.msra.mxu0 %v3029
        %3067 = vmatprep.subr.mxu0 0.0
        %3068 = vmatpush1.msra.mxu0 %v3028
        %3069 = vmatprep.subr.mxu0 0.0
        %3070 = vmatpush1.msra.mxu0 %v3027
        %3071 = vmatprep.subr.mxu0 0.0
        %3072 = vmatpush2.msra.mxu0 0.0
        %3073 = vmatprep.subr.mxu0 0.0
        %3074 = vmatpush2.msra.mxu0 0.0
        %3075 = vmatprep.subr.mxu0 0.0
        %3076 = vmatpush2.msra.mxu0 0.0
        %3077 = vmatprep.subr.mxu0 0.0
        %3078 = vmatpush2.msra.mxu0 0.0
        %3079 = vmatprep.subr.mxu0 0.0
        %3080 = vmatpush2.msra.mxu0 0.0
        %3081 = vmatprep.subr.mxu0 0.0
        %3082 = vmatpush2.msra.mxu0 0.0
        %3083 = vmatprep.subr.mxu0 0.0
        %3084 = vmatpush2.msra.mxu0 0.0
        %3085 = vmatprep.subr.mxu0 0.0
        %3086 = vmatpush2.msra.mxu0 0.0
        %3087 = vmatprep.subr.mxu0 0.0
        %3088 = vmatpush2.msra.mxu0 0.0
        %3089 = vmatprep.subr.mxu0 0.0
        %3090 = vmatpush2.msra.mxu0 0.0
        %3091 = vmatprep.subr.mxu0 0.0
        %3092 = vmatpush2.msra.mxu0 0.0
        %3093 = vmatprep.subr.mxu0 0.0
        %3094 = vmatpush2.msra.mxu0 0.0
        %3095 = vmatprep.subr.mxu0 0.0
        %3096 = vmatpush2.msra.mxu0 0.0
        %3097 = vmatprep.subr.mxu0 0.0
        %3098 = vmatpush2.msra.mxu0 0.0
        %3099 = vmatprep.subr.mxu0 0.0
        %3100 = vmatpush2.msra.mxu0 0.0
        %3101 = vmatprep.subr.mxu0 0.0
        %3102 = vmatpush2.msra.mxu0 0.0
        %3103 = vmatprep.mubr.f32.mxu0 0.0
        %3104 = vmatmul.mubr.f32.gmra.mxu0 %v1418
        %v3105 = vpop.f32.mrf.mxu0
        %v3106 = vadd.f32 %v3037, %v3105
        %v3107 = vpop.f32.mrf.mxu0
        %3108 = vmatprep.mubr.f32.mxu0 0.0
        %3109 = vmatmul.mubr.f32.gmra.mxu0 %v1421
        %v3110 = vpop.f32.mrf.mxu0
        %v3111 = vadd.f32 %v3037, %v3110
        %v3112 = vpop.f32.mrf.mxu0
        %3113 = vdwg.mxu0
        %v3114 = vmul.f32 %v3106, 0.35355338
        %v3115 = vmul.f32 %v3111, 0.35355338
        %s3116 = scalar_lea.vmem %s1144, 96
        %v3117 = vld [vmem:[%s3116] sm:$0xff]
        %v3118 = vld [vmem:[%s3116 + $0x8] sm:$0xff]
        %v3119 = vld [vmem:[%s3116 + $0x10] sm:$0xff]
        %v3120 = vld [vmem:[%s3116 + $0x18] sm:$0xff]
        %s3121 = scalar_lea.vmem %s1148, 3
        %v3122 = vld [vmem:[%s3121] sm:$0x1]
        %v3124 = vlaneseq
        %v3125 = vshrl.u32 %v3124, 7
        %v3126 = vsub.s32 0, %v3125
        %v3127 = vrot.slane %v3122, %v3126
        %3129 = vmatprep.subr.mxu0 0.0
        %3130 = vmatpush1.msra.mxu0 0.0
        %3131 = vmatprep.subr.mxu0 0.0
        %3132 = vmatpush1.msra.mxu0 0.0
        %3133 = vmatprep.subr.mxu0 0.0
        %3134 = vmatpush1.msra.mxu0 0.0
        %3135 = vmatprep.subr.mxu0 0.0
        %3136 = vmatpush1.msra.mxu0 0.0
        %3137 = vmatprep.subr.mxu0 0.0
        %3138 = vmatpush1.msra.mxu0 0.0
        %3139 = vmatprep.subr.mxu0 0.0
        %3140 = vmatpush1.msra.mxu0 0.0
        %3141 = vmatprep.subr.mxu0 0.0
        %3142 = vmatpush1.msra.mxu0 0.0
        %3143 = vmatprep.subr.mxu0 0.0
        %3144 = vmatpush1.msra.mxu0 0.0
        %3145 = vmatprep.subr.mxu0 0.0
        %3146 = vmatpush1.msra.mxu0 0.0
        %3147 = vmatprep.subr.mxu0 0.0
        %3148 = vmatpush1.msra.mxu0 0.0
        %3149 = vmatprep.subr.mxu0 0.0
        %3150 = vmatpush1.msra.mxu0 0.0
        %3151 = vmatprep.subr.mxu0 0.0
        %3152 = vmatpush1.msra.mxu0 0.0
        %3153 = vmatprep.subr.mxu0 0.0
        %3154 = vmatpush1.msra.mxu0 %v3120
        %3155 = vmatprep.subr.mxu0 0.0
        %3156 = vmatpush1.msra.mxu0 %v3119
        %3157 = vmatprep.subr.mxu0 0.0
        %3158 = vmatpush1.msra.mxu0 %v3118
        %3159 = vmatprep.subr.mxu0 0.0
        %3160 = vmatpush1.msra.mxu0 %v3117
        %3161 = vmatprep.subr.mxu0 0.0
        %3162 = vmatpush2.msra.mxu0 0.0
        %3163 = vmatprep.subr.mxu0 0.0
        %3164 = vmatpush2.msra.mxu0 0.0
        %3165 = vmatprep.subr.mxu0 0.0
        %3166 = vmatpush2.msra.mxu0 0.0
        %3167 = vmatprep.subr.mxu0 0.0
        %3168 = vmatpush2.msra.mxu0 0.0
        %3169 = vmatprep.subr.mxu0 0.0
        %3170 = vmatpush2.msra.mxu0 0.0
        %3171 = vmatprep.subr.mxu0 0.0
        %3172 = vmatpush2.msra.mxu0 0.0
        %3173 = vmatprep.subr.mxu0 0.0
        %3174 = vmatpush2.msra.mxu0 0.0
        %3175 = vmatprep.subr.mxu0 0.0
        %3176 = vmatpush2.msra.mxu0 0.0
        %3177 = vmatprep.subr.mxu0 0.0
        %3178 = vmatpush2.msra.mxu0 0.0
        %3179 = vmatprep.subr.mxu0 0.0
        %3180 = vmatpush2.msra.mxu0 0.0
        %3181 = vmatprep.subr.mxu0 0.0
        %3182 = vmatpush2.msra.mxu0 0.0
        %3183 = vmatprep.subr.mxu0 0.0
        %3184 = vmatpush2.msra.mxu0 0.0
        %3185 = vmatprep.subr.mxu0 0.0
        %3186 = vmatpush2.msra.mxu0 0.0
        %3187 = vmatprep.subr.mxu0 0.0
        %3188 = vmatpush2.msra.mxu0 0.0
        %3189 = vmatprep.subr.mxu0 0.0
        %3190 = vmatpush2.msra.mxu0 0.0
        %3191 = vmatprep.subr.mxu0 0.0
        %3192 = vmatpush2.msra.mxu0 0.0
        %3193 = vmatprep.mubr.f32.mxu0 0.0
        %3194 = vmatmul.mubr.f32.gmra.mxu0 %v1418
        %v3195 = vpop.f32.mrf.mxu0
        %v3196 = vadd.f32 %v3127, %v3195
        %v3197 = vpop.f32.mrf.mxu0
        %3198 = vmatprep.mubr.f32.mxu0 0.0
        %3199 = vmatmul.mubr.f32.gmra.mxu0 %v1421
        %v3200 = vpop.f32.mrf.mxu0
        %v3201 = vadd.f32 %v3127, %v3200
        %v3202 = vpop.f32.mrf.mxu0
        %3203 = vdwg.mxu0
        %s3204 = scalar_lea.vmem %s1153, 96
        %v3205 = vld [vmem:[%s3204] sm:$0xff]
        %v3206 = vld [vmem:[%s3204 + $0x8] sm:$0xff]
        %v3207 = vld [vmem:[%s3204 + $0x10] sm:$0xff]
        %v3208 = vld [vmem:[%s3204 + $0x18] sm:$0xff]
        %s3209 = scalar_lea.vmem %s1157, 3
        %v3210 = vld [vmem:[%s3209] sm:$0x1]
        %v3212 = vlaneseq
        %v3213 = vshrl.u32 %v3212, 7
        %v3214 = vsub.s32 0, %v3213
        %v3215 = vrot.slane %v3210, %v3214
        %3217 = vmatprep.subr.mxu0 0.0
        %3218 = vmatpush1.msra.mxu0 0.0
        %3219 = vmatprep.subr.mxu0 0.0
        %3220 = vmatpush1.msra.mxu0 0.0
        %3221 = vmatprep.subr.mxu0 0.0
        %3222 = vmatpush1.msra.mxu0 0.0
        %3223 = vmatprep.subr.mxu0 0.0
        %3224 = vmatpush1.msra.mxu0 0.0
        %3225 = vmatprep.subr.mxu0 0.0
        %3226 = vmatpush1.msra.mxu0 0.0
        %3227 = vmatprep.subr.mxu0 0.0
        %3228 = vmatpush1.msra.mxu0 0.0
        %3229 = vmatprep.subr.mxu0 0.0
        %3230 = vmatpush1.msra.mxu0 0.0
        %3231 = vmatprep.subr.mxu0 0.0
        %3232 = vmatpush1.msra.mxu0 0.0
        %3233 = vmatprep.subr.mxu0 0.0
        %3234 = vmatpush1.msra.mxu0 0.0
        %3235 = vmatprep.subr.mxu0 0.0
        %3236 = vmatpush1.msra.mxu0 0.0
        %3237 = vmatprep.subr.mxu0 0.0
        %3238 = vmatpush1.msra.mxu0 0.0
        %3239 = vmatprep.subr.mxu0 0.0
        %3240 = vmatpush1.msra.mxu0 0.0
        %3241 = vmatprep.subr.mxu0 0.0
        %3242 = vmatpush1.msra.mxu0 %v3208
        %3243 = vmatprep.subr.mxu0 0.0
        %3244 = vmatpush1.msra.mxu0 %v3207
        %3245 = vmatprep.subr.mxu0 0.0
        %3246 = vmatpush1.msra.mxu0 %v3206
        %3247 = vmatprep.subr.mxu0 0.0
        %3248 = vmatpush1.msra.mxu0 %v3205
        %3249 = vmatprep.subr.mxu0 0.0
        %3250 = vmatpush2.msra.mxu0 0.0
        %3251 = vmatprep.subr.mxu0 0.0
        %3252 = vmatpush2.msra.mxu0 0.0
        %3253 = vmatprep.subr.mxu0 0.0
        %3254 = vmatpush2.msra.mxu0 0.0
        %3255 = vmatprep.subr.mxu0 0.0
        %3256 = vmatpush2.msra.mxu0 0.0
        %3257 = vmatprep.subr.mxu0 0.0
        %3258 = vmatpush2.msra.mxu0 0.0
        %3259 = vmatprep.subr.mxu0 0.0
        %3260 = vmatpush2.msra.mxu0 0.0
        %3261 = vmatprep.subr.mxu0 0.0
        %3262 = vmatpush2.msra.mxu0 0.0
        %3263 = vmatprep.subr.mxu0 0.0
        %3264 = vmatpush2.msra.mxu0 0.0
        %3265 = vmatprep.subr.mxu0 0.0
        %3266 = vmatpush2.msra.mxu0 0.0
        %3267 = vmatprep.subr.mxu0 0.0
        %3268 = vmatpush2.msra.mxu0 0.0
        %3269 = vmatprep.subr.mxu0 0.0
        %3270 = vmatpush2.msra.mxu0 0.0
        %3271 = vmatprep.subr.mxu0 0.0
        %3272 = vmatpush2.msra.mxu0 0.0
        %3273 = vmatprep.subr.mxu0 0.0
        %3274 = vmatpush2.msra.mxu0 0.0
        %3275 = vmatprep.subr.mxu0 0.0
        %3276 = vmatpush2.msra.mxu0 0.0
        %3277 = vmatprep.subr.mxu0 0.0
        %3278 = vmatpush2.msra.mxu0 0.0
        %3279 = vmatprep.subr.mxu0 0.0
        %3280 = vmatpush2.msra.mxu0 0.0
        %3281 = vmatprep.mubr.f32.mxu0 0.0
        %3282 = vmatmul.mubr.f32.gmra.mxu0 %v1418
        %v3283 = vpop.f32.mrf.mxu0
        %v3284 = vadd.f32 %v3215, %v3283
        %v3285 = vpop.f32.mrf.mxu0
        %3286 = vmatprep.mubr.f32.mxu0 0.0
        %3287 = vmatmul.mubr.f32.gmra.mxu0 %v1421
        %v3288 = vpop.f32.mrf.mxu0
        %v3289 = vadd.f32 %v3215, %v3288
        %v3290 = vpop.f32.mrf.mxu0
        %3291 = vdwg.mxu0
        %v3293 = vsel %vm1672, %v3114, 0
        %v3296 = vsel %vm1672, %v3115, 0
        %v3299 = vsel %vm1672, %v3196, 0
        %v3302 = vsel %vm1672, %v3201, 0
        %3304 = vmatprep.subr.mxu0 0.0
        %3305 = vmatpush1.xpose.msra.mxu0 0.0
        %3306 = vmatprep.subr.mxu0 0.0
        %3307 = vmatpush1.xpose.msra.mxu0 0.0
        %3308 = vmatprep.subr.mxu0 0.0
        %3309 = vmatpush1.xpose.msra.mxu0 0.0
        %3310 = vmatprep.subr.mxu0 0.0
        %3311 = vmatpush1.xpose.msra.mxu0 0.0
        %3312 = vmatprep.subr.mxu0 0.0
        %3313 = vmatpush1.xpose.msra.mxu0 0.0
        %3314 = vmatprep.subr.mxu0 0.0
        %3315 = vmatpush1.xpose.msra.mxu0 0.0
        %3316 = vmatprep.subr.mxu0 0.0
        %3317 = vmatpush1.xpose.msra.mxu0 0.0
        %3318 = vmatprep.subr.mxu0 0.0
        %3319 = vmatpush1.xpose.msra.mxu0 0.0
        %3320 = vmatprep.subr.mxu0 0.0
        %3321 = vmatpush1.xpose.msra.mxu0 0.0
        %3322 = vmatprep.subr.mxu0 0.0
        %3323 = vmatpush1.xpose.msra.mxu0 0.0
        %3324 = vmatprep.subr.mxu0 0.0
        %3325 = vmatpush1.xpose.msra.mxu0 0.0
        %3326 = vmatprep.subr.mxu0 0.0
        %3327 = vmatpush1.xpose.msra.mxu0 0.0
        %3328 = vmatprep.subr.mxu0 0.0
        %3329 = vmatpush1.xpose.msra.mxu0 0.0
        %3330 = vmatprep.subr.mxu0 0.0
        %3331 = vmatpush1.xpose.msra.mxu0 0.0
        %3332 = vmatprep.subr.mxu0 0.0
        %3333 = vmatpush1.xpose.msra.mxu0 %v3302
        %3334 = vmatprep.subr.mxu0 0.0
        %3335 = vmatpush1.xpose.msra.mxu0 %v3299
        %3336 = vmatprep.subr.mxu0 0.0
        %3337 = vmatpush2.xpose.msra.mxu0 0.0
        %3338 = vmatprep.subr.mxu0 0.0
        %3339 = vmatpush2.xpose.msra.mxu0 0.0
        %3340 = vmatprep.subr.mxu0 0.0
        %3341 = vmatpush2.xpose.msra.mxu0 0.0
        %3342 = vmatprep.subr.mxu0 0.0
        %3343 = vmatpush2.xpose.msra.mxu0 0.0
        %3344 = vmatprep.subr.mxu0 0.0
        %3345 = vmatpush2.xpose.msra.mxu0 0.0
        %3346 = vmatprep.subr.mxu0 0.0
        %3347 = vmatpush2.xpose.msra.mxu0 0.0
        %3348 = vmatprep.subr.mxu0 0.0
        %3349 = vmatpush2.xpose.msra.mxu0 0.0
        %3350 = vmatprep.subr.mxu0 0.0
        %3351 = vmatpush2.xpose.msra.mxu0 0.0
        %3352 = vmatprep.subr.mxu0 0.0
        %3353 = vmatpush2.xpose.msra.mxu0 0.0
        %3354 = vmatprep.subr.mxu0 0.0
        %3355 = vmatpush2.xpose.msra.mxu0 0.0
        %3356 = vmatprep.subr.mxu0 0.0
        %3357 = vmatpush2.xpose.msra.mxu0 0.0
        %3358 = vmatprep.subr.mxu0 0.0
        %3359 = vmatpush2.xpose.msra.mxu0 0.0
        %3360 = vmatprep.subr.mxu0 0.0
        %3361 = vmatpush2.xpose.msra.mxu0 0.0
        %3362 = vmatprep.subr.mxu0 0.0
        %3363 = vmatpush2.xpose.msra.mxu0 0.0
        %3364 = vmatprep.subr.mxu0 0.0
        %3365 = vmatpush2.xpose.msra.mxu0 0.0
        %3366 = vmatprep.subr.mxu0 0.0
        %3367 = vmatpush2.xpose.msra.mxu0 0.0
        %3368 = vmatprep.mubr.f32.mxu0 0.0
        %3369 = vmatmul.mubr.f32.gmra.mxu0 %v3293
        %v3370 = vpop.f32.mrf.mxu0
        %v3371 = vadd.f32 %v1403, %v3370
        %v3372 = vpop.f32.mrf.mxu0
        %3373 = vmatprep.mubr.f32.mxu0 0.0
        %3374 = vmatmul.mubr.f32.gmra.mxu0 %v3296
        %v3375 = vpop.f32.mrf.mxu0
        %v3376 = vadd.f32 %v1404, %v3375
        %v3377 = vpop.f32.mrf.mxu0
        %3378 = vdwg.mxu0
        %v3379 = vsel %vm1760, %v3371, -inf
        %3380 = vmax.xlane.f32.xlu0 %v3379
        %v3381 = vpop.xlane.xlu0 %3380
        %v3382 = vsel %vm1760, %v3376, -inf
        %3383 = vmax.xlane.f32.xlu0 %v3382
        %v3384 = vpop.xlane.xlu0 %3383
        %v3385 = vsub.f32 %v3371, %v3381
        %v3386 = vsub.f32 %v3376, %v3384
        %v3387 = vmul.f32 %v3385, 1.442695
        %v3388 = vpow.pop %v3387
        %v3389 = vmul.f32 %v3386, 1.442695
        %v3390 = vpow.pop %v3389
        %v3391 = vsel %vm1760, %v3388, 0.0
        %3392 = vadd.xlane.f32.xlu0 %v3391
        %v3393 = vpop.xlane.xlu0 %3392
        %v3394 = vsel %vm1760, %v3390, 0.0
        %3395 = vadd.xlane.f32.xlu0 %v3394
        %v3396 = vpop.xlane.xlu0 %3395
        %v3397 = vrcp.pop %v3393
        %v3398 = vrcp.pop %v3396
        %v3399 = vmul.f32 %v3388, %v3397
        %v3400 = vmul.f32 %v3390, %v3398
        %v3402 = vsel %vm1760, %v3399, 0
        %v3405 = vsel %vm1760, %v3400, 0
        %3407 = vmatprep.subr.mxu0 0.0
        %3408 = vmatpush1.msra.mxu0 0.0
        %3409 = vmatprep.subr.mxu0 0.0
        %3410 = vmatpush1.msra.mxu0 0.0
        %3411 = vmatprep.subr.mxu0 0.0
        %3412 = vmatpush1.msra.mxu0 0.0
        %3413 = vmatprep.subr.mxu0 0.0
        %3414 = vmatpush1.msra.mxu0 0.0
        %3415 = vmatprep.subr.mxu0 0.0
        %3416 = vmatpush1.msra.mxu0 0.0
        %3417 = vmatprep.subr.mxu0 0.0
        %3418 = vmatpush1.msra.mxu0 0.0
        %3419 = vmatprep.subr.mxu0 0.0
        %3420 = vmatpush1.msra.mxu0 0.0
        %3421 = vmatprep.subr.mxu0 0.0
        %3422 = vmatpush1.msra.mxu0 0.0
        %3423 = vmatprep.subr.mxu0 0.0
        %3424 = vmatpush1.msra.mxu0 0.0
        %3425 = vmatprep.subr.mxu0 0.0
        %3426 = vmatpush1.msra.mxu0 0.0
        %3427 = vmatprep.subr.mxu0 0.0
        %3428 = vmatpush1.msra.mxu0 0.0
        %3429 = vmatprep.subr.mxu0 0.0
        %3430 = vmatpush1.msra.mxu0 0.0
        %3431 = vmatprep.subr.mxu0 0.0
        %3432 = vmatpush1.msra.mxu0 0.0
        %3433 = vmatprep.subr.mxu0 0.0
        %3434 = vmatpush1.msra.mxu0 0.0
        %3435 = vmatprep.subr.mxu0 0.0
        %3436 = vmatpush1.msra.mxu0 %v3289
        %3437 = vmatprep.subr.mxu0 0.0
        %3438 = vmatpush1.msra.mxu0 %v3284
        %3439 = vmatprep.subr.mxu0 0.0
        %3440 = vmatpush2.msra.mxu0 0.0
        %3441 = vmatprep.subr.mxu0 0.0
        %3442 = vmatpush2.msra.mxu0 0.0
        %3443 = vmatprep.subr.mxu0 0.0
        %3444 = vmatpush2.msra.mxu0 0.0
        %3445 = vmatprep.subr.mxu0 0.0
        %3446 = vmatpush2.msra.mxu0 0.0
        %3447 = vmatprep.subr.mxu0 0.0
        %3448 = vmatpush2.msra.mxu0 0.0
        %3449 = vmatprep.subr.mxu0 0.0
        %3450 = vmatpush2.msra.mxu0 0.0
        %3451 = vmatprep.subr.mxu0 0.0
        %3452 = vmatpush2.msra.mxu0 0.0
        %3453 = vmatprep.subr.mxu0 0.0
        %3454 = vmatpush2.msra.mxu0 0.0
        %3455 = vmatprep.subr.mxu0 0.0
        %3456 = vmatpush2.msra.mxu0 0.0
        %3457 = vmatprep.subr.mxu0 0.0
        %3458 = vmatpush2.msra.mxu0 0.0
        %3459 = vmatprep.subr.mxu0 0.0
        %3460 = vmatpush2.msra.mxu0 0.0
        %3461 = vmatprep.subr.mxu0 0.0
        %3462 = vmatpush2.msra.mxu0 0.0
        %3463 = vmatprep.subr.mxu0 0.0
        %3464 = vmatpush2.msra.mxu0 0.0
        %3465 = vmatprep.subr.mxu0 0.0
        %3466 = vmatpush2.msra.mxu0 0.0
        %3467 = vmatprep.subr.mxu0 0.0
        %3468 = vmatpush2.msra.mxu0 0.0
        %3469 = vmatprep.subr.mxu0 0.0
        %3470 = vmatpush2.msra.mxu0 0.0
        %3471 = vmatprep.mubr.f32.mxu0 0.0
        %3472 = vmatmul.mubr.f32.gmra.mxu0 %v3402
        %v3473 = vpop.f32.mrf.mxu0
        %v3474 = vadd.f32 0.0, %v3473
        %v3475 = vpop.f32.mrf.mxu0
        %3476 = vmatprep.mubr.f32.mxu0 0.0
        %3477 = vmatmul.mubr.f32.gmra.mxu0 %v3405
        %v3478 = vpop.f32.mrf.mxu0
        %v3479 = vadd.f32 0.0, %v3478
        %v3480 = vpop.f32.mrf.mxu0
        %3481 = vdwg.mxu0
        %s3482 = scalar_lea.vmem %s1162, 24
        %v3483 = vld [vmem:[%s3482] sm:$0xff]
        %v3485 = vsel %vm1672, %v3474, 0
        %v3488 = vsel %vm1672, %v3479, 0
        %3490 = vmatprep.subr.mxu0 0.0
        %3491 = vmatpush1.msra.mxu0 0.0
        %3492 = vmatprep.subr.mxu0 0.0
        %3493 = vmatpush1.msra.mxu0 0.0
        %3494 = vmatprep.subr.mxu0 0.0
        %3495 = vmatpush1.msra.mxu0 0.0
        %3496 = vmatprep.subr.mxu0 0.0
        %3497 = vmatpush1.msra.mxu0 0.0
        %3498 = vmatprep.subr.mxu0 0.0
        %3499 = vmatpush1.msra.mxu0 0.0
        %3500 = vmatprep.subr.mxu0 0.0
        %3501 = vmatpush1.msra.mxu0 0.0
        %3502 = vmatprep.subr.mxu0 0.0
        %3503 = vmatpush1.msra.mxu0 0.0
        %3504 = vmatprep.subr.mxu0 0.0
        %3505 = vmatpush1.msra.mxu0 0.0
        %3506 = vmatprep.subr.mxu0 0.0
        %3507 = vmatpush1.msra.mxu0 0.0
        %3508 = vmatprep.subr.mxu0 0.0
        %3509 = vmatpush1.msra.mxu0 0.0
        %3510 = vmatprep.subr.mxu0 0.0
        %3511 = vmatpush1.msra.mxu0 0.0
        %3512 = vmatprep.subr.mxu0 0.0
        %3513 = vmatpush1.msra.mxu0 0.0
        %3514 = vmatprep.subr.mxu0 0.0
        %3515 = vmatpush1.msra.mxu0 0.0
        %3516 = vmatprep.subr.mxu0 0.0
        %3517 = vmatpush1.msra.mxu0 0.0
        %3518 = vmatprep.subr.mxu0 0.0
        %3519 = vmatpush1.msra.mxu0 0.0
        %3520 = vmatprep.subr.mxu0 0.0
        %3521 = vmatpush1.msra.mxu0 %v3483
        %3522 = vmatprep.subr.mxu0 0.0
        %3523 = vmatpush2.msra.mxu0 0.0
        %3524 = vmatprep.subr.mxu0 0.0
        %3525 = vmatpush2.msra.mxu0 0.0
        %3526 = vmatprep.subr.mxu0 0.0
        %3527 = vmatpush2.msra.mxu0 0.0
        %3528 = vmatprep.subr.mxu0 0.0
        %3529 = vmatpush2.msra.mxu0 0.0
        %3530 = vmatprep.subr.mxu0 0.0
        %3531 = vmatpush2.msra.mxu0 0.0
        %3532 = vmatprep.subr.mxu0 0.0
        %3533 = vmatpush2.msra.mxu0 0.0
        %3534 = vmatprep.subr.mxu0 0.0
        %3535 = vmatpush2.msra.mxu0 0.0
        %3536 = vmatprep.subr.mxu0 0.0
        %3537 = vmatpush2.msra.mxu0 0.0
        %3538 = vmatprep.subr.mxu0 0.0
        %3539 = vmatpush2.msra.mxu0 0.0
        %3540 = vmatprep.subr.mxu0 0.0
        %3541 = vmatpush2.msra.mxu0 0.0
        %3542 = vmatprep.subr.mxu0 0.0
        %3543 = vmatpush2.msra.mxu0 0.0
        %3544 = vmatprep.subr.mxu0 0.0
        %3545 = vmatpush2.msra.mxu0 0.0
        %3546 = vmatprep.subr.mxu0 0.0
        %3547 = vmatpush2.msra.mxu0 0.0
        %3548 = vmatprep.subr.mxu0 0.0
        %3549 = vmatpush2.msra.mxu0 0.0
        %3550 = vmatprep.subr.mxu0 0.0
        %3551 = vmatpush2.msra.mxu0 0.0
        %3552 = vmatprep.subr.mxu0 0.0
        %3553 = vmatpush2.msra.mxu0 0.0
        %3554 = vmatprep.mubr.f32.mxu0 0.0
        %3555 = vmatmul.mubr.f32.gmra.mxu0 %v3485
        %v3556 = vpop.f32.mrf.mxu0
        %v3557 = vadd.f32 0.0, %v3556
        %v3558 = vpop.f32.mrf.mxu0
        %3559 = vmatprep.mubr.f32.mxu0 0.0
        %3560 = vmatmul.mubr.f32.gmra.mxu0 %v3488
        %v3561 = vpop.f32.mrf.mxu0
        %v3562 = vadd.f32 0.0, %v3561
        %v3563 = vpop.f32.mrf.mxu0
        %3564 = vdwg.mxu0
        %v3565 = vadd.f32 %v3024, %v3557
        %v3566 = vadd.f32 %v3025, %v3562
        %v3567 = vld [vmem:[%s1165] sm:$0x1]
        %v3569 = vlaneseq
        %v3570 = vshrl.u32 %v3569, 7
        %v3571 = vsub.s32 0, %v3570
        %v3572 = vrot.slane %v3567, %v3571
        %v3574 = vadd.f32 %v3565, %v3572
        %v3575 = vadd.f32 %v3566, %v3572
        %v3576 = vadd.f32 %v1401, %v3574
        %v3577 = vadd.f32 %v1402, %v3575
        %v3578 = vld [vmem:[%s1168] sm:$0x1]
        %v3579 = vld [vmem:[%s1171] sm:$0x1]
        %v3580 = vsel %vm1416, %v3576, 0.0
        %3581 = vadd.xlane.f32.xlu0 %v3580
        %v3582 = vpop.xlane.xlu0 %3581
        %v3583 = vsel %vm1416, %v3577, 0.0
        %3584 = vadd.xlane.f32.xlu0 %v3583
        %v3585 = vpop.xlane.xlu0 %3584
        %v3586 = vrcp.pop 32.0
        %v3587 = vmul.f32 %v3582, %v3586
        %v3588 = vmul.f32 %v3585, %v3586
        %v3589 = vsub.f32 %v3576, %v3587
        %v3590 = vsub.f32 %v3577, %v3588
        %v3591 = vmul.f32 %v3589, %v3589
        %v3592 = vmul.f32 %v3590, %v3590
        %v3593 = vsel %vm1416, %v3591, 0.0
        %3594 = vadd.xlane.f32.xlu0 %v3593
        %v3595 = vpop.xlane.xlu0 %3594
        %v3596 = vsel %vm1416, %v3592, 0.0
        %3597 = vadd.xlane.f32.xlu0 %v3596
        %v3598 = vpop.xlane.xlu0 %3597
        %v3599 = vmul.f32 %v3595, %v3586
        %v3600 = vmul.f32 %v3598, %v3586
        %v3601 = vadd.f32 %v3599, 1e-05
        %v3602 = vadd.f32 %v3600, 1e-05
        %v3603 = vrsqrt.pop %v3601
        %v3604 = vrsqrt.pop %v3602
        %v3605 = vmul.f32 %v3589, %v3603
        %v3606 = vmul.f32 %v3590, %v3604
        %v3608 = vlaneseq
        %v3609 = vshrl.u32 %v3608, 7
        %v3610 = vsub.s32 0, %v3609
        %v3611 = vrot.slane %v3578, %v3610
        %v3613 = vmul.f32 %v3605, %v3611
        %v3614 = vmul.f32 %v3606, %v3611
        %v3616 = vlaneseq
        %v3617 = vshrl.u32 %v3616, 7
        %v3618 = vsub.s32 0, %v3617
        %v3619 = vrot.slane %v3579, %v3618
        %v3621 = vadd.f32 %v3613, %v3619
        %v3622 = vadd.f32 %v3614, %v3619
        %v3623 = vld [vmem:[%s1176] sm:$0xff]
        %v3624 = vld [vmem:[%s1176 + $0x8] sm:$0xff]
        %v3625 = vld [vmem:[%s1176 + $0x10] sm:$0xff]
        %v3626 = vld [vmem:[%s1176 + $0x18] sm:$0xff]
        %v3627 = vld [vmem:[%s1179] sm:$0x1]
        %v3629 = vlaneseq
        %v3630 = vshrl.u32 %v3629, 7
        %v3631 = vsub.s32 0, %v3630
        %v3632 = vrot.slane %v3627, %v3631
        %v3635 = vsel %vm1416, %v3621, 0
        %v3638 = vsel %vm1416, %v3622, 0
        %3640 = vmatprep.subr.mxu0 0.0
        %3641 = vmatpush1.msra.mxu0 0.0
        %3642 = vmatprep.subr.mxu0 0.0
        %3643 = vmatpush1.msra.mxu0 0.0
        %3644 = vmatprep.subr.mxu0 0.0
        %3645 = vmatpush1.msra.mxu0 0.0
        %3646 = vmatprep.subr.mxu0 0.0
        %3647 = vmatpush1.msra.mxu0 0.0
        %3648 = vmatprep.subr.mxu0 0.0
        %3649 = vmatpush1.msra.mxu0 0.0
        %3650 = vmatprep.subr.mxu0 0.0
        %3651 = vmatpush1.msra.mxu0 0.0
        %3652 = vmatprep.subr.mxu0 0.0
        %3653 = vmatpush1.msra.mxu0 0.0
        %3654 = vmatprep.subr.mxu0 0.0
        %3655 = vmatpush1.msra.mxu0 0.0
        %3656 = vmatprep.subr.mxu0 0.0
        %3657 = vmatpush1.msra.mxu0 0.0
        %3658 = vmatprep.subr.mxu0 0.0
        %3659 = vmatpush1.msra.mxu0 0.0
        %3660 = vmatprep.subr.mxu0 0.0
        %3661 = vmatpush1.msra.mxu0 0.0
        %3662 = vmatprep.subr.mxu0 0.0
        %3663 = vmatpush1.msra.mxu0 0.0
        %3664 = vmatprep.subr.mxu0 0.0
        %3665 = vmatpush1.msra.mxu0 %v3626
        %3666 = vmatprep.subr.mxu0 0.0
        %3667 = vmatpush1.msra.mxu0 %v3625
        %3668 = vmatprep.subr.mxu0 0.0
        %3669 = vmatpush1.msra.mxu0 %v3624
        %3670 = vmatprep.subr.mxu0 0.0
        %3671 = vmatpush1.msra.mxu0 %v3623
        %3672 = vmatprep.subr.mxu0 0.0
        %3673 = vmatpush2.msra.mxu0 0.0
        %3674 = vmatprep.subr.mxu0 0.0
        %3675 = vmatpush2.msra.mxu0 0.0
        %3676 = vmatprep.subr.mxu0 0.0
        %3677 = vmatpush2.msra.mxu0 0.0
        %3678 = vmatprep.subr.mxu0 0.0
        %3679 = vmatpush2.msra.mxu0 0.0
        %3680 = vmatprep.subr.mxu0 0.0
        %3681 = vmatpush2.msra.mxu0 0.0
        %3682 = vmatprep.subr.mxu0 0.0
        %3683 = vmatpush2.msra.mxu0 0.0
        %3684 = vmatprep.subr.mxu0 0.0
        %3685 = vmatpush2.msra.mxu0 0.0
        %3686 = vmatprep.subr.mxu0 0.0
        %3687 = vmatpush2.msra.mxu0 0.0
        %3688 = vmatprep.subr.mxu0 0.0
        %3689 = vmatpush2.msra.mxu0 0.0
        %3690 = vmatprep.subr.mxu0 0.0
        %3691 = vmatpush2.msra.mxu0 0.0
        %3692 = vmatprep.subr.mxu0 0.0
        %3693 = vmatpush2.msra.mxu0 0.0
        %3694 = vmatprep.subr.mxu0 0.0
        %3695 = vmatpush2.msra.mxu0 0.0
        %3696 = vmatprep.subr.mxu0 0.0
        %3697 = vmatpush2.msra.mxu0 0.0
        %3698 = vmatprep.subr.mxu0 0.0
        %3699 = vmatpush2.msra.mxu0 0.0
        %3700 = vmatprep.subr.mxu0 0.0
        %3701 = vmatpush2.msra.mxu0 0.0
        %3702 = vmatprep.subr.mxu0 0.0
        %3703 = vmatpush2.msra.mxu0 0.0
        %3704 = vmatprep.mubr.f32.mxu0 0.0
        %3705 = vmatmul.mubr.f32.gmra.mxu0 %v3635
        %v3706 = vpop.f32.mrf.mxu0
        %v3707 = vadd.f32 %v3632, %v3706
        %v3708 = vpop.f32.mrf.mxu0
        %3709 = vmatprep.mubr.f32.mxu0 0.0
        %3710 = vmatmul.mubr.f32.gmra.mxu0 %v3638
        %v3711 = vpop.f32.mrf.mxu0
        %v3712 = vadd.f32 %v3632, %v3711
        %v3713 = vpop.f32.mrf.mxu0
        %3714 = vdwg.mxu0
        %v3715 = vmax.f32 %v3707, 0.0
        %v3716 = vmax.f32 %v3712, 0.0
        %v3717 = vld [vmem:[%s1184] sm:$0xff]
        %v3718 = vld [vmem:[%s1184 + $0x8] sm:$0xff]
        %v3719 = vld [vmem:[%s1184 + $0x10] sm:$0xff]
        %v3720 = vld [vmem:[%s1184 + $0x18] sm:$0xff]
        %v3721 = vld [vmem:[%s1184 + $0x20] sm:$0xff]
        %v3722 = vld [vmem:[%s1184 + $0x28] sm:$0xff]
        %v3723 = vld [vmem:[%s1184 + $0x30] sm:$0xff]
        %v3724 = vld [vmem:[%s1184 + $0x38] sm:$0xff]
        %v3725 = vld [vmem:[%s1187] sm:$0x1]
        %v3727 = vlaneseq
        %v3728 = vshrl.u32 %v3727, 7
        %v3729 = vsub.s32 0, %v3728
        %v3730 = vrot.slane %v3725, %v3729
        %vm3732 = vcmask 523264
        %v3734 = vsel %vm3732, %v3715, 0
        %v3737 = vsel %vm3732, %v3716, 0
        %3739 = vmatprep.subr.mxu0 0.0
        %3740 = vmatpush1.msra.mxu0 0.0
        %3741 = vmatprep.subr.mxu0 0.0
        %3742 = vmatpush1.msra.mxu0 0.0
        %3743 = vmatprep.subr.mxu0 0.0
        %3744 = vmatpush1.msra.mxu0 0.0
        %3745 = vmatprep.subr.mxu0 0.0
        %3746 = vmatpush1.msra.mxu0 0.0
        %3747 = vmatprep.subr.mxu0 0.0
        %3748 = vmatpush1.msra.mxu0 0.0
        %3749 = vmatprep.subr.mxu0 0.0
        %3750 = vmatpush1.msra.mxu0 0.0
        %3751 = vmatprep.subr.mxu0 0.0
        %3752 = vmatpush1.msra.mxu0 0.0
        %3753 = vmatprep.subr.mxu0 0.0
        %3754 = vmatpush1.msra.mxu0 0.0
        %3755 = vmatprep.subr.mxu0 0.0
        %3756 = vmatpush1.msra.mxu0 %v3724
        %3757 = vmatprep.subr.mxu0 0.0
        %3758 = vmatpush1.msra.mxu0 %v3723
        %3759 = vmatprep.subr.mxu0 0.0
        %3760 = vmatpush1.msra.mxu0 %v3722
        %3761 = vmatprep.subr.mxu0 0.0
        %3762 = vmatpush1.msra.mxu0 %v3721
        %3763 = vmatprep.subr.mxu0 0.0
        %3764 = vmatpush1.msra.mxu0 %v3720
        %3765 = vmatprep.subr.mxu0 0.0
        %3766 = vmatpush1.msra.mxu0 %v3719
        %3767 = vmatprep.subr.mxu0 0.0
        %3768 = vmatpush1.msra.mxu0 %v3718
        %3769 = vmatprep.subr.mxu0 0.0
        %3770 = vmatpush1.msra.mxu0 %v3717
        %3771 = vmatprep.subr.mxu0 0.0
        %3772 = vmatpush2.msra.mxu0 0.0
        %3773 = vmatprep.subr.mxu0 0.0
        %3774 = vmatpush2.msra.mxu0 0.0
        %3775 = vmatprep.subr.mxu0 0.0
        %3776 = vmatpush2.msra.mxu0 0.0
        %3777 = vmatprep.subr.mxu0 0.0
        %3778 = vmatpush2.msra.mxu0 0.0
        %3779 = vmatprep.subr.mxu0 0.0
        %3780 = vmatpush2.msra.mxu0 0.0
        %3781 = vmatprep.subr.mxu0 0.0
        %3782 = vmatpush2.msra.mxu0 0.0
        %3783 = vmatprep.subr.mxu0 0.0
        %3784 = vmatpush2.msra.mxu0 0.0
        %3785 = vmatprep.subr.mxu0 0.0
        %3786 = vmatpush2.msra.mxu0 0.0
        %3787 = vmatprep.subr.mxu0 0.0
        %3788 = vmatpush2.msra.mxu0 0.0
        %3789 = vmatprep.subr.mxu0 0.0
        %3790 = vmatpush2.msra.mxu0 0.0
        %3791 = vmatprep.subr.mxu0 0.0
        %3792 = vmatpush2.msra.mxu0 0.0
        %3793 = vmatprep.subr.mxu0 0.0
        %3794 = vmatpush2.msra.mxu0 0.0
        %3795 = vmatprep.subr.mxu0 0.0
        %3796 = vmatpush2.msra.mxu0 0.0
        %3797 = vmatprep.subr.mxu0 0.0
        %3798 = vmatpush2.msra.mxu0 0.0
        %3799 = vmatprep.subr.mxu0 0.0
        %3800 = vmatpush2.msra.mxu0 0.0
        %3801 = vmatprep.subr.mxu0 0.0
        %3802 = vmatpush2.msra.mxu0 0.0
        %3803 = vmatprep.mubr.f32.mxu0 0.0
        %3804 = vmatmul.mubr.f32.gmra.mxu0 %v3734
        %v3805 = vpop.f32.mrf.mxu0
        %v3806 = vadd.f32 %v3730, %v3805
        %v3807 = vpop.f32.mrf.mxu0
        %3808 = vmatprep.mubr.f32.mxu0 0.0
        %3809 = vmatmul.mubr.f32.gmra.mxu0 %v3737
        %v3810 = vpop.f32.mrf.mxu0
        %v3811 = vadd.f32 %v3730, %v3810
        %v3812 = vpop.f32.mrf.mxu0
        %3813 = vdwg.mxu0
        %v3814 = vadd.f32 %v3621, %v3806
        %v3815 = vadd.f32 %v3622, %v3811
        %v3816 = vld [vmem:[%s1190] sm:$0x1]
        %v3817 = vld [vmem:[%s1193] sm:$0x1]
        %v3818 = vsel %vm1416, %v3814, 0.0
        %3819 = vadd.xlane.f32.xlu0 %v3818
        %v3820 = vpop.xlane.xlu0 %3819
        %v3821 = vsel %vm1416, %v3815, 0.0
        %3822 = vadd.xlane.f32.xlu0 %v3821
        %v3823 = vpop.xlane.xlu0 %3822
        %v3824 = vmul.f32 %v3820, %v3586
        %v3825 = vmul.f32 %v3823, %v3586
        %v3826 = vsub.f32 %v3814, %v3824
        %v3827 = vsub.f32 %v3815, %v3825
        %v3828 = vmul.f32 %v3826, %v3826
        %v3829 = vmul.f32 %v3827, %v3827
        %v3830 = vsel %vm1416, %v3828, 0.0
        %3831 = vadd.xlane.f32.xlu0 %v3830
        %v3832 = vpop.xlane.xlu0 %3831
        %v3833 = vsel %vm1416, %v3829, 0.0
        %3834 = vadd.xlane.f32.xlu0 %v3833
        %v3835 = vpop.xlane.xlu0 %3834
        %v3836 = vmul.f32 %v3832, %v3586
        %v3837 = vmul.f32 %v3835, %v3586
        %v3838 = vadd.f32 %v3836, 1e-05
        %v3839 = vadd.f32 %v3837, 1e-05
        %v3840 = vrsqrt.pop %v3838
        %v3841 = vrsqrt.pop %v3839
        %v3842 = vmul.f32 %v3826, %v3840
        %v3843 = vmul.f32 %v3827, %v3841
        %v3845 = vlaneseq
        %v3846 = vshrl.u32 %v3845, 7
        %v3847 = vsub.s32 0, %v3846
        %v3848 = vrot.slane %v3816, %v3847
        %v3850 = vmul.f32 %v3842, %v3848
        %v3851 = vmul.f32 %v3843, %v3848
        %v3853 = vlaneseq
        %v3854 = vshrl.u32 %v3853, 7
        %v3855 = vsub.s32 0, %v3854
        %v3856 = vrot.slane %v3817, %v3855
        %v3858 = vadd.f32 %v3850, %v3856
        %v3859 = vadd.f32 %v3851, %v3856
        %3860 = vst.msk [vmem:[#allocation2] sm:$0xff] %vm1416, %v3858
        %3861 = vst.msk [vmem:[#allocation2 + $0x8] sm:$0xff] %vm1416, %v3859
        %p3862 = scmp.eq.s32.totalorder %s75, 1
        // Predicated region
        $region149: #{run.1} parent=143 // pred_check
          %p3863 = pneg %p3862
        $region150: #{run.1} parent=143 // pred_check_branch
          %3865 = sbr.rel (%p3863) target = $region152
        $region151: #{run.1} parent=143 // pred_region
          %v3866 = vld [vmem:[%s49] sm:$0x1]
          %v3867 = vld [vmem:[%s51] sm:$0x1]
          %v3868 = vsel %vm1416, %v3858, 0.0
          %3869 = vadd.xlane.f32.xlu0 %v3868
          %v3870 = vpop.xlane.xlu0 %3869
          %v3871 = vsel %vm1416, %v3859, 0.0
          %3872 = vadd.xlane.f32.xlu0 %v3871
          %v3873 = vpop.xlane.xlu0 %3872
          %v3874 = vmul.f32 %v3870, %v3586
          %v3875 = vmul.f32 %v3873, %v3586
          %v3876 = vsub.f32 %v3858, %v3874
          %v3877 = vsub.f32 %v3859, %v3875
          %v3878 = vmul.f32 %v3876, %v3876
          %v3879 = vmul.f32 %v3877, %v3877
          %v3880 = vsel %vm1416, %v3878, 0.0
          %3881 = vadd.xlane.f32.xlu0 %v3880
          %v3882 = vpop.xlane.xlu0 %3881
          %v3883 = vsel %vm1416, %v3879, 0.0
          %3884 = vadd.xlane.f32.xlu0 %v3883
          %v3885 = vpop.xlane.xlu0 %3884
          %v3886 = vmul.f32 %v3882, %v3586
          %v3887 = vmul.f32 %v3885, %v3586
          %v3888 = vadd.f32 %v3886, 1e-05
          %v3889 = vadd.f32 %v3887, 1e-05
          %v3890 = vrsqrt.pop %v3888
          %v3891 = vrsqrt.pop %v3889
          %v3892 = vmul.f32 %v3876, %v3890
          %v3893 = vmul.f32 %v3877, %v3891
          %v3895 = vlaneseq
          %v3896 = vshrl.u32 %v3895, 7
          %v3897 = vsub.s32 0, %v3896
          %v3898 = vrot.slane %v3866, %v3897
          %v3900 = vmul.f32 %v3892, %v3898
          %v3901 = vmul.f32 %v3893, %v3898
          %v3903 = vlaneseq
          %v3904 = vshrl.u32 %v3903, 7
          %v3905 = vsub.s32 0, %v3904
          %v3906 = vrot.slane %v3867, %v3905
          %v3908 = vadd.f32 %v3900, %v3906
          %v3909 = vadd.f32 %v3901, %v3906
          %v3910 = vld [vmem:[%s53] sm:$0xff]
          %v3911 = vld [vmem:[%s53 + $0x8] sm:$0xff]
          %v3912 = vld [vmem:[%s53 + $0x10] sm:$0xff]
          %v3913 = vld [vmem:[%s53 + $0x18] sm:$0xff]
          %v3914 = vld [vmem:[%s7] sm:$0xff]
          %v3915 = vld [vmem:[%s7 + $0x8] sm:$0xff]
          %v3916 = vld [vmem:[%s55] sm:$0xf]
          %vm3917 = vcmask 31744
          %v3919 = vsel %vm3917, %v3914, 0
          %v3922 = vsel %vm3917, %v3915, 0
          %vm3924 = vcmask 1043456
          %v3926 = vsel %vm3924, %v3916, 0
          %3928 = vmatprep.subr.mxu0 0.0
          %3929 = vmatpush1.msra.mxu0 0.0
          %3930 = vmatprep.subr.mxu0 0.0
          %3931 = vmatpush1.msra.mxu0 0.0
          %3932 = vmatprep.subr.mxu0 0.0
          %3933 = vmatpush1.msra.mxu0 0.0
          %3934 = vmatprep.subr.mxu0 0.0
          %3935 = vmatpush1.msra.mxu0 0.0
          %3936 = vmatprep.subr.mxu0 0.0
          %3937 = vmatpush1.msra.mxu0 0.0
          %3938 = vmatprep.subr.mxu0 0.0
          %3939 = vmatpush1.msra.mxu0 0.0
          %3940 = vmatprep.subr.mxu0 0.0
          %3941 = vmatpush1.msra.mxu0 0.0
          %3942 = vmatprep.subr.mxu0 0.0
          %3943 = vmatpush1.msra.mxu0 0.0
          %3944 = vmatprep.subr.mxu0 0.0
          %3945 = vmatpush1.msra.mxu0 0.0
          %3946 = vmatprep.subr.mxu0 0.0
          %3947 = vmatpush1.msra.mxu0 0.0
          %3948 = vmatprep.subr.mxu0 0.0
          %3949 = vmatpush1.msra.mxu0 0.0
          %3950 = vmatprep.subr.mxu0 0.0
          %3951 = vmatpush1.msra.mxu0 0.0
          %3952 = vmatprep.subr.mxu0 0.0
          %3953 = vmatpush1.msra.mxu0 0.0
          %3954 = vmatprep.subr.mxu0 0.0
          %3955 = vmatpush1.msra.mxu0 0.0
          %3956 = vmatprep.subr.mxu0 0.0
          %3957 = vmatpush1.msra.mxu0 0.0
          %3958 = vmatprep.subr.mxu0 0.0
          %3959 = vmatpush1.msra.mxu0 %v3926
          %3960 = vmatprep.subr.mxu0 0.0
          %3961 = vmatpush2.msra.mxu0 0.0
          %3962 = vmatprep.subr.mxu0 0.0
          %3963 = vmatpush2.msra.mxu0 0.0
          %3964 = vmatprep.subr.mxu0 0.0
          %3965 = vmatpush2.msra.mxu0 0.0
          %3966 = vmatprep.subr.mxu0 0.0
          %3967 = vmatpush2.msra.mxu0 0.0
          %3968 = vmatprep.subr.mxu0 0.0
          %3969 = vmatpush2.msra.mxu0 0.0
          %3970 = vmatprep.subr.mxu0 0.0
          %3971 = vmatpush2.msra.mxu0 0.0
          %3972 = vmatprep.subr.mxu0 0.0
          %3973 = vmatpush2.msra.mxu0 0.0
          %3974 = vmatprep.subr.mxu0 0.0
          %3975 = vmatpush2.msra.mxu0 0.0
          %3976 = vmatprep.subr.mxu0 0.0
          %3977 = vmatpush2.msra.mxu0 0.0
          %3978 = vmatprep.subr.mxu0 0.0
          %3979 = vmatpush2.msra.mxu0 0.0
          %3980 = vmatprep.subr.mxu0 0.0
          %3981 = vmatpush2.msra.mxu0 0.0
          %3982 = vmatprep.subr.mxu0 0.0
          %3983 = vmatpush2.msra.mxu0 0.0
          %3984 = vmatprep.subr.mxu0 0.0
          %3985 = vmatpush2.msra.mxu0 0.0
          %3986 = vmatprep.subr.mxu0 0.0
          %3987 = vmatpush2.msra.mxu0 0.0
          %3988 = vmatprep.subr.mxu0 0.0
          %3989 = vmatpush2.msra.mxu0 0.0
          %3990 = vmatprep.subr.mxu0 0.0
          %3991 = vmatpush2.msra.mxu0 0.0
          %3992 = vmatprep.mubr.f32.mxu0 0.0
          %3993 = vmatmul.mubr.f32.gmra.mxu0 %v3919
          %v3994 = vpop.f32.mrf.mxu0
          %v3995 = vadd.f32 0.0, %v3994
          %v3996 = vpop.f32.mrf.mxu0
          %3997 = vmatprep.mubr.f32.mxu0 0.0
          %3998 = vmatmul.mubr.f32.gmra.mxu0 %v3922
          %v3999 = vpop.f32.mrf.mxu0
          %v4000 = vadd.f32 0.0, %v3999
          %v4001 = vpop.f32.mrf.mxu0
          %4002 = vdwg.mxu0
          %v4004 = vsel %vm1416, %v3908, 0
          %v4007 = vsel %vm1416, %v3909, 0
          %4009 = vmatprep.subr.mxu0 0.0
          %4010 = vmatpush1.msra.mxu0 0.0
          %4011 = vmatprep.subr.mxu0 0.0
          %4012 = vmatpush1.msra.mxu0 0.0
          %4013 = vmatprep.subr.mxu0 0.0
          %4014 = vmatpush1.msra.mxu0 0.0
          %4015 = vmatprep.subr.mxu0 0.0
          %4016 = vmatpush1.msra.mxu0 0.0
          %4017 = vmatprep.subr.mxu0 0.0
          %4018 = vmatpush1.msra.mxu0 0.0
          %4019 = vmatprep.subr.mxu0 0.0
          %4020 = vmatpush1.msra.mxu0 0.0
          %4021 = vmatprep.subr.mxu0 0.0
          %4022 = vmatpush1.msra.mxu0 0.0
          %4023 = vmatprep.subr.mxu0 0.0
          %4024 = vmatpush1.msra.mxu0 0.0
          %4025 = vmatprep.subr.mxu0 0.0
          %4026 = vmatpush1.msra.mxu0 0.0
          %4027 = vmatprep.subr.mxu0 0.0
          %4028 = vmatpush1.msra.mxu0 0.0
          %4029 = vmatprep.subr.mxu0 0.0
          %4030 = vmatpush1.msra.mxu0 0.0
          %4031 = vmatprep.subr.mxu0 0.0
          %4032 = vmatpush1.msra.mxu0 0.0
          %4033 = vmatprep.subr.mxu0 0.0
          %4034 = vmatpush1.msra.mxu0 %v3913
          %4035 = vmatprep.subr.mxu0 0.0
          %4036 = vmatpush1.msra.mxu0 %v3912
          %4037 = vmatprep.subr.mxu0 0.0
          %4038 = vmatpush1.msra.mxu0 %v3911
          %4039 = vmatprep.subr.mxu0 0.0
          %4040 = vmatpush1.msra.mxu0 %v3910
          %4041 = vmatprep.subr.mxu0 0.0
          %4042 = vmatpush2.msra.mxu0 0.0
          %4043 = vmatprep.subr.mxu0 0.0
          %4044 = vmatpush2.msra.mxu0 0.0
          %4045 = vmatprep.subr.mxu0 0.0
          %4046 = vmatpush2.msra.mxu0 0.0
          %4047 = vmatprep.subr.mxu0 0.0
          %4048 = vmatpush2.msra.mxu0 0.0
          %4049 = vmatprep.subr.mxu0 0.0
          %4050 = vmatpush2.msra.mxu0 0.0
          %4051 = vmatprep.subr.mxu0 0.0
          %4052 = vmatpush2.msra.mxu0 0.0
          %4053 = vmatprep.subr.mxu0 0.0
          %4054 = vmatpush2.msra.mxu0 0.0
          %4055 = vmatprep.subr.mxu0 0.0
          %4056 = vmatpush2.msra.mxu0 0.0
          %4057 = vmatprep.subr.mxu0 0.0
          %4058 = vmatpush2.msra.mxu0 0.0
          %4059 = vmatprep.subr.mxu0 0.0
          %4060 = vmatpush2.msra.mxu0 0.0
          %4061 = vmatprep.subr.mxu0 0.0
          %4062 = vmatpush2.msra.mxu0 0.0
          %4063 = vmatprep.subr.mxu0 0.0
          %4064 = vmatpush2.msra.mxu0 0.0
          %4065 = vmatprep.subr.mxu0 0.0
          %4066 = vmatpush2.msra.mxu0 0.0
          %4067 = vmatprep.subr.mxu0 0.0
          %4068 = vmatpush2.msra.mxu0 0.0
          %4069 = vmatprep.subr.mxu0 0.0
          %4070 = vmatpush2.msra.mxu0 0.0
          %4071 = vmatprep.subr.mxu0 0.0
          %4072 = vmatpush2.msra.mxu0 0.0
          %4073 = vmatprep.mubr.f32.mxu0 0.0
          %4074 = vmatmul.mubr.f32.gmra.mxu0 %v4004
          %v4075 = vpop.f32.mrf.mxu0
          %v4076 = vadd.f32 %v3995, %v4075
          %v4077 = vpop.f32.mrf.mxu0
          %4078 = vmatprep.mubr.f32.mxu0 0.0
          %4079 = vmatmul.mubr.f32.gmra.mxu0 %v4007
          %v4080 = vpop.f32.mrf.mxu0
          %v4081 = vadd.f32 %v4000, %v4080
          %v4082 = vpop.f32.mrf.mxu0
          %4083 = vdwg.mxu0
          %v4084 = vld [vmem:[%s57] sm:$0x1]
          %v4086 = vlaneseq
          %v4087 = vshrl.u32 %v4086, 7
          %v4088 = vsub.s32 0, %v4087
          %v4089 = vrot.slane %v4084, %v4088
          %v4091 = vadd.f32 %v4076, %v4089
          %v4092 = vadd.f32 %v4081, %v4089
          %v4093 = vmax.f32 %v4091, 0.0
          %v4094 = vmax.f32 %v4092, 0.0
          %v4095 = vld [vmem:[%s59] sm:$0xff]
          %v4096 = vld [vmem:[%s59 + $0x8] sm:$0xff]
          %v4097 = vld [vmem:[%s59 + $0x10] sm:$0xff]
          %v4098 = vld [vmem:[%s59 + $0x18] sm:$0xff]
          %v4099 = vld [vmem:[%s61] sm:$0x1]
          %v4101 = vlaneseq
          %v4102 = vshrl.u32 %v4101, 7
          %v4103 = vsub.s32 0, %v4102
          %v4104 = vrot.slane %v4099, %v4103
          %v4107 = vsel %vm1416, %v4093, 0
          %v4110 = vsel %vm1416, %v4094, 0
          %4112 = vmatprep.subr.mxu0 0.0
          %4113 = vmatpush1.msra.mxu0 0.0
          %4114 = vmatprep.subr.mxu0 0.0
          %4115 = vmatpush1.msra.mxu0 0.0
          %4116 = vmatprep.subr.mxu0 0.0
          %4117 = vmatpush1.msra.mxu0 0.0
          %4118 = vmatprep.subr.mxu0 0.0
          %4119 = vmatpush1.msra.mxu0 0.0
          %4120 = vmatprep.subr.mxu0 0.0
          %4121 = vmatpush1.msra.mxu0 0.0
          %4122 = vmatprep.subr.mxu0 0.0
          %4123 = vmatpush1.msra.mxu0 0.0
          %4124 = vmatprep.subr.mxu0 0.0
          %4125 = vmatpush1.msra.mxu0 0.0
          %4126 = vmatprep.subr.mxu0 0.0
          %4127 = vmatpush1.msra.mxu0 0.0
          %4128 = vmatprep.subr.mxu0 0.0
          %4129 = vmatpush1.msra.mxu0 0.0
          %4130 = vmatprep.subr.mxu0 0.0
          %4131 = vmatpush1.msra.mxu0 0.0
          %4132 = vmatprep.subr.mxu0 0.0
          %4133 = vmatpush1.msra.mxu0 0.0
          %4134 = vmatprep.subr.mxu0 0.0
          %4135 = vmatpush1.msra.mxu0 0.0
          %4136 = vmatprep.subr.mxu0 0.0
          %4137 = vmatpush1.msra.mxu0 %v4098
          %4138 = vmatprep.subr.mxu0 0.0
          %4139 = vmatpush1.msra.mxu0 %v4097
          %4140 = vmatprep.subr.mxu0 0.0
          %4141 = vmatpush1.msra.mxu0 %v4096
          %4142 = vmatprep.subr.mxu0 0.0
          %4143 = vmatpush1.msra.mxu0 %v4095
          %4144 = vmatprep.subr.mxu0 0.0
          %4145 = vmatpush2.msra.mxu0 0.0
          %4146 = vmatprep.subr.mxu0 0.0
          %4147 = vmatpush2.msra.mxu0 0.0
          %4148 = vmatprep.subr.mxu0 0.0
          %4149 = vmatpush2.msra.mxu0 0.0
          %4150 = vmatprep.subr.mxu0 0.0
          %4151 = vmatpush2.msra.mxu0 0.0
          %4152 = vmatprep.subr.mxu0 0.0
          %4153 = vmatpush2.msra.mxu0 0.0
          %4154 = vmatprep.subr.mxu0 0.0
          %4155 = vmatpush2.msra.mxu0 0.0
          %4156 = vmatprep.subr.mxu0 0.0
          %4157 = vmatpush2.msra.mxu0 0.0
          %4158 = vmatprep.subr.mxu0 0.0
          %4159 = vmatpush2.msra.mxu0 0.0
          %4160 = vmatprep.subr.mxu0 0.0
          %4161 = vmatpush2.msra.mxu0 0.0
          %4162 = vmatprep.subr.mxu0 0.0
          %4163 = vmatpush2.msra.mxu0 0.0
          %4164 = vmatprep.subr.mxu0 0.0
          %4165 = vmatpush2.msra.mxu0 0.0
          %4166 = vmatprep.subr.mxu0 0.0
          %4167 = vmatpush2.msra.mxu0 0.0
          %4168 = vmatprep.subr.mxu0 0.0
          %4169 = vmatpush2.msra.mxu0 0.0
          %4170 = vmatprep.subr.mxu0 0.0
          %4171 = vmatpush2.msra.mxu0 0.0
          %4172 = vmatprep.subr.mxu0 0.0
          %4173 = vmatpush2.msra.mxu0 0.0
          %4174 = vmatprep.subr.mxu0 0.0
          %4175 = vmatpush2.msra.mxu0 0.0
          %4176 = vmatprep.mubr.f32.mxu0 0.0
          %4177 = vmatmul.mubr.f32.gmra.mxu0 %v4107
          %v4178 = vpop.f32.mrf.mxu0
          %v4179 = vadd.f32 %v4104, %v4178
          %v4180 = vpop.f32.mrf.mxu0
          %4181 = vmatprep.mubr.f32.mxu0 0.0
          %4182 = vmatmul.mubr.f32.gmra.mxu0 %v4110
          %v4183 = vpop.f32.mrf.mxu0
          %v4184 = vadd.f32 %v4104, %v4183
          %v4185 = vpop.f32.mrf.mxu0
          %4186 = vdwg.mxu0
          %v4187 = vmax.f32 %v4179, 0.0
          %v4188 = vmax.f32 %v4184, 0.0
          %4189 = vst.msk [vmem:[#allocation2] sm:$0xff] %vm1416, %v4187
          %4190 = vst.msk [vmem:[#allocation2 + $0x8] sm:$0xff] %vm1416, %v4188
        $region152: #{run.1} parent=143 // pred_fallthru
          _
        // Predicated region
        $region153: #{run.1} parent=143 // pred_check
          %p4191 = pneg %p819
        $region154: #{run.1} parent=143 // pred_check_branch
          %4193 = sbr.rel (%p4191) target = $region156
        $region155: #{run.1} parent=143 // pred_region
          %s4195 = ssub.s32 256, 256
          %4196 = vsyncadd [#allocation3], %s4195
          %s4197 = sshll.u32 [#allocation2], 4
          %s4198 = int_to_ptr.vmem [resolvable:$true] %s4197
          %4203 = dma.vmem_to_hbm [thread:$0]  %s4198, 256, %s63, [#allocation3], 128, 128, 8
        $region156: #{run.1} parent=143 // pred_fallthru
          _
        // Predicated region
        $region157: #{run.1} parent=143 // pred_check
          %p4204 = pneg %p819
        $region158: #{run.1} parent=143 // pred_check_branch
          %4206 = sbr.rel (%p4204) target = $region160
        $region159: #{run.1} parent=143 // pred_region
          %4207 = dma.done [#allocation3], 256
        $region160: #{run.1} parent=143 // pred_fallthru
          _
      $region144: #{run.1} parent=5 // pred_fallthru
        _
      %p4208 = scmp.le.s32.totalorder 2, %s70
      // Predicated region
      $region161: #{run.1} parent=5 // pred_check
        %p4209 = pneg %p4208
      $region162: #{run.1} parent=5 // pred_check_branch
        %4211 = sbr.rel (%p4209) target = $region164
      $region163: #{run.1} parent=5 // pred_region
        %s4212 = ssub.s32 %s70, 2
      $region164: #{run.1} parent=5 // pred_fallthru
        _
    $region6: #{run.1} parent=1 // loop_footer
      %s74 = sadd.s32 1, %s70
    $region7: #{run.1} parent=1 // loop_footer_branch
      %69 = sbr.rel target = $region3
    $region8: #{run.1} parent=1 // loop_exit
      _
    %4213 = vsyncpa [#allocation3], 1
    %s4214 = scalar_lea.sflag [#allocation3], 1
    %4215 = vsyncpa %s4214, 1

</llo_original>
